<compile_context>
chip_gen: v7x
topology: tpu7x:2x2x1
jax: 0.10.0
libtpu: 0.0.40
codegen_flags: <defaults>
</compile_context>

<pallas_src>
import functools
import math

import jax
import jax.numpy as jnp
from jax.experimental import pallas as pl


# ----------------------------------------------------------------------------
# Fused Pallas kernel: entire ESA forward
# ----------------------------------------------------------------------------
def _esa_fused_kernel(
    x_ref, mask_m_ref, mask_s_ref, mask_p_ref,
    # encoder layer 0: masked SAB ('M', idx=1)
    ln0_g, ln0_b, wproj0, bproj0, bout0,
    # encoder layer 1: unmasked SAB ('S', idx=0)
    ln1_g, ln1_b, wproj1, bproj1, bout1,
    # decoder PMA ('P')
    ln2_g, ln2_b, seeds_ref, wq2, bq2, wkv2, bkv2, bout2,
    # final linear
    dec_w, dec_b,
    out_ref,
    *, num_heads, eps,
):
    B, N, D = x_ref.shape
    H = num_heads
    dh = D // H
    BN = B * N
    S = seeds_ref.shape[0]

    x = x_ref[...].reshape(BN, D).astype(jnp.float32)                 # (B*N, D)

    def layer_norm(x2, g_ref, b_ref):
        g = g_ref[...].astype(jnp.float32)                             # (1, D)
        bb = b_ref[...].astype(jnp.float32)
        mu = jnp.mean(x2, axis=-1, keepdims=True)
        xc = x2 - mu
        var = jnp.mean(xc * xc, axis=-1, keepdims=True)
        return xc * jax.lax.rsqrt(var + eps) * g + bb

    def packed_attention(q, k, v_lanes, mask, bout_ref):
        """Block-diagonal (head x batch)-packed multi-head attention.

        q        : (Rq, D)    query features, head slices along lanes
        k        : (Rk, D)
        v_lanes  : (Rk, H*D)  values already projected through the per-head
                              out-projection (Wv_h @ Wo_h), head blocks on lanes
        mask     : (H*Rq, H*Rk) additive bias; -1e9 off the (head,batch)
                              diagonal blocks, adjacency bias (0/-99999) on them.
        The 1/sqrt(dh) scale is pre-folded into the Q projection weights.
        Returns (Rq, D) = softmax(qk^T + mask) v @ Wo  (+ fused bias).
        """
        rq = q.shape[0]
        # Pack heads along sublanes: one dense score matrix per MAB instead of
        # B*H tiny (16x16) ones.
        qp = jnp.concatenate([q[:, h * dh:(h + 1) * dh] for h in range(H)], axis=0)
        kp = jnp.concatenate([k[:, h * dh:(h + 1) * dh] for h in range(H)], axis=0)
        vp = jnp.concatenate([v_lanes[:, h * D:(h + 1) * D] for h in range(H)], axis=0)
        # scores (H*Rq, H*Rk): single MXU op, no materialized k transpose.
        s = jax.lax.dot_general(qp, kp, (((1,), (1,)), ((), ())),
                                preferred_element_type=jnp.float32)
        s = s + mask
        m = jnp.max(s, axis=-1, keepdims=True)
        p = jnp.exp(s - m)                         # off-block entries underflow to 0
        inv = 1.0 / jnp.sum(p, axis=-1, keepdims=True)     # exact softmax
        p = p * inv
        # P @ V': single MXU op; fc_o is already folded into V', so summing the
        # H sublane blocks completes attention + out-projection.
        pv = jnp.dot(p, vp, preferred_element_type=jnp.float32)        # (H*Rq, D)
        out = pv[0:rq, :]
        for h in range(1, H):
            out = out + pv[h * rq:(h + 1) * rq, :]
        return out + bout_ref[...].astype(jnp.float32)

    def sab(x2, wproj_ref, bproj_ref, bout_ref, mask):
        # One fused projection per SAB: columns = [Q | K | V'(Wv_h@Wo_h per head)].
        wp = wproj_ref[...].astype(jnp.float32)                         # (D, 2D+H*D)
        bp = bproj_ref[...].astype(jnp.float32)
        proj = jnp.dot(x2, wp, preferred_element_type=jnp.float32) + bp
        q = proj[:, 0:D]
        k = proj[:, D:2 * D]
        v_lanes = proj[:, 2 * D:2 * D + H * D]
        return packed_attention(q, k, v_lanes, mask, bout_ref)

    mask_m = mask_m_ref[...].astype(jnp.float32)
    mask_s = mask_s_ref[...].astype(jnp.float32)
    mask_p = mask_p_ref[...].astype(jnp.float32)

    # --- encoder layer 0: masked SAB ('M') --- (pre-norm: out = LN(X) + attn(LN(X)))
    xn = layer_norm(x, ln0_g, ln0_b)
    h = xn + sab(xn, wproj0, bproj0, bout0, mask_m)

    # --- encoder layer 1: unmasked SAB ('S') ---
    xn = layer_norm(h, ln1_g, ln1_b)
    h = xn + sab(xn, wproj1, bproj1, bout1, mask_s)

    # --- outer residual with the original input (ESA.forward: enc = enc + X) ---
    enc = h + x

    # --- decoder PMA ('P'): seeds attend over LN(enc); no residual (S != N) ---
    xn = layer_norm(enc, ln2_g, ln2_b)
    seeds = seeds_ref[...].astype(jnp.float32)                          # (S, D)
    qs = jnp.dot(seeds, wq2[...].astype(jnp.float32),
                 preferred_element_type=jnp.float32) + bq2[...].astype(jnp.float32)
    q_full = jnp.concatenate([qs] * B, axis=0)                          # (B*S, D)
    kvp = jnp.dot(xn, wkv2[...].astype(jnp.float32),
                  preferred_element_type=jnp.float32) + bkv2[...].astype(jnp.float32)
    k = kvp[:, 0:D]
    v_lanes = kvp[:, D:D + H * D]
    pma = packed_attention(q_full, k, v_lanes, mask_p, bout2)           # (B*S, D)

    # mean over the S seed rows per graph -> (B, D)
    pooled = jnp.concatenate(
        [jnp.mean(pma[b * S:(b + 1) * S, :], axis=0, keepdims=True) for b in range(B)],
        axis=0)

    # --- final linear + mish (numerically stable softplus) ---
    y = jnp.dot(pooled, dec_w[...].astype(jnp.float32),
                preferred_element_type=jnp.float32) + dec_b[...].astype(jnp.float32)
    sp = jnp.maximum(y, 0.0) + jnp.log(1.0 + jnp.exp(-jnp.abs(y)))
    out_ref[...] = (y * jnp.tanh(sp)).astype(out_ref.dtype)


# ----------------------------------------------------------------------------
# Host-side glue
# ----------------------------------------------------------------------------
def build_edge_adj_mask(edge_index, batch_mapping, batch_size, max_items):
    """Edge-adjacency additive attention bias (B, max_items, max_items); 0 keep / -99999 drop."""
    # TODO(synk): assumes each graph's edges are contiguous in edge_index and
    # E_per_graph <= max_items (same assumption as the torch helper).
    src = edge_index[0]
    tgt = edge_index[1]
    E = src.shape[0]
    same_s = src[:, None] == src[None, :]
    same_t = tgt[:, None] == tgt[None, :]
    cross = (src[:, None] == tgt[None, :]) | (tgt[:, None] == src[None, :])
    adj = (same_s | same_t | cross) & ~jnp.eye(E, dtype=bool)

    edge_batch = batch_mapping[src]                                     # (E,)
    ar = jnp.arange(E, dtype=jnp.int32)
    first_idx = jnp.full((batch_size,), E, jnp.int32).at[edge_batch].min(ar)
    pos = ar - first_idx[edge_batch]                                    # within-graph edge index

    fill = jnp.float32(-99999.0)
    full = jnp.full((batch_size, max_items, max_items), fill, jnp.float32)
    bi = jnp.broadcast_to(edge_batch[:, None], (E, E)).reshape(-1)
    pi = jnp.broadcast_to(pos[:, None], (E, E)).reshape(-1)
    pj = jnp.broadcast_to(pos[None, :], (E, E)).reshape(-1)
    vals = jnp.where(adj.reshape(-1), 0.0, fill)
    return full.at[bi, pi, pj].max(vals)                                # (B, N, N)


def build_packed_masks(adj_mask, num_heads, num_seeds, big_neg=-1e9):
    """Block-diagonal additive masks for (head x batch)-packed attention.

    Packed row/col order is head-major then batch then item, i.e. block
    index g = h*B + b; off-block entries get -1e9 (exp underflows to 0).
    """
    B, N, _ = adj_mask.shape
    H = num_heads
    G = H * B
    same = jnp.eye(G, dtype=jnp.bool_)[:, None, :, None]                # (G,1,G,1)
    big = jnp.float32(big_neg)
    zero = jnp.float32(0.0)
    adj_rep = jnp.tile(adj_mask, (H, 1, 1))[:, :, None, :]              # (G,N,1,N)
    mask_m = jnp.where(same, adj_rep, big).reshape(G * N, G * N)
    mask_s = jnp.where(jnp.broadcast_to(same, (G, N, G, N)), zero, big
                       ).reshape(G * N, G * N)
    mask_p = jnp.where(jnp.broadcast_to(same, (G, num_seeds, G, N)), zero, big
                       ).reshape(G * num_seeds, G * N)
    return mask_m, mask_s, mask_p


def _fuse_mab(mab, num_heads):
    """Build the kernel-layout tensors from torch-like per-projection weights.

    * folds 1/sqrt(dh) into the Q projection (zero in-kernel cost),
    * folds fc_o into fc_v per head:  Wvo_h = Wv[:, h] @ Wo[h, :],
    * fuses the remaining biases into a single post-attention bias.
    """
    Wq, Wk, Wv, Wo = mab["wq"], mab["wk"], mab["wv"], mab["wo"]
    bq, bk, bv, bo = mab["bq"], mab["bk"], mab["bv"], mab["bo"]
    D = Wq.shape[0]
    dh = D // num_heads
    scale = 1.0 / math.sqrt(dh)
    Wq_s = Wq * scale
    bq_s = bq * scale
    Wvo = jnp.concatenate(
        [Wv[:, h * dh:(h + 1) * dh] @ Wo[h * dh:(h + 1) * dh, :]
         for h in range(num_heads)], axis=1)                            # (D, H*D)
    b_out = (bv @ Wo + bo).reshape(1, D)
    return Wq_s, bq_s, Wk, bk, Wvo, b_out


def esa_forward(params, X, edge_index, batch_mapping, num_max_items,
                set_max_items=16, num_heads=4):
    del num_max_items  # carried through the torch tuples but unused here
    B, N, D = X.shape
    H = num_heads
    adj_mask = build_edge_adj_mask(edge_index, batch_mapping, B, set_max_items)

    e0, e1, d0 = params["enc0"], params["enc1"], params["dec0"]
    S = d0["seeds"].shape[0]
    mask_m, mask_s, mask_p = build_packed_masks(adj_mask, H, S)
    dim_out = params["dec_w"].shape[1]

    def sab_args(layer):
        Wq_s, bq_s, Wk, bk, Wvo, b_out = _fuse_mab(layer["mab"], H)
        w_proj = jnp.concatenate([Wq_s, Wk, Wvo], axis=1)               # (D, 2D+H*D)
        b_proj = jnp.concatenate(
            [bq_s, bk, jnp.zeros((H * D,), jnp.float32)]).reshape(1, -1)
        return (layer["ln_g"], layer["ln_b"], w_proj, b_proj, b_out)

    Wq2, bq2, Wk2, bk2, Wvo2, bout2 = _fuse_mab(d0["mab"], H)
    w_kv2 = jnp.concatenate([Wk2, Wvo2], axis=1)                        # (D, D+H*D)
    b_kv2 = jnp.concatenate([bk2, jnp.zeros((H * D,), jnp.float32)]).reshape(1, -1)

    kernel = functools.partial(_esa_fused_kernel, num_heads=H, eps=1e-5)
    # No grid: the whole (tiny) working set lives in VMEM for one kernel call.
    return pl.pallas_call(
        kernel,
        out_shape=jax.ShapeDtypeStruct((B, dim_out), X.dtype),
    )(
        X, mask_m, mask_s, mask_p,
        *sab_args(e0),
        *sab_args(e1),
        d0["ln_g"], d0["ln_b"], d0["seeds"], Wq2, bq2.reshape(1, D),
        w_kv2, b_kv2, bout2,
        params["dec_w"], params["dec_b"],
    )


# ----------------------------------------------------------------------------
# Parameter init (torch nn.Linear-like), stored in x @ W orientation
# ----------------------------------------------------------------------------
def _torch_linear(key, d_in, d_out):
    k1, k2 = jax.random.split(key)
    bound = 1.0 / math.sqrt(d_in)
    w = jax.random.uniform(k1, (d_out, d_in), jnp.float32, -bound, bound)
    b = jax.random.uniform(k2, (d_out,), jnp.float32, -bound, bound)
    return w, b


def _mab_params(key, d_q, d_kv, d_v):
    # TODO(synk): exact MAB/SAB/PMA module code is not in the spec; standard
    # ESA-style MAB (fc_q/fc_k/fc_v -> biased multi-head attention -> fc_o) used.
    ks = jax.random.split(key, 4)
    wq, bq = _torch_linear(ks[0], d_q, d_v)
    wk, bk = _torch_linear(ks[1], d_kv, d_v)
    wv, bv = _torch_linear(ks[2], d_kv, d_v)
    wo, bo = _torch_linear(ks[3], d_v, d_v)
    return dict(wq=wq.T, bq=bq, wk=wk.T, bk=bk, wv=wv.T, bv=bv, wo=wo.T, bo=bo)


def init_esa_params(key, dim_hidden=32, num_outputs=4, dim_output=8):
    ks = jax.random.split(key, 6)
    D = dim_hidden
    params = {
        "enc0": dict(ln_g=jnp.ones((1, D), jnp.float32),
                     ln_b=jnp.zeros((1, D), jnp.float32),
                     mab=_mab_params(ks[0], D, D, D)),
        "enc1": dict(ln_g=jnp.ones((1, D), jnp.float32),
                     ln_b=jnp.zeros((1, D), jnp.float32),
                     mab=_mab_params(ks[1], D, D, D)),
        "dec0": dict(ln_g=jnp.ones((1, D), jnp.float32),
                     ln_b=jnp.zeros((1, D), jnp.float32),
                     seeds=jax.random.normal(ks[2], (num_outputs, D), jnp.float32)
                     / math.sqrt(D),
                     mab=_mab_params(ks[3], D, D, D)),
    }
    w, b = _torch_linear(ks[4], D, dim_output)
    params["dec_w"] = w.T                       # (D, dim_output), pre-transposed
    params["dec_b"] = b.reshape(1, dim_output)
    return params


# ----------------------------------------------------------------------------
# Pure-JAX reference (standard unfused MHA math) for a sanity check
# ----------------------------------------------------------------------------
def _ref_ln(x, g, b, eps=1e-5):
    mu = x.mean(-1, keepdims=True)
    var = ((x - mu) ** 2).mean(-1, keepdims=True)
    return (x - mu) / jnp.sqrt(var + eps) * g + b


def _ref_mha(q, k, v, bias, num_heads):
    B, Nq, D = q.shape
    Nk = k.shape[1]
    H, dh = num_heads, D // num_heads
    qh = q.reshape(B, Nq, H, dh).transpose(0, 2, 1, 3)
    kh = k.reshape(B, Nk, H, dh).transpose(0, 2, 1, 3)
    vh = v.reshape(B, Nk, H, dh).transpose(0, 2, 1, 3)
    s = jnp.einsum("bhqd,bhkd->bhqk", qh, kh) / math.sqrt(dh)
    if bias is not None:
        s = s + bias[:, None]
    p = jax.nn.softmax(s, axis=-1)
    o = jnp.einsum("bhqk,bhkd->bhqd", p, vh)
    return o.transpose(0, 2, 1, 3).reshape(B, Nq, D)


def esa_forward_ref(params, X, adj_mask, num_heads):
    B, N, D = X.shape
    e0, e1, d0 = params["enc0"], params["enc1"], params["dec0"]

    def mha_block(x, p, bias):
        q = x @ p["wq"] + p["bq"]
        k = x @ p["wk"] + p["bk"]
        v = x @ p["wv"] + p["bv"]
        return _ref_mha(q, k, v, bias, num_heads) @ p["wo"] + p["bo"]

    xn = _ref_ln(X, e0["ln_g"], e0["ln_b"])
    h = xn + mha_block(xn, e0["mab"], adj_mask)
    xn = _ref_ln(h, e1["ln_g"], e1["ln_b"])
    h = xn + mha_block(xn, e1["mab"], None)
    enc = h + X

    xn = _ref_ln(enc, d0["ln_g"], d0["ln_b"])
    p = d0["mab"]
    seeds = jnp.broadcast_to(d0["seeds"], (B,) + d0["seeds"].shape)
    q = seeds @ p["wq"] + p["bq"]
    k = xn @ p["wk"] + p["bk"]
    v = xn @ p["wv"] + p["bv"]
    out = _ref_mha(q, k, v, None, num_heads) @ p["wo"] + p["bo"]
    out = out.mean(axis=1)
    y = out @ params["dec_w"] + params["dec_b"]
    return y * jnp.tanh(jax.nn.softplus(y))


# ----------------------------------------------------------------------------
# Example run
# ----------------------------------------------------------------------------
if __name__ == "__main__":
    B = 2               # number of graphs
    N = 16              # set_max_items (padded edge-set size per graph)
    D = 32              # dim_hidden
    DIM_OUT = 8
    HEADS = 4
    SEEDS = 4           # num_outputs (PMA seeds)

    master = jax.random.PRNGKey(0)
    k_x, k_p = jax.random.split(master)

    # graph 0: nodes 0..4, 5-cycle edges; graph 1: nodes 5..8, 4-cycle edges
    edge_index = jnp.array(
        [[0, 1, 2, 3, 4, 5, 6, 7, 8],
         [1, 2, 3, 4, 0, 6, 7, 8, 5]], dtype=jnp.int32)
    batch_mapping = jnp.array([0, 0, 0, 0, 0, 1, 1, 1, 1], dtype=jnp.int32)
    num_max_items = 5

    X = jax.random.normal(k_x, (B, N, D), jnp.float32)
    params = init_esa_params(k_p, dim_hidden=D, num_outputs=SEEDS, dim_output=DIM_OUT)

    fwd = jax.jit(functools.partial(esa_forward, set_max_items=N, num_heads=HEADS))
    out = jax.block_until_ready(fwd(params, X, edge_index, batch_mapping, num_max_items))

    # sanity check against a pure-JAX reference (exact softmax -> tight tol)
    adj_mask = build_edge_adj_mask(edge_index, batch_mapping, B, N)
    ref = esa_forward_ref(params, X, adj_mask, HEADS)

    assert out.shape == (B, DIM_OUT), out.shape
    assert bool(jnp.all(jnp.isfinite(out)))
    assert bool(jnp.allclose(out, ref, rtol=1e-3, atol=1e-3)), (
        jnp.max(jnp.abs(out - ref)))
    print("KERNEL_OK")
</pallas_src>

<mosaic_0001>
module attributes {stable_mosaic.version = 11 : i64} {
  func.func @_esa_fused_kernel(%arg0: memref<2x16x32xf32, #tpu.memory_space<vmem>>, %arg1: memref<128x128xf32, #tpu.memory_space<vmem>>, %arg2: memref<128x128xf32, #tpu.memory_space<vmem>>, %arg3: memref<32x128xf32, #tpu.memory_space<vmem>>, %arg4: memref<1x32xf32, #tpu.memory_space<vmem>>, %arg5: memref<1x32xf32, #tpu.memory_space<vmem>>, %arg6: memref<32x192xf32, #tpu.memory_space<vmem>>, %arg7: memref<1x192xf32, #tpu.memory_space<vmem>>, %arg8: memref<1x32xf32, #tpu.memory_space<vmem>>, %arg9: memref<1x32xf32, #tpu.memory_space<vmem>>, %arg10: memref<1x32xf32, #tpu.memory_space<vmem>>, %arg11: memref<32x192xf32, #tpu.memory_space<vmem>>, %arg12: memref<1x192xf32, #tpu.memory_space<vmem>>, %arg13: memref<1x32xf32, #tpu.memory_space<vmem>>, %arg14: memref<1x32xf32, #tpu.memory_space<vmem>>, %arg15: memref<1x32xf32, #tpu.memory_space<vmem>>, %arg16: memref<4x32xf32, #tpu.memory_space<vmem>>, %arg17: memref<32x32xf32, #tpu.memory_space<vmem>>, %arg18: memref<1x32xf32, #tpu.memory_space<vmem>>, %arg19: memref<32x160xf32, #tpu.memory_space<vmem>>, %arg20: memref<1x160xf32, #tpu.memory_space<vmem>>, %arg21: memref<1x32xf32, #tpu.memory_space<vmem>>, %arg22: memref<32x8xf32, #tpu.memory_space<vmem>>, %arg23: memref<1x8xf32, #tpu.memory_space<vmem>>, %arg24: memref<2x8xf32, #tpu.memory_space<vmem>>) attributes {dimension_semantics = [], scalar_prefetch = 0 : i64, scratch_operands = 0 : i64, tpu.core_type = #tpu.core_type<tc>} {
    %c0 = arith.constant 0 : index
    %c0_0 = arith.constant 0 : index
    %c0_1 = arith.constant 0 : index
    %0 = vector.load %arg0[%c0, %c0_0, %c0_1] : memref<2x16x32xf32, #tpu.memory_space<vmem>>, vector<2x16x32xf32>
    %1 = vector.shape_cast %0 : vector<2x16x32xf32> to vector<32x32xf32>
    %c0_2 = arith.constant 0 : index
    %c0_3 = arith.constant 0 : index
    %2 = vector.load %arg1[%c0_2, %c0_3] : memref<128x128xf32, #tpu.memory_space<vmem>>, vector<128x128xf32>
    %c0_4 = arith.constant 0 : index
    %c0_5 = arith.constant 0 : index
    %3 = vector.load %arg2[%c0_4, %c0_5] : memref<128x128xf32, #tpu.memory_space<vmem>>, vector<128x128xf32>
    %c0_6 = arith.constant 0 : index
    %c0_7 = arith.constant 0 : index
    %4 = vector.load %arg3[%c0_6, %c0_7] : memref<32x128xf32, #tpu.memory_space<vmem>>, vector<32x128xf32>
    %c0_8 = arith.constant 0 : index
    %c0_9 = arith.constant 0 : index
    %5 = vector.load %arg4[%c0_8, %c0_9] : memref<1x32xf32, #tpu.memory_space<vmem>>, vector<1x32xf32>
    %c0_10 = arith.constant 0 : index
    %c0_11 = arith.constant 0 : index
    %6 = vector.load %arg5[%c0_10, %c0_11] : memref<1x32xf32, #tpu.memory_space<vmem>>, vector<1x32xf32>
    %cst = arith.constant dense<0.000000e+00> : vector<32xf32>
    %7 = vector.multi_reduction <add>, %1, %cst [1] : vector<32x32xf32> to vector<32xf32>
    %8 = vector.shape_cast %7 : vector<32xf32> to vector<32x1xf32>
    %cst_12 = arith.constant 3.200000e+01 : f32
    %9 = vector.broadcast %cst_12 : f32 to vector<32x1xf32>
    %10 = arith.divf %8, %9 : vector<32x1xf32>
    %11 = vector.broadcast %10 : vector<32x1xf32> to vector<32x32xf32>
    %12 = arith.subf %1, %11 : vector<32x32xf32>
    %13 = arith.mulf %12, %12 : vector<32x32xf32>
    %cst_13 = arith.constant dense<0.000000e+00> : vector<32xf32>
    %14 = vector.multi_reduction <add>, %13, %cst_13 [1] : vector<32x32xf32> to vector<32xf32>
    %15 = vector.shape_cast %14 : vector<32xf32> to vector<32x1xf32>
    %cst_14 = arith.constant 3.200000e+01 : f32
    %16 = vector.broadcast %cst_14 : f32 to vector<32x1xf32>
    %17 = arith.divf %15, %16 : vector<32x1xf32>
    %cst_15 = arith.constant 9.99999974E-6 : f32
    %18 = vector.broadcast %cst_15 : f32 to vector<32x1xf32>
    %19 = arith.addf %17, %18 : vector<32x1xf32>
    %20 = math.rsqrt %19 : vector<32x1xf32>
    %21 = vector.broadcast %20 : vector<32x1xf32> to vector<32x32xf32>
    %22 = arith.mulf %12, %21 : vector<32x32xf32>
    %23 = vector.broadcast %5 : vector<1x32xf32> to vector<32x32xf32>
    %24 = arith.mulf %22, %23 : vector<32x32xf32>
    %25 = vector.broadcast %6 : vector<1x32xf32> to vector<32x32xf32>
    %26 = arith.addf %24, %25 : vector<32x32xf32>
    %c0_16 = arith.constant 0 : index
    %c0_17 = arith.constant 0 : index
    %27 = vector.load %arg6[%c0_16, %c0_17] : memref<32x192xf32, #tpu.memory_space<vmem>>, vector<32x192xf32>
    %c0_18 = arith.constant 0 : index
    %c0_19 = arith.constant 0 : index
    %28 = vector.load %arg7[%c0_18, %c0_19] : memref<1x192xf32, #tpu.memory_space<vmem>>, vector<1x192xf32>
    %cst_20 = arith.constant dense<0.000000e+00> : vector<32x192xf32>
    %29 = tpu.matmul %26, %27, %cst_20 {dimension_numbers = #tpu.dot_dimension_numbers<[1], [0], [0], [1], [0, 0, 1, 1], [], []>} : vector<32x32xf32>, vector<32x192xf32>, vector<32x192xf32> -> vector<32x192xf32>
    %30 = vector.broadcast %28 : vector<1x192xf32> to vector<32x192xf32>
    %31 = arith.addf %29, %30 : vector<32x192xf32>
    %32 = vector.extract_strided_slice %31 {offsets = [0, 0], sizes = [32, 32], strides = [1, 1]} : vector<32x192xf32> to vector<32x32xf32>
    %33 = vector.extract_strided_slice %31 {offsets = [0, 32], sizes = [32, 32], strides = [1, 1]} : vector<32x192xf32> to vector<32x32xf32>
    %34 = vector.extract_strided_slice %31 {offsets = [0, 64], sizes = [32, 128], strides = [1, 1]} : vector<32x192xf32> to vector<32x128xf32>
    %35 = vector.extract_strided_slice %32 {offsets = [0, 0], sizes = [32, 8], strides = [1, 1]} : vector<32x32xf32> to vector<32x8xf32>
    %36 = vector.extract_strided_slice %32 {offsets = [0, 8], sizes = [32, 8], strides = [1, 1]} : vector<32x32xf32> to vector<32x8xf32>
    %37 = vector.extract_strided_slice %32 {offsets = [0, 16], sizes = [32, 8], strides = [1, 1]} : vector<32x32xf32> to vector<32x8xf32>
    %38 = vector.extract_strided_slice %32 {offsets = [0, 24], sizes = [32, 8], strides = [1, 1]} : vector<32x32xf32> to vector<32x8xf32>
    %39 = tpu.concatenate %35, %36, %37, %38 in 0 : vector<32x8xf32>, vector<32x8xf32>, vector<32x8xf32>, vector<32x8xf32> -> vector<128x8xf32>
    %40 = vector.extract_strided_slice %33 {offsets = [0, 0], sizes = [32, 8], strides = [1, 1]} : vector<32x32xf32> to vector<32x8xf32>
    %41 = vector.extract_strided_slice %33 {offsets = [0, 8], sizes = [32, 8], strides = [1, 1]} : vector<32x32xf32> to vector<32x8xf32>
    %42 = vector.extract_strided_slice %33 {offsets = [0, 16], sizes = [32, 8], strides = [1, 1]} : vector<32x32xf32> to vector<32x8xf32>
    %43 = vector.extract_strided_slice %33 {offsets = [0, 24], sizes = [32, 8], strides = [1, 1]} : vector<32x32xf32> to vector<32x8xf32>
    %44 = tpu.concatenate %40, %41, %42, %43 in 0 : vector<32x8xf32>, vector<32x8xf32>, vector<32x8xf32>, vector<32x8xf32> -> vector<128x8xf32>
    %45 = vector.extract_strided_slice %34 {offsets = [0, 0], sizes = [32, 32], strides = [1, 1]} : vector<32x128xf32> to vector<32x32xf32>
    %46 = vector.extract_strided_slice %34 {offsets = [0, 32], sizes = [32, 32], strides = [1, 1]} : vector<32x128xf32> to vector<32x32xf32>
    %47 = vector.extract_strided_slice %34 {offsets = [0, 64], sizes = [32, 32], strides = [1, 1]} : vector<32x128xf32> to vector<32x32xf32>
    %48 = vector.extract_strided_slice %34 {offsets = [0, 96], sizes = [32, 32], strides = [1, 1]} : vector<32x128xf32> to vector<32x32xf32>
    %49 = tpu.concatenate %45, %46, %47, %48 in 0 : vector<32x32xf32>, vector<32x32xf32>, vector<32x32xf32>, vector<32x32xf32> -> vector<128x32xf32>
    %cst_21 = arith.constant dense<0.000000e+00> : vector<128x128xf32>
    %50 = tpu.matmul %39, %44, %cst_21 {dimension_numbers = #tpu.dot_dimension_numbers<[1], [1], [0], [0], [0, 0, 1, 0], [], []>} : vector<128x8xf32>, vector<128x8xf32>, vector<128x128xf32> -> vector<128x128xf32>
    %51 = arith.addf %50, %2 : vector<128x128xf32>
    %cst_22 = arith.constant dense<0xFF800000> : vector<128xf32>
    %52 = vector.multi_reduction <maximumf>, %51, %cst_22 [1] : vector<128x128xf32> to vector<128xf32>
    %53 = vector.shape_cast %52 : vector<128xf32> to vector<128x1xf32>
    %54 = vector.broadcast %53 : vector<128x1xf32> to vector<128x128xf32>
    %55 = arith.subf %51, %54 : vector<128x128xf32>
    %56 = math.exp %55 : vector<128x128xf32>
    %cst_23 = arith.constant dense<0.000000e+00> : vector<128xf32>
    %57 = vector.multi_reduction <add>, %56, %cst_23 [1] : vector<128x128xf32> to vector<128xf32>
    %58 = vector.shape_cast %57 : vector<128xf32> to vector<128x1xf32>
    %cst_24 = arith.constant 1.000000e+00 : f32
    %59 = vector.broadcast %cst_24 : f32 to vector<128x1xf32>
    %60 = arith.divf %59, %58 : vector<128x1xf32>
    %61 = vector.broadcast %60 : vector<128x1xf32> to vector<128x128xf32>
    %62 = arith.mulf %56, %61 : vector<128x128xf32>
    %cst_25 = arith.constant dense<0.000000e+00> : vector<128x32xf32>
    %63 = tpu.matmul %62, %49, %cst_25 {dimension_numbers = #tpu.dot_dimension_numbers<[1], [0], [0], [1], [0, 0, 1, 1], [], []>} : vector<128x128xf32>, vector<128x32xf32>, vector<128x32xf32> -> vector<128x32xf32>
    %64 = vector.extract_strided_slice %63 {offsets = [0, 0], sizes = [32, 32], strides = [1, 1]} : vector<128x32xf32> to vector<32x32xf32>
    %65 = vector.extract_strided_slice %63 {offsets = [32, 0], sizes = [32, 32], strides = [1, 1]} : vector<128x32xf32> to vector<32x32xf32>
    %66 = arith.addf %64, %65 : vector<32x32xf32>
    %67 = vector.extract_strided_slice %63 {offsets = [64, 0], sizes = [32, 32], strides = [1, 1]} : vector<128x32xf32> to vector<32x32xf32>
    %68 = arith.addf %66, %67 : vector<32x32xf32>
    %69 = vector.extract_strided_slice %63 {offsets = [96, 0], sizes = [32, 32], strides = [1, 1]} : vector<128x32xf32> to vector<32x32xf32>
    %70 = arith.addf %68, %69 : vector<32x32xf32>
    %c0_26 = arith.constant 0 : index
    %c0_27 = arith.constant 0 : index
    %71 = vector.load %arg8[%c0_26, %c0_27] : memref<1x32xf32, #tpu.memory_space<vmem>>, vector<1x32xf32>
    %72 = vector.broadcast %71 : vector<1x32xf32> to vector<32x32xf32>
    %73 = arith.addf %70, %72 : vector<32x32xf32>
    %74 = arith.addf %26, %73 : vector<32x32xf32>
    %c0_28 = arith.constant 0 : index
    %c0_29 = arith.constant 0 : index
    %75 = vector.load %arg9[%c0_28, %c0_29] : memref<1x32xf32, #tpu.memory_space<vmem>>, vector<1x32xf32>
    %c0_30 = arith.constant 0 : index
    %c0_31 = arith.constant 0 : index
    %76 = vector.load %arg10[%c0_30, %c0_31] : memref<1x32xf32, #tpu.memory_space<vmem>>, vector<1x32xf32>
    %cst_32 = arith.constant dense<0.000000e+00> : vector<32xf32>
    %77 = vector.multi_reduction <add>, %74, %cst_32 [1] : vector<32x32xf32> to vector<32xf32>
    %78 = vector.shape_cast %77 : vector<32xf32> to vector<32x1xf32>
    %cst_33 = arith.constant 3.200000e+01 : f32
    %79 = vector.broadcast %cst_33 : f32 to vector<32x1xf32>
    %80 = arith.divf %78, %79 : vector<32x1xf32>
    %81 = vector.broadcast %80 : vector<32x1xf32> to vector<32x32xf32>
    %82 = arith.subf %74, %81 : vector<32x32xf32>
    %83 = arith.mulf %82, %82 : vector<32x32xf32>
    %cst_34 = arith.constant dense<0.000000e+00> : vector<32xf32>
    %84 = vector.multi_reduction <add>, %83, %cst_34 [1] : vector<32x32xf32> to vector<32xf32>
    %85 = vector.shape_cast %84 : vector<32xf32> to vector<32x1xf32>
    %cst_35 = arith.constant 3.200000e+01 : f32
    %86 = vector.broadcast %cst_35 : f32 to vector<32x1xf32>
    %87 = arith.divf %85, %86 : vector<32x1xf32>
    %cst_36 = arith.constant 9.99999974E-6 : f32
    %88 = vector.broadcast %cst_36 : f32 to vector<32x1xf32>
    %89 = arith.addf %87, %88 : vector<32x1xf32>
    %90 = math.rsqrt %89 : vector<32x1xf32>
    %91 = vector.broadcast %90 : vector<32x1xf32> to vector<32x32xf32>
    %92 = arith.mulf %82, %91 : vector<32x32xf32>
    %93 = vector.broadcast %75 : vector<1x32xf32> to vector<32x32xf32>
    %94 = arith.mulf %92, %93 : vector<32x32xf32>
    %95 = vector.broadcast %76 : vector<1x32xf32> to vector<32x32xf32>
    %96 = arith.addf %94, %95 : vector<32x32xf32>
    %c0_37 = arith.constant 0 : index
    %c0_38 = arith.constant 0 : index
    %97 = vector.load %arg11[%c0_37, %c0_38] : memref<32x192xf32, #tpu.memory_space<vmem>>, vector<32x192xf32>
    %c0_39 = arith.constant 0 : index
    %c0_40 = arith.constant 0 : index
    %98 = vector.load %arg12[%c0_39, %c0_40] : memref<1x192xf32, #tpu.memory_space<vmem>>, vector<1x192xf32>
    %cst_41 = arith.constant dense<0.000000e+00> : vector<32x192xf32>
    %99 = tpu.matmul %96, %97, %cst_41 {dimension_numbers = #tpu.dot_dimension_numbers<[1], [0], [0], [1], [0, 0, 1, 1], [], []>} : vector<32x32xf32>, vector<32x192xf32>, vector<32x192xf32> -> vector<32x192xf32>
    %100 = vector.broadcast %98 : vector<1x192xf32> to vector<32x192xf32>
    %101 = arith.addf %99, %100 : vector<32x192xf32>
    %102 = vector.extract_strided_slice %101 {offsets = [0, 0], sizes = [32, 32], strides = [1, 1]} : vector<32x192xf32> to vector<32x32xf32>
    %103 = vector.extract_strided_slice %101 {offsets = [0, 32], sizes = [32, 32], strides = [1, 1]} : vector<32x192xf32> to vector<32x32xf32>
    %104 = vector.extract_strided_slice %101 {offsets = [0, 64], sizes = [32, 128], strides = [1, 1]} : vector<32x192xf32> to vector<32x128xf32>
    %105 = vector.extract_strided_slice %102 {offsets = [0, 0], sizes = [32, 8], strides = [1, 1]} : vector<32x32xf32> to vector<32x8xf32>
    %106 = vector.extract_strided_slice %102 {offsets = [0, 8], sizes = [32, 8], strides = [1, 1]} : vector<32x32xf32> to vector<32x8xf32>
    %107 = vector.extract_strided_slice %102 {offsets = [0, 16], sizes = [32, 8], strides = [1, 1]} : vector<32x32xf32> to vector<32x8xf32>
    %108 = vector.extract_strided_slice %102 {offsets = [0, 24], sizes = [32, 8], strides = [1, 1]} : vector<32x32xf32> to vector<32x8xf32>
    %109 = tpu.concatenate %105, %106, %107, %108 in 0 : vector<32x8xf32>, vector<32x8xf32>, vector<32x8xf32>, vector<32x8xf32> -> vector<128x8xf32>
    %110 = vector.extract_strided_slice %103 {offsets = [0, 0], sizes = [32, 8], strides = [1, 1]} : vector<32x32xf32> to vector<32x8xf32>
    %111 = vector.extract_strided_slice %103 {offsets = [0, 8], sizes = [32, 8], strides = [1, 1]} : vector<32x32xf32> to vector<32x8xf32>
    %112 = vector.extract_strided_slice %103 {offsets = [0, 16], sizes = [32, 8], strides = [1, 1]} : vector<32x32xf32> to vector<32x8xf32>
    %113 = vector.extract_strided_slice %103 {offsets = [0, 24], sizes = [32, 8], strides = [1, 1]} : vector<32x32xf32> to vector<32x8xf32>
    %114 = tpu.concatenate %110, %111, %112, %113 in 0 : vector<32x8xf32>, vector<32x8xf32>, vector<32x8xf32>, vector<32x8xf32> -> vector<128x8xf32>
    %115 = vector.extract_strided_slice %104 {offsets = [0, 0], sizes = [32, 32], strides = [1, 1]} : vector<32x128xf32> to vector<32x32xf32>
    %116 = vector.extract_strided_slice %104 {offsets = [0, 32], sizes = [32, 32], strides = [1, 1]} : vector<32x128xf32> to vector<32x32xf32>
    %117 = vector.extract_strided_slice %104 {offsets = [0, 64], sizes = [32, 32], strides = [1, 1]} : vector<32x128xf32> to vector<32x32xf32>
    %118 = vector.extract_strided_slice %104 {offsets = [0, 96], sizes = [32, 32], strides = [1, 1]} : vector<32x128xf32> to vector<32x32xf32>
    %119 = tpu.concatenate %115, %116, %117, %118 in 0 : vector<32x32xf32>, vector<32x32xf32>, vector<32x32xf32>, vector<32x32xf32> -> vector<128x32xf32>
    %cst_42 = arith.constant dense<0.000000e+00> : vector<128x128xf32>
    %120 = tpu.matmul %109, %114, %cst_42 {dimension_numbers = #tpu.dot_dimension_numbers<[1], [1], [0], [0], [0, 0, 1, 0], [], []>} : vector<128x8xf32>, vector<128x8xf32>, vector<128x128xf32> -> vector<128x128xf32>
    %121 = arith.addf %120, %3 : vector<128x128xf32>
    %cst_43 = arith.constant dense<0xFF800000> : vector<128xf32>
    %122 = vector.multi_reduction <maximumf>, %121, %cst_43 [1] : vector<128x128xf32> to vector<128xf32>
    %123 = vector.shape_cast %122 : vector<128xf32> to vector<128x1xf32>
    %124 = vector.broadcast %123 : vector<128x1xf32> to vector<128x128xf32>
    %125 = arith.subf %121, %124 : vector<128x128xf32>
    %126 = math.exp %125 : vector<128x128xf32>
    %cst_44 = arith.constant dense<0.000000e+00> : vector<128xf32>
    %127 = vector.multi_reduction <add>, %126, %cst_44 [1] : vector<128x128xf32> to vector<128xf32>
    %128 = vector.shape_cast %127 : vector<128xf32> to vector<128x1xf32>
    %cst_45 = arith.constant 1.000000e+00 : f32
    %129 = vector.broadcast %cst_45 : f32 to vector<128x1xf32>
    %130 = arith.divf %129, %128 : vector<128x1xf32>
    %131 = vector.broadcast %130 : vector<128x1xf32> to vector<128x128xf32>
    %132 = arith.mulf %126, %131 : vector<128x128xf32>
    %cst_46 = arith.constant dense<0.000000e+00> : vector<128x32xf32>
    %133 = tpu.matmul %132, %119, %cst_46 {dimension_numbers = #tpu.dot_dimension_numbers<[1], [0], [0], [1], [0, 0, 1, 1], [], []>} : vector<128x128xf32>, vector<128x32xf32>, vector<128x32xf32> -> vector<128x32xf32>
    %134 = vector.extract_strided_slice %133 {offsets = [0, 0], sizes = [32, 32], strides = [1, 1]} : vector<128x32xf32> to vector<32x32xf32>
    %135 = vector.extract_strided_slice %133 {offsets = [32, 0], sizes = [32, 32], strides = [1, 1]} : vector<128x32xf32> to vector<32x32xf32>
    %136 = arith.addf %134, %135 : vector<32x32xf32>
    %137 = vector.extract_strided_slice %133 {offsets = [64, 0], sizes = [32, 32], strides = [1, 1]} : vector<128x32xf32> to vector<32x32xf32>
    %138 = arith.addf %136, %137 : vector<32x32xf32>
    %139 = vector.extract_strided_slice %133 {offsets = [96, 0], sizes = [32, 32], strides = [1, 1]} : vector<128x32xf32> to vector<32x32xf32>
    %140 = arith.addf %138, %139 : vector<32x32xf32>
    %c0_47 = arith.constant 0 : index
    %c0_48 = arith.constant 0 : index
    %141 = vector.load %arg13[%c0_47, %c0_48] : memref<1x32xf32, #tpu.memory_space<vmem>>, vector<1x32xf32>
    %142 = vector.broadcast %141 : vector<1x32xf32> to vector<32x32xf32>
    %143 = arith.addf %140, %142 : vector<32x32xf32>
    %144 = arith.addf %96, %143 : vector<32x32xf32>
    %145 = arith.addf %144, %1 : vector<32x32xf32>
    %c0_49 = arith.constant 0 : index
    %c0_50 = arith.constant 0 : index
    %146 = vector.load %arg14[%c0_49, %c0_50] : memref<1x32xf32, #tpu.memory_space<vmem>>, vector<1x32xf32>
    %c0_51 = arith.constant 0 : index
    %c0_52 = arith.constant 0 : index
    %147 = vector.load %arg15[%c0_51, %c0_52] : memref<1x32xf32, #tpu.memory_space<vmem>>, vector<1x32xf32>
    %cst_53 = arith.constant dense<0.000000e+00> : vector<32xf32>
    %148 = vector.multi_reduction <add>, %145, %cst_53 [1] : vector<32x32xf32> to vector<32xf32>
    %149 = vector.shape_cast %148 : vector<32xf32> to vector<32x1xf32>
    %cst_54 = arith.constant 3.200000e+01 : f32
    %150 = vector.broadcast %cst_54 : f32 to vector<32x1xf32>
    %151 = arith.divf %149, %150 : vector<32x1xf32>
    %152 = vector.broadcast %151 : vector<32x1xf32> to vector<32x32xf32>
    %153 = arith.subf %145, %152 : vector<32x32xf32>
    %154 = arith.mulf %153, %153 : vector<32x32xf32>
    %cst_55 = arith.constant dense<0.000000e+00> : vector<32xf32>
    %155 = vector.multi_reduction <add>, %154, %cst_55 [1] : vector<32x32xf32> to vector<32xf32>
    %156 = vector.shape_cast %155 : vector<32xf32> to vector<32x1xf32>
    %cst_56 = arith.constant 3.200000e+01 : f32
    %157 = vector.broadcast %cst_56 : f32 to vector<32x1xf32>
    %158 = arith.divf %156, %157 : vector<32x1xf32>
    %cst_57 = arith.constant 9.99999974E-6 : f32
    %159 = vector.broadcast %cst_57 : f32 to vector<32x1xf32>
    %160 = arith.addf %158, %159 : vector<32x1xf32>
    %161 = math.rsqrt %160 : vector<32x1xf32>
    %162 = vector.broadcast %161 : vector<32x1xf32> to vector<32x32xf32>
    %163 = arith.mulf %153, %162 : vector<32x32xf32>
    %164 = vector.broadcast %146 : vector<1x32xf32> to vector<32x32xf32>
    %165 = arith.mulf %163, %164 : vector<32x32xf32>
    %166 = vector.broadcast %147 : vector<1x32xf32> to vector<32x32xf32>
    %167 = arith.addf %165, %166 : vector<32x32xf32>
    %c0_58 = arith.constant 0 : index
    %c0_59 = arith.constant 0 : index
    %168 = vector.load %arg16[%c0_58, %c0_59] : memref<4x32xf32, #tpu.memory_space<vmem>>, vector<4x32xf32>
    %c0_60 = arith.constant 0 : index
    %c0_61 = arith.constant 0 : index
    %169 = vector.load %arg17[%c0_60, %c0_61] : memref<32x32xf32, #tpu.memory_space<vmem>>, vector<32x32xf32>
    %cst_62 = arith.constant dense<0.000000e+00> : vector<4x32xf32>
    %170 = tpu.matmul %168, %169, %cst_62 {dimension_numbers = #tpu.dot_dimension_numbers<[1], [0], [0], [1], [0, 0, 1, 1], [], []>} : vector<4x32xf32>, vector<32x32xf32>, vector<4x32xf32> -> vector<4x32xf32>
    %c0_63 = arith.constant 0 : index
    %c0_64 = arith.constant 0 : index
    %171 = vector.load %arg18[%c0_63, %c0_64] : memref<1x32xf32, #tpu.memory_space<vmem>>, vector<1x32xf32>
    %172 = vector.broadcast %171 : vector<1x32xf32> to vector<4x32xf32>
    %173 = arith.addf %170, %172 : vector<4x32xf32>
    %174 = tpu.concatenate %173, %173 in 0 : vector<4x32xf32>, vector<4x32xf32> -> vector<8x32xf32>
    %c0_65 = arith.constant 0 : index
    %c0_66 = arith.constant 0 : index
    %175 = vector.load %arg19[%c0_65, %c0_66] : memref<32x160xf32, #tpu.memory_space<vmem>>, vector<32x160xf32>
    %cst_67 = arith.constant dense<0.000000e+00> : vector<32x160xf32>
    %176 = tpu.matmul %167, %175, %cst_67 {dimension_numbers = #tpu.dot_dimension_numbers<[1], [0], [0], [1], [0, 0, 1, 1], [], []>} : vector<32x32xf32>, vector<32x160xf32>, vector<32x160xf32> -> vector<32x160xf32>
    %c0_68 = arith.constant 0 : index
    %c0_69 = arith.constant 0 : index
    %177 = vector.load %arg20[%c0_68, %c0_69] : memref<1x160xf32, #tpu.memory_space<vmem>>, vector<1x160xf32>
    %178 = vector.broadcast %177 : vector<1x160xf32> to vector<32x160xf32>
    %179 = arith.addf %176, %178 : vector<32x160xf32>
    %180 = vector.extract_strided_slice %179 {offsets = [0, 0], sizes = [32, 32], strides = [1, 1]} : vector<32x160xf32> to vector<32x32xf32>
    %181 = vector.extract_strided_slice %179 {offsets = [0, 32], sizes = [32, 128], strides = [1, 1]} : vector<32x160xf32> to vector<32x128xf32>
    %182 = vector.extract_strided_slice %174 {offsets = [0, 0], sizes = [8, 8], strides = [1, 1]} : vector<8x32xf32> to vector<8x8xf32>
    %183 = vector.extract_strided_slice %174 {offsets = [0, 8], sizes = [8, 8], strides = [1, 1]} : vector<8x32xf32> to vector<8x8xf32>
    %184 = vector.extract_strided_slice %174 {offsets = [0, 16], sizes = [8, 8], strides = [1, 1]} : vector<8x32xf32> to vector<8x8xf32>
    %185 = vector.extract_strided_slice %174 {offsets = [0, 24], sizes = [8, 8], strides = [1, 1]} : vector<8x32xf32> to vector<8x8xf32>
    %186 = tpu.concatenate %182, %183, %184, %185 in 0 : vector<8x8xf32>, vector<8x8xf32>, vector<8x8xf32>, vector<8x8xf32> -> vector<32x8xf32>
    %187 = vector.extract_strided_slice %180 {offsets = [0, 0], sizes = [32, 8], strides = [1, 1]} : vector<32x32xf32> to vector<32x8xf32>
    %188 = vector.extract_strided_slice %180 {offsets = [0, 8], sizes = [32, 8], strides = [1, 1]} : vector<32x32xf32> to vector<32x8xf32>
    %189 = vector.extract_strided_slice %180 {offsets = [0, 16], sizes = [32, 8], strides = [1, 1]} : vector<32x32xf32> to vector<32x8xf32>
    %190 = vector.extract_strided_slice %180 {offsets = [0, 24], sizes = [32, 8], strides = [1, 1]} : vector<32x32xf32> to vector<32x8xf32>
    %191 = tpu.concatenate %187, %188, %189, %190 in 0 : vector<32x8xf32>, vector<32x8xf32>, vector<32x8xf32>, vector<32x8xf32> -> vector<128x8xf32>
    %192 = vector.extract_strided_slice %181 {offsets = [0, 0], sizes = [32, 32], strides = [1, 1]} : vector<32x128xf32> to vector<32x32xf32>
    %193 = vector.extract_strided_slice %181 {offsets = [0, 32], sizes = [32, 32], strides = [1, 1]} : vector<32x128xf32> to vector<32x32xf32>
    %194 = vector.extract_strided_slice %181 {offsets = [0, 64], sizes = [32, 32], strides = [1, 1]} : vector<32x128xf32> to vector<32x32xf32>
    %195 = vector.extract_strided_slice %181 {offsets = [0, 96], sizes = [32, 32], strides = [1, 1]} : vector<32x128xf32> to vector<32x32xf32>
    %196 = tpu.concatenate %192, %193, %194, %195 in 0 : vector<32x32xf32>, vector<32x32xf32>, vector<32x32xf32>, vector<32x32xf32> -> vector<128x32xf32>
    %cst_70 = arith.constant dense<0.000000e+00> : vector<32x128xf32>
    %197 = tpu.matmul %186, %191, %cst_70 {dimension_numbers = #tpu.dot_dimension_numbers<[1], [1], [0], [0], [0, 0, 1, 0], [], []>} : vector<32x8xf32>, vector<128x8xf32>, vector<32x128xf32> -> vector<32x128xf32>
    %198 = arith.addf %197, %4 : vector<32x128xf32>
    %cst_71 = arith.constant dense<0xFF800000> : vector<32xf32>
    %199 = vector.multi_reduction <maximumf>, %198, %cst_71 [1] : vector<32x128xf32> to vector<32xf32>
    %200 = vector.shape_cast %199 : vector<32xf32> to vector<32x1xf32>
    %201 = vector.broadcast %200 : vector<32x1xf32> to vector<32x128xf32>
    %202 = arith.subf %198, %201 : vector<32x128xf32>
    %203 = math.exp %202 : vector<32x128xf32>
    %cst_72 = arith.constant dense<0.000000e+00> : vector<32xf32>
    %204 = vector.multi_reduction <add>, %203, %cst_72 [1] : vector<32x128xf32> to vector<32xf32>
    %205 = vector.shape_cast %204 : vector<32xf32> to vector<32x1xf32>
    %cst_73 = arith.constant 1.000000e+00 : f32
    %206 = vector.broadcast %cst_73 : f32 to vector<32x1xf32>
    %207 = arith.divf %206, %205 : vector<32x1xf32>
    %208 = vector.broadcast %207 : vector<32x1xf32> to vector<32x128xf32>
    %209 = arith.mulf %203, %208 : vector<32x128xf32>
    %cst_74 = arith.constant dense<0.000000e+00> : vector<32x32xf32>
    %210 = tpu.matmul %209, %196, %cst_74 {dimension_numbers = #tpu.dot_dimension_numbers<[1], [0], [0], [1], [0, 0, 1, 1], [], []>} : vector<32x128xf32>, vector<128x32xf32>, vector<32x32xf32> -> vector<32x32xf32>
    %211 = vector.extract_strided_slice %210 {offsets = [0, 0], sizes = [8, 32], strides = [1, 1]} : vector<32x32xf32> to vector<8x32xf32>
    %212 = vector.extract_strided_slice %210 {offsets = [8, 0], sizes = [8, 32], strides = [1, 1]} : vector<32x32xf32> to vector<8x32xf32>
    %213 = arith.addf %211, %212 : vector<8x32xf32>
    %214 = vector.extract_strided_slice %210 {offsets = [16, 0], sizes = [8, 32], strides = [1, 1]} : vector<32x32xf32> to vector<8x32xf32>
    %215 = arith.addf %213, %214 : vector<8x32xf32>
    %216 = vector.extract_strided_slice %210 {offsets = [24, 0], sizes = [8, 32], strides = [1, 1]} : vector<32x32xf32> to vector<8x32xf32>
    %217 = arith.addf %215, %216 : vector<8x32xf32>
    %c0_75 = arith.constant 0 : index
    %c0_76 = arith.constant 0 : index
    %218 = vector.load %arg21[%c0_75, %c0_76] : memref<1x32xf32, #tpu.memory_space<vmem>>, vector<1x32xf32>
    %219 = vector.broadcast %218 : vector<1x32xf32> to vector<8x32xf32>
    %220 = arith.addf %217, %219 : vector<8x32xf32>
    %221 = vector.extract_strided_slice %220 {offsets = [0, 0], sizes = [4, 32], strides = [1, 1]} : vector<8x32xf32> to vector<4x32xf32>
    %cst_77 = arith.constant dense<0.000000e+00> : vector<32xf32>
    %222 = vector.multi_reduction <add>, %221, %cst_77 [0] : vector<4x32xf32> to vector<32xf32>
    %223 = vector.shape_cast %222 : vector<32xf32> to vector<1x32xf32>
    %cst_78 = arith.constant 4.000000e+00 : f32
    %224 = vector.broadcast %cst_78 : f32 to vector<1x32xf32>
    %225 = arith.divf %223, %224 : vector<1x32xf32>
    %226 = vector.extract_strided_slice %220 {offsets = [4, 0], sizes = [4, 32], strides = [1, 1]} : vector<8x32xf32> to vector<4x32xf32>
    %cst_79 = arith.constant dense<0.000000e+00> : vector<32xf32>
    %227 = vector.multi_reduction <add>, %226, %cst_79 [0] : vector<4x32xf32> to vector<32xf32>
    %228 = vector.shape_cast %227 : vector<32xf32> to vector<1x32xf32>
    %cst_80 = arith.constant 4.000000e+00 : f32
    %229 = vector.broadcast %cst_80 : f32 to vector<1x32xf32>
    %230 = arith.divf %228, %229 : vector<1x32xf32>
    %231 = tpu.concatenate %225, %230 in 0 : vector<1x32xf32>, vector<1x32xf32> -> vector<2x32xf32>
    %c0_81 = arith.constant 0 : index
    %c0_82 = arith.constant 0 : index
    %232 = vector.load %arg22[%c0_81, %c0_82] : memref<32x8xf32, #tpu.memory_space<vmem>>, vector<32x8xf32>
    %cst_83 = arith.constant dense<0.000000e+00> : vector<2x8xf32>
    %233 = tpu.matmul %231, %232, %cst_83 {dimension_numbers = #tpu.dot_dimension_numbers<[1], [0], [0], [1], [0, 0, 1, 1], [], []>} : vector<2x32xf32>, vector<32x8xf32>, vector<2x8xf32> -> vector<2x8xf32>
    %c0_84 = arith.constant 0 : index
    %c0_85 = arith.constant 0 : index
    %234 = vector.load %arg23[%c0_84, %c0_85] : memref<1x8xf32, #tpu.memory_space<vmem>>, vector<1x8xf32>
    %235 = vector.broadcast %234 : vector<1x8xf32> to vector<2x8xf32>
    %236 = arith.addf %233, %235 : vector<2x8xf32>
    %cst_86 = arith.constant 0.000000e+00 : f32
    %237 = vector.broadcast %cst_86 : f32 to vector<2x8xf32>
    %238 = arith.maximumf %236, %237 : vector<2x8xf32>
    %239 = math.absf %236 : vector<2x8xf32>
    %cst_87 = arith.constant 0.000000e+00 : f32
    %240 = vector.broadcast %cst_87 : f32 to vector<2x8xf32>
    %241 = arith.subf %240, %239 : vector<2x8xf32>
    %242 = math.exp %241 : vector<2x8xf32>
    %cst_88 = arith.constant 1.000000e+00 : f32
    %243 = vector.broadcast %cst_88 : f32 to vector<2x8xf32>
    %244 = arith.addf %243, %242 : vector<2x8xf32>
    %245 = math.log %244 : vector<2x8xf32>
    %246 = arith.addf %238, %245 : vector<2x8xf32>
    %247 = math.tanh %246 : vector<2x8xf32>
    %248 = arith.mulf %236, %247 : vector<2x8xf32>
    %c0_89 = arith.constant 0 : index
    %c0_90 = arith.constant 0 : index
    %249 = vector.load %arg24[%c0_89, %c0_90] : memref<2x8xf32, #tpu.memory_space<vmem>>, vector<2x8xf32>
    tpu.vector_store %arg24[%c0_89, %c0_90], %248 {strides = array<i32>} : memref<2x8xf32, #tpu.memory_space<vmem>>, vector<2x8xf32>,
    return
  }
}

</mosaic_0001>

<llo_original>
// kernel: esa_forward.1
$region0: #{esa_forward.1}
  #allocation0 [shape = 'u32[]', space=smem, size = 0x4, offset = 0x4, fixed_abs, tag = 'smem constant byte address 0x4 - core index']
  #allocation1 [shape = 'u32[144,128]{1,0:T(1,128)}', space=vmem, size = 0x12000, scoped, tag = 'internal scratch']
  %s0 = inlined_call_operand.vmem [shape: f32[2,16,32], index: 0, kind: input, shape index: {}]
  %s1 = inlined_call_operand.vmem [shape: f32[128,128], index: 1, kind: input, shape index: {}]
  %s2 = inlined_call_operand.vmem [shape: f32[128,128], index: 2, kind: input, shape index: {}]
  %s3 = inlined_call_operand.vmem [shape: f32[32,128], index: 3, kind: input, shape index: {}]
  %s4 = inlined_call_operand.vmem [shape: f32[1,32], index: 4, kind: input, shape index: {}]
  %s5 = inlined_call_operand.vmem [shape: f32[1,32], index: 5, kind: input, shape index: {}]
  %s6 = inlined_call_operand.vmem [shape: f32[32,192], index: 6, kind: input, shape index: {}]
  %s7 = inlined_call_operand.vmem [shape: f32[1,192], index: 7, kind: input, shape index: {}]
  %s8 = inlined_call_operand.vmem [shape: f32[1,32], index: 8, kind: input, shape index: {}]
  %s9 = inlined_call_operand.vmem [shape: f32[1,32], index: 9, kind: input, shape index: {}]
  %s10 = inlined_call_operand.vmem [shape: f32[1,32], index: 10, kind: input, shape index: {}]
  %s11 = inlined_call_operand.vmem [shape: f32[32,192], index: 11, kind: input, shape index: {}]
  %s12 = inlined_call_operand.vmem [shape: f32[1,192], index: 12, kind: input, shape index: {}]
  %s13 = inlined_call_operand.vmem [shape: f32[1,32], index: 13, kind: input, shape index: {}]
  %s14 = inlined_call_operand.vmem [shape: f32[1,32], index: 14, kind: input, shape index: {}]
  %s15 = inlined_call_operand.vmem [shape: f32[1,32], index: 15, kind: input, shape index: {}]
  %s16 = inlined_call_operand.vmem [shape: f32[4,32], index: 16, kind: input, shape index: {}]
  %s17 = inlined_call_operand.vmem [shape: f32[32,32], index: 17, kind: input, shape index: {}]
  %s18 = inlined_call_operand.vmem [shape: f32[1,32], index: 18, kind: input, shape index: {}]
  %s19 = inlined_call_operand.vmem [shape: f32[32,160], index: 19, kind: input, shape index: {}]
  %s20 = inlined_call_operand.vmem [shape: f32[1,160], index: 20, kind: input, shape index: {}]
  %s21 = inlined_call_operand.vmem [shape: f32[1,32], index: 21, kind: input, shape index: {}]
  %s22 = inlined_call_operand.vmem [shape: f32[32,8], index: 22, kind: input, shape index: {}]
  %s23 = inlined_call_operand.vmem [shape: f32[1,8], index: 23, kind: input, shape index: {}]
  %s24 = inlined_call_operand.hbm [shape: f32[2,8], index: 24, kind: output, shape index: {}]
  %s25 = sld [smem:[#allocation0]]
  $region106: #{esa_forward.1} parent=0
    _
  %s27 = ssub.s32 1, %s25
  %s28 = scalar_select 0, %s27, %s25
  $region1: #{esa_forward.1} parent=0
    #allocation2 [shape = 'u8[1024]{0}', space=vmem, size = 0x400, scoped, tag = 'output window, operand 0, single buffered']
    #allocation3 [shape = 's32[1]{0}', space=sflag, size = 0x4, scoped, tag = 'scoped memory for esa_forward.1']
    %29 = vsyncpa [#allocation3], 0
    // Predicated region
    $region2: #{esa_forward.1} parent=1 // pred_check
      _
    $region3: #{esa_forward.1} parent=1 // pred_check_branch
      %31 = sbr.rel (0) target = $region5
    $region4: #{esa_forward.1} parent=1 // pred_region
      _
    $region5: #{esa_forward.1} parent=1 // pred_fallthru
      _
    // Predicated region
    $region6: #{esa_forward.1} parent=1 // pred_check
      _
    $region7: #{esa_forward.1} parent=1 // pred_check_branch
      %33 = sbr.rel (0) target = $region9
    $region8: #{esa_forward.1} parent=1 // pred_region
      _
    $region9: #{esa_forward.1} parent=1 // pred_fallthru
      _
    // Predicated region
    $region10: #{esa_forward.1} parent=1 // pred_check
      _
    $region11: #{esa_forward.1} parent=1 // pred_check_branch
      %35 = sbr.rel (0) target = $region13
    $region12: #{esa_forward.1} parent=1 // pred_region
      _
    $region13: #{esa_forward.1} parent=1 // pred_fallthru
      _
    // Predicated region
    $region14: #{esa_forward.1} parent=1 // pred_check
      _
    $region15: #{esa_forward.1} parent=1 // pred_check_branch
      %37 = sbr.rel (0) target = $region17
    $region16: #{esa_forward.1} parent=1 // pred_region
      _
    $region17: #{esa_forward.1} parent=1 // pred_fallthru
      _
    // Predicated region
    $region18: #{esa_forward.1} parent=1 // pred_check
      _
    $region19: #{esa_forward.1} parent=1 // pred_check_branch
      %39 = sbr.rel (0) target = $region21
    $region20: #{esa_forward.1} parent=1 // pred_region
      _
    $region21: #{esa_forward.1} parent=1 // pred_fallthru
      _
    // Predicated region
    $region22: #{esa_forward.1} parent=1 // pred_check
      _
    $region23: #{esa_forward.1} parent=1 // pred_check_branch
      %41 = sbr.rel (0) target = $region25
    $region24: #{esa_forward.1} parent=1 // pred_region
      _
    $region25: #{esa_forward.1} parent=1 // pred_fallthru
      _
    // Predicated region
    $region26: #{esa_forward.1} parent=1 // pred_check
      _
    $region27: #{esa_forward.1} parent=1 // pred_check_branch
      %43 = sbr.rel (0) target = $region29
    $region28: #{esa_forward.1} parent=1 // pred_region
      _
    $region29: #{esa_forward.1} parent=1 // pred_fallthru
      _
    // Predicated region
    $region30: #{esa_forward.1} parent=1 // pred_check
      _
    $region31: #{esa_forward.1} parent=1 // pred_check_branch
      %45 = sbr.rel (0) target = $region33
    $region32: #{esa_forward.1} parent=1 // pred_region
      _
    $region33: #{esa_forward.1} parent=1 // pred_fallthru
      _
    // Predicated region
    $region34: #{esa_forward.1} parent=1 // pred_check
      _
    $region35: #{esa_forward.1} parent=1 // pred_check_branch
      %47 = sbr.rel (0) target = $region37
    $region36: #{esa_forward.1} parent=1 // pred_region
      _
    $region37: #{esa_forward.1} parent=1 // pred_fallthru
      _
    // Predicated region
    $region38: #{esa_forward.1} parent=1 // pred_check
      _
    $region39: #{esa_forward.1} parent=1 // pred_check_branch
      %49 = sbr.rel (0) target = $region41
    $region40: #{esa_forward.1} parent=1 // pred_region
      _
    $region41: #{esa_forward.1} parent=1 // pred_fallthru
      _
    // Predicated region
    $region42: #{esa_forward.1} parent=1 // pred_check
      _
    $region43: #{esa_forward.1} parent=1 // pred_check_branch
      %51 = sbr.rel (0) target = $region45
    $region44: #{esa_forward.1} parent=1 // pred_region
      _
    $region45: #{esa_forward.1} parent=1 // pred_fallthru
      _
    // Predicated region
    $region46: #{esa_forward.1} parent=1 // pred_check
      _
    $region47: #{esa_forward.1} parent=1 // pred_check_branch
      %53 = sbr.rel (0) target = $region49
    $region48: #{esa_forward.1} parent=1 // pred_region
      _
    $region49: #{esa_forward.1} parent=1 // pred_fallthru
      _
    // Predicated region
    $region50: #{esa_forward.1} parent=1 // pred_check
      _
    $region51: #{esa_forward.1} parent=1 // pred_check_branch
      %55 = sbr.rel (0) target = $region53
    $region52: #{esa_forward.1} parent=1 // pred_region
      _
    $region53: #{esa_forward.1} parent=1 // pred_fallthru
      _
    // Predicated region
    $region54: #{esa_forward.1} parent=1 // pred_check
      _
    $region55: #{esa_forward.1} parent=1 // pred_check_branch
      %57 = sbr.rel (0) target = $region57
    $region56: #{esa_forward.1} parent=1 // pred_region
      _
    $region57: #{esa_forward.1} parent=1 // pred_fallthru
      _
    // Predicated region
    $region58: #{esa_forward.1} parent=1 // pred_check
      _
    $region59: #{esa_forward.1} parent=1 // pred_check_branch
      %59 = sbr.rel (0) target = $region61
    $region60: #{esa_forward.1} parent=1 // pred_region
      _
    $region61: #{esa_forward.1} parent=1 // pred_fallthru
      _
    // Predicated region
    $region62: #{esa_forward.1} parent=1 // pred_check
      _
    $region63: #{esa_forward.1} parent=1 // pred_check_branch
      %61 = sbr.rel (0) target = $region65
    $region64: #{esa_forward.1} parent=1 // pred_region
      _
    $region65: #{esa_forward.1} parent=1 // pred_fallthru
      _
    // Predicated region
    $region66: #{esa_forward.1} parent=1 // pred_check
      _
    $region67: #{esa_forward.1} parent=1 // pred_check_branch
      %63 = sbr.rel (0) target = $region69
    $region68: #{esa_forward.1} parent=1 // pred_region
      _
    $region69: #{esa_forward.1} parent=1 // pred_fallthru
      _
    // Predicated region
    $region70: #{esa_forward.1} parent=1 // pred_check
      _
    $region71: #{esa_forward.1} parent=1 // pred_check_branch
      %65 = sbr.rel (0) target = $region73
    $region72: #{esa_forward.1} parent=1 // pred_region
      _
    $region73: #{esa_forward.1} parent=1 // pred_fallthru
      _
    // Predicated region
    $region74: #{esa_forward.1} parent=1 // pred_check
      _
    $region75: #{esa_forward.1} parent=1 // pred_check_branch
      %67 = sbr.rel (0) target = $region77
    $region76: #{esa_forward.1} parent=1 // pred_region
      _
    $region77: #{esa_forward.1} parent=1 // pred_fallthru
      _
    // Predicated region
    $region78: #{esa_forward.1} parent=1 // pred_check
      _
    $region79: #{esa_forward.1} parent=1 // pred_check_branch
      %69 = sbr.rel (0) target = $region81
    $region80: #{esa_forward.1} parent=1 // pred_region
      _
    $region81: #{esa_forward.1} parent=1 // pred_fallthru
      _
    // Predicated region
    $region82: #{esa_forward.1} parent=1 // pred_check
      _
    $region83: #{esa_forward.1} parent=1 // pred_check_branch
      %71 = sbr.rel (0) target = $region85
    $region84: #{esa_forward.1} parent=1 // pred_region
      _
    $region85: #{esa_forward.1} parent=1 // pred_fallthru
      _
    // Predicated region
    $region86: #{esa_forward.1} parent=1 // pred_check
      _
    $region87: #{esa_forward.1} parent=1 // pred_check_branch
      %73 = sbr.rel (0) target = $region89
    $region88: #{esa_forward.1} parent=1 // pred_region
      _
    $region89: #{esa_forward.1} parent=1 // pred_fallthru
      _
    // Predicated region
    $region90: #{esa_forward.1} parent=1 // pred_check
      _
    $region91: #{esa_forward.1} parent=1 // pred_check_branch
      %75 = sbr.rel (0) target = $region93
    $region92: #{esa_forward.1} parent=1 // pred_region
      _
    $region93: #{esa_forward.1} parent=1 // pred_fallthru
      _
    // Predicated region
    $region94: #{esa_forward.1} parent=1 // pred_check
      _
    $region95: #{esa_forward.1} parent=1 // pred_check_branch
      %77 = sbr.rel (0) target = $region97
    $region96: #{esa_forward.1} parent=1 // pred_region
      _
    $region97: #{esa_forward.1} parent=1 // pred_fallthru
      _
    %v78 = vld [vmem:[%s0] sm:$0xff]
    %v79 = vld [vmem:[%s0 + $0x8] sm:$0xff]
    %v80 = vld [vmem:[%s0 + $0x10] sm:$0xff]
    %v81 = vld [vmem:[%s0 + $0x18] sm:$0xff]
    %v82 = vld [vmem:[%s1] sm:$0xff]
    %v83 = vld [vmem:[%s1 + $0x8] sm:$0xff]
    %v84 = vld [vmem:[%s1 + $0x10] sm:$0xff]
    %v85 = vld [vmem:[%s1 + $0x18] sm:$0xff]
    %v86 = vld [vmem:[%s1 + $0x20] sm:$0xff]
    %v87 = vld [vmem:[%s1 + $0x28] sm:$0xff]
    %v88 = vld [vmem:[%s1 + $0x30] sm:$0xff]
    %v89 = vld [vmem:[%s1 + $0x38] sm:$0xff]
    %v90 = vld [vmem:[%s1 + $0x40] sm:$0xff]
    %v91 = vld [vmem:[%s1 + $0x48] sm:$0xff]
    %v92 = vld [vmem:[%s1 + $0x50] sm:$0xff]
    %v93 = vld [vmem:[%s1 + $0x58] sm:$0xff]
    %v94 = vld [vmem:[%s1 + $0x60] sm:$0xff]
    %v95 = vld [vmem:[%s1 + $0x68] sm:$0xff]
    %v96 = vld [vmem:[%s1 + $0x70] sm:$0xff]
    %v97 = vld [vmem:[%s1 + $0x78] sm:$0xff]
    %v98 = vld [vmem:[%s2] sm:$0xff]
    %v99 = vld [vmem:[%s2 + $0x8] sm:$0xff]
    %v100 = vld [vmem:[%s2 + $0x10] sm:$0xff]
    %v101 = vld [vmem:[%s2 + $0x18] sm:$0xff]
    %v102 = vld [vmem:[%s2 + $0x20] sm:$0xff]
    %v103 = vld [vmem:[%s2 + $0x28] sm:$0xff]
    %v104 = vld [vmem:[%s2 + $0x30] sm:$0xff]
    %v105 = vld [vmem:[%s2 + $0x38] sm:$0xff]
    %v106 = vld [vmem:[%s2 + $0x40] sm:$0xff]
    %v107 = vld [vmem:[%s2 + $0x48] sm:$0xff]
    %v108 = vld [vmem:[%s2 + $0x50] sm:$0xff]
    %v109 = vld [vmem:[%s2 + $0x58] sm:$0xff]
    %v110 = vld [vmem:[%s2 + $0x60] sm:$0xff]
    %v111 = vld [vmem:[%s2 + $0x68] sm:$0xff]
    %v112 = vld [vmem:[%s2 + $0x70] sm:$0xff]
    %v113 = vld [vmem:[%s2 + $0x78] sm:$0xff]
    %v114 = vld [vmem:[%s3] sm:$0xff]
    %v115 = vld [vmem:[%s3 + $0x8] sm:$0xff]
    %v116 = vld [vmem:[%s3 + $0x10] sm:$0xff]
    %v117 = vld [vmem:[%s3 + $0x18] sm:$0xff]
    %v118 = vld [vmem:[%s4] sm:$0x1]
    %v119 = vld [vmem:[%s5] sm:$0x1]
    %vm120 = vcmask 261120
    %v121 = vsel %vm120, %v78, 0.0
    %122 = vadd.xlane.f32.xlu0 %v121
    %v123 = vpop.xlane.xlu0 %122
    %v124 = vsel %vm120, %v79, 0.0
    %125 = vadd.xlane.f32.xlu0 %v124
    %v126 = vpop.xlane.xlu0 %125
    %v127 = vsel %vm120, %v80, 0.0
    %128 = vadd.xlane.f32.xlu0 %v127
    %v129 = vpop.xlane.xlu0 %128
    %v130 = vsel %vm120, %v81, 0.0
    %131 = vadd.xlane.f32.xlu0 %v130
    %v132 = vpop.xlane.xlu0 %131
    %v133 = vrcp.pop 32.0
    %v134 = vmul.f32 %v123, %v133
    %v135 = vmul.f32 %v126, %v133
    %v136 = vmul.f32 %v129, %v133
    %v137 = vmul.f32 %v132, %v133
    %v138 = vsub.f32 %v78, %v134
    %v139 = vsub.f32 %v79, %v135
    %v140 = vsub.f32 %v80, %v136
    %v141 = vsub.f32 %v81, %v137
    %v142 = vmul.f32 %v138, %v138
    %v143 = vmul.f32 %v139, %v139
    %v144 = vmul.f32 %v140, %v140
    %v145 = vmul.f32 %v141, %v141
    %v146 = vsel %vm120, %v142, 0.0
    %147 = vadd.xlane.f32.xlu0 %v146
    %v148 = vpop.xlane.xlu0 %147
    %v149 = vsel %vm120, %v143, 0.0
    %150 = vadd.xlane.f32.xlu0 %v149
    %v151 = vpop.xlane.xlu0 %150
    %v152 = vsel %vm120, %v144, 0.0
    %153 = vadd.xlane.f32.xlu0 %v152
    %v154 = vpop.xlane.xlu0 %153
    %v155 = vsel %vm120, %v145, 0.0
    %156 = vadd.xlane.f32.xlu0 %v155
    %v157 = vpop.xlane.xlu0 %156
    %v158 = vmul.f32 %v148, %v133
    %v159 = vmul.f32 %v151, %v133
    %v160 = vmul.f32 %v154, %v133
    %v161 = vmul.f32 %v157, %v133
    %v162 = vadd.f32 %v158, 1e-05
    %v163 = vadd.f32 %v159, 1e-05
    %v164 = vadd.f32 %v160, 1e-05
    %v165 = vadd.f32 %v161, 1e-05
    %v166 = vrsqrt.pop %v162
    %v167 = vrsqrt.pop %v163
    %v168 = vrsqrt.pop %v164
    %v169 = vrsqrt.pop %v165
    %v170 = vmul.f32 %v138, %v166
    %v171 = vmul.f32 %v139, %v167
    %v172 = vmul.f32 %v140, %v168
    %v173 = vmul.f32 %v141, %v169
    %v175 = vlaneseq
    %v176 = vshrl.u32 %v175, 7
    %v177 = vsub.s32 0, %v176
    %v178 = vrot.slane %v118, %v177
    %v180 = vmul.f32 %v170, %v178
    %v181 = vmul.f32 %v171, %v178
    %v182 = vmul.f32 %v172, %v178
    %v183 = vmul.f32 %v173, %v178
    %v185 = vlaneseq
    %v186 = vshrl.u32 %v185, 7
    %v187 = vsub.s32 0, %v186
    %v188 = vrot.slane %v119, %v187
    %v190 = vadd.f32 %v180, %v188
    %v191 = vadd.f32 %v181, %v188
    %v192 = vadd.f32 %v182, %v188
    %v193 = vadd.f32 %v183, %v188
    %v194 = vld [vmem:[%s6] sm:$0xff]
    %v195 = vld [vmem:[%s6 + $0x8] sm:$0xff]
    %v196 = vld [vmem:[%s6 + $0x10] sm:$0xff]
    %v197 = vld [vmem:[%s6 + $0x18] sm:$0xff]
    %v198 = vld [vmem:[%s6 + $0x20] sm:$0xff]
    %v199 = vld [vmem:[%s6 + $0x28] sm:$0xff]
    %v200 = vld [vmem:[%s6 + $0x30] sm:$0xff]
    %v201 = vld [vmem:[%s6 + $0x38] sm:$0xff]
    %v202 = vld [vmem:[%s7] sm:$0x3]
    %v204 = vlaneseq
    %v205 = vshrl.u32 %v204, 7
    %v206 = vsub.s32 0, %v205
    %v207 = vrot.slane %v202, %v206
    %v208 = vlaneseq
    %v209 = vshrl.u32 %v208, 7
    %v210 = vsub.s32 1, %v209
    %v211 = vrot.slane %v202, %v210
    %v215 = vsel %vm120, %v190, 0
    %v218 = vsel %vm120, %v191, 0
    %v221 = vsel %vm120, %v192, 0
    %v224 = vsel %vm120, %v193, 0
    %226 = vmatprep.subr.mxu0 %v195
    %227 = vmatpush1.msra.mxu0 %v194
    %228 = vmatprep.subr.mxu0 %v197
    %229 = vmatpush1.msra.mxu0 %v196
    %230 = vmatprep.subr.mxu0 %v199
    %231 = vmatpush1.msra.mxu0 %v198
    %232 = vmatprep.subr.mxu0 %v201
    %233 = vmatpush1.msra.mxu0 %v200
    %234 = vmatprep.subr.mxu0 0.0
    %235 = vmatpush1.msra.mxu0 0.0
    %236 = vmatprep.subr.mxu0 0.0
    %237 = vmatpush1.msra.mxu0 0.0
    %238 = vmatprep.subr.mxu0 0.0
    %239 = vmatpush1.msra.mxu0 0.0
    %240 = vmatprep.subr.mxu0 0.0
    %241 = vmatpush1.msra.mxu0 0.0
    %242 = vmatprep.subr.mxu0 0.0
    %243 = vmatpush1.msra.mxu0 0.0
    %244 = vmatprep.subr.mxu0 0.0
    %245 = vmatpush1.msra.mxu0 0.0
    %246 = vmatprep.subr.mxu0 0.0
    %247 = vmatpush1.msra.mxu0 0.0
    %248 = vmatprep.subr.mxu0 0.0
    %249 = vmatpush1.msra.mxu0 0.0
    %250 = vmatprep.subr.mxu0 0.0
    %251 = vmatpush1.msra.mxu0 0.0
    %252 = vmatprep.subr.mxu0 0.0
    %253 = vmatpush1.msra.mxu0 0.0
    %254 = vmatprep.subr.mxu0 0.0
    %255 = vmatpush1.msra.mxu0 0.0
    %256 = vmatprep.subr.mxu0 0.0
    %257 = vmatpush1.msra.mxu0 0.0
    %258 = vmatprep.subr.mxu0 0.0
    %259 = vmatpush1.msra.mxu0 0.0
    %260 = vmatprep.subr.mxu0 0.0
    %261 = vmatpush1.msra.mxu0 0.0
    %262 = vmatprep.subr.mxu0 0.0
    %263 = vmatpush1.msra.mxu0 0.0
    %264 = vmatprep.subr.mxu0 0.0
    %265 = vmatpush1.msra.mxu0 0.0
    %266 = vmatprep.subr.mxu0 0.0
    %267 = vmatpush1.msra.mxu0 0.0
    %268 = vmatprep.subr.mxu0 0.0
    %269 = vmatpush1.msra.mxu0 0.0
    %270 = vmatprep.subr.mxu0 0.0
    %271 = vmatpush1.msra.mxu0 0.0
    %272 = vmatprep.subr.mxu0 0.0
    %273 = vmatpush1.msra.mxu0 0.0
    %274 = vmatprep.subr.mxu0 0.0
    %275 = vmatpush1.msra.mxu0 0.0
    %276 = vmatprep.subr.mxu0 0.0
    %277 = vmatpush1.msra.mxu0 0.0
    %278 = vmatprep.subr.mxu0 0.0
    %279 = vmatpush1.msra.mxu0 0.0
    %280 = vmatprep.subr.mxu0 0.0
    %281 = vmatpush1.msra.mxu0 0.0
    %282 = vmatprep.subr.mxu0 0.0
    %283 = vmatpush1.msra.mxu0 0.0
    %284 = vmatprep.subr.mxu0 0.0
    %285 = vmatpush1.msra.mxu0 0.0
    %286 = vmatprep.subr.mxu0 0.0
    %287 = vmatpush1.msra.mxu0 0.0
    %288 = vmatprep.subr.mxu0 0.0
    %289 = vmatpush1.msra.mxu0 0.0
    %290 = vmatprep.mubr.f32.mxu0 0.0
    %291 = vmatmul.mubr.f32.gmra.mrb[0].mxu0 %v215
    %v292 = vpop.f32.mrb[0].mxu0
    %v293 = vadd.f32 %v207, %v292
    %v294 = vpop.f32.mrb[0].mxu0
    %v295 = vadd.f32 %v211, %v294
    %296 = vmatprep.mubr.f32.mxu0 0.0
    %297 = vmatmul.mubr.f32.gmra.mrb[0].mxu0 %v218
    %v298 = vpop.f32.mrb[0].mxu0
    %v299 = vadd.f32 %v207, %v298
    %v300 = vpop.f32.mrb[0].mxu0
    %v301 = vadd.f32 %v211, %v300
    %302 = vmatprep.mubr.f32.mxu0 0.0
    %303 = vmatmul.mubr.f32.gmra.mrb[0].mxu0 %v221
    %v304 = vpop.f32.mrb[0].mxu0
    %v305 = vadd.f32 %v207, %v304
    %v306 = vpop.f32.mrb[0].mxu0
    %v307 = vadd.f32 %v211, %v306
    %308 = vmatprep.mubr.f32.mxu0 0.0
    %309 = vmatmul.mubr.f32.gmra.mrb[0].mxu0 %v224
    %v310 = vpop.f32.mrb[0].mxu0
    %v311 = vadd.f32 %v207, %v310
    %v312 = vpop.f32.mrb[0].mxu0
    %v313 = vadd.f32 %v211, %v312
    %314 = vdwg.mxu0
    %319 = vrot.lane.b32.xlu0 %v293, 120
    %v320 = vpop.permute.xlu0 %319
    %321 = vrot.lane.b32.xlu0 %v299, 120
    %v322 = vpop.permute.xlu0 %321
    %323 = vrot.lane.b32.xlu0 %v305, 120
    %v324 = vpop.permute.xlu0 %323
    %325 = vrot.lane.b32.xlu0 %v311, 120
    %v326 = vpop.permute.xlu0 %325
    %327 = vrot.lane.b32.xlu0 %v293, 112
    %v328 = vpop.permute.xlu0 %327
    %329 = vrot.lane.b32.xlu0 %v299, 112
    %v330 = vpop.permute.xlu0 %329
    %331 = vrot.lane.b32.xlu0 %v305, 112
    %v332 = vpop.permute.xlu0 %331
    %333 = vrot.lane.b32.xlu0 %v311, 112
    %v334 = vpop.permute.xlu0 %333
    %335 = vrot.lane.b32.xlu0 %v293, 104
    %v336 = vpop.permute.xlu0 %335
    %337 = vrot.lane.b32.xlu0 %v299, 104
    %v338 = vpop.permute.xlu0 %337
    %339 = vrot.lane.b32.xlu0 %v305, 104
    %v340 = vpop.permute.xlu0 %339
    %341 = vrot.lane.b32.xlu0 %v311, 104
    %v342 = vpop.permute.xlu0 %341
    %343 = vrot.lane.b32.xlu0 %v293, 96
    %v344 = vpop.permute.xlu0 %343
    %345 = vrot.lane.b32.xlu0 %v299, 96
    %v346 = vpop.permute.xlu0 %345
    %347 = vrot.lane.b32.xlu0 %v305, 96
    %v348 = vpop.permute.xlu0 %347
    %349 = vrot.lane.b32.xlu0 %v311, 96
    %v350 = vpop.permute.xlu0 %349
    %355 = vrot.lane.b32.xlu0 %v295, 64
    %v356 = vpop.permute.xlu0 %355
    %357 = vrot.lane.b32.xlu0 %v301, 64
    %v358 = vpop.permute.xlu0 %357
    %359 = vrot.lane.b32.xlu0 %v307, 64
    %v360 = vpop.permute.xlu0 %359
    %361 = vrot.lane.b32.xlu0 %v313, 64
    %v362 = vpop.permute.xlu0 %361
    %363 = vrot.lane.b32.xlu0 %v295, 32
    %v364 = vpop.permute.xlu0 %363
    %365 = vrot.lane.b32.xlu0 %v301, 32
    %v366 = vpop.permute.xlu0 %365
    %367 = vrot.lane.b32.xlu0 %v307, 32
    %v368 = vpop.permute.xlu0 %367
    %369 = vrot.lane.b32.xlu0 %v313, 32
    %v370 = vpop.permute.xlu0 %369
    %371 = vrot.lane.b32.xlu0 %v320, 96
    %v372 = vpop.permute.xlu0 %371
    %373 = vrot.lane.b32.xlu0 %v322, 96
    %v374 = vpop.permute.xlu0 %373
    %375 = vrot.lane.b32.xlu0 %v324, 96
    %v376 = vpop.permute.xlu0 %375
    %377 = vrot.lane.b32.xlu0 %v326, 96
    %v378 = vpop.permute.xlu0 %377
    %379 = vrot.lane.b32.xlu0 %v328, 96
    %v380 = vpop.permute.xlu0 %379
    %381 = vrot.lane.b32.xlu0 %v330, 96
    %v382 = vpop.permute.xlu0 %381
    %383 = vrot.lane.b32.xlu0 %v332, 96
    %v384 = vpop.permute.xlu0 %383
    %385 = vrot.lane.b32.xlu0 %v334, 96
    %v386 = vpop.permute.xlu0 %385
    %387 = vrot.lane.b32.xlu0 %v336, 96
    %v388 = vpop.permute.xlu0 %387
    %389 = vrot.lane.b32.xlu0 %v338, 96
    %v390 = vpop.permute.xlu0 %389
    %391 = vrot.lane.b32.xlu0 %v340, 96
    %v392 = vpop.permute.xlu0 %391
    %393 = vrot.lane.b32.xlu0 %v342, 96
    %v394 = vpop.permute.xlu0 %393
    %vm395 = vcmask 64512
    %v396 = vsel %vm395, %v293, 0
    %v398 = vsel %vm395, %v299, 0
    %v400 = vsel %vm395, %v305, 0
    %v402 = vsel %vm395, %v311, 0
    %v404 = vsel %vm395, %v320, 0
    %v406 = vsel %vm395, %v322, 0
    %v408 = vsel %vm395, %v324, 0
    %v410 = vsel %vm395, %v326, 0
    %v412 = vsel %vm395, %v328, 0
    %v414 = vsel %vm395, %v330, 0
    %v416 = vsel %vm395, %v332, 0
    %v418 = vsel %vm395, %v334, 0
    %v420 = vsel %vm395, %v336, 0
    %v422 = vsel %vm395, %v338, 0
    %v424 = vsel %vm395, %v340, 0
    %v426 = vsel %vm395, %v342, 0
    %v428 = vsel %vm395, %v344, 0
    %v430 = vsel %vm395, %v346, 0
    %v432 = vsel %vm395, %v348, 0
    %v434 = vsel %vm395, %v350, 0
    %v436 = vsel %vm395, %v372, 0
    %v438 = vsel %vm395, %v374, 0
    %v440 = vsel %vm395, %v376, 0
    %v442 = vsel %vm395, %v378, 0
    %v444 = vsel %vm395, %v380, 0
    %v446 = vsel %vm395, %v382, 0
    %v448 = vsel %vm395, %v384, 0
    %v450 = vsel %vm395, %v386, 0
    %v452 = vsel %vm395, %v388, 0
    %v454 = vsel %vm395, %v390, 0
    %v456 = vsel %vm395, %v392, 0
    %v458 = vsel %vm395, %v394, 0
    %460 = vmatprep.subr.mxu0 0.0
    %461 = vmatpush1.xpose.msra.mxu0 %v428
    %462 = vmatprep.subr.mxu0 0.0
    %463 = vmatpush1.xpose.msra.mxu0 %v430
    %464 = vmatprep.subr.mxu0 0.0
    %465 = vmatpush1.xpose.msra.mxu0 %v432
    %466 = vmatprep.subr.mxu0 0.0
    %467 = vmatpush1.xpose.msra.mxu0 %v434
    %468 = vmatprep.subr.mxu0 0.0
    %469 = vmatpush1.xpose.msra.mxu0 %v436
    %470 = vmatprep.subr.mxu0 0.0
    %471 = vmatpush1.xpose.msra.mxu0 %v438
    %472 = vmatprep.subr.mxu0 0.0
    %473 = vmatpush1.xpose.msra.mxu0 %v440
    %474 = vmatprep.subr.mxu0 0.0
    %475 = vmatpush1.xpose.msra.mxu0 %v442
    %476 = vmatprep.subr.mxu0 0.0
    %477 = vmatpush1.xpose.msra.mxu0 %v444
    %478 = vmatprep.subr.mxu0 0.0
    %479 = vmatpush1.xpose.msra.mxu0 %v446
    %480 = vmatprep.subr.mxu0 0.0
    %481 = vmatpush1.xpose.msra.mxu0 %v448
    %482 = vmatprep.subr.mxu0 0.0
    %483 = vmatpush1.xpose.msra.mxu0 %v450
    %484 = vmatprep.subr.mxu0 0.0
    %485 = vmatpush1.xpose.msra.mxu0 %v452
    %486 = vmatprep.subr.mxu0 0.0
    %487 = vmatpush1.xpose.msra.mxu0 %v454
    %488 = vmatprep.subr.mxu0 0.0
    %489 = vmatpush1.xpose.msra.mxu0 %v456
    %490 = vmatprep.subr.mxu0 0.0
    %491 = vmatpush1.xpose.msra.mxu0 %v458
    %492 = vmatprep.subr.mxu0 0.0
    %493 = vmatpush1.xpose.msra.mxu0 0.0
    %494 = vmatprep.subr.mxu0 0.0
    %495 = vmatpush1.xpose.msra.mxu0 0.0
    %496 = vmatprep.subr.mxu0 0.0
    %497 = vmatpush1.xpose.msra.mxu0 0.0
    %498 = vmatprep.subr.mxu0 0.0
    %499 = vmatpush1.xpose.msra.mxu0 0.0
    %500 = vmatprep.subr.mxu0 0.0
    %501 = vmatpush1.xpose.msra.mxu0 0.0
    %502 = vmatprep.subr.mxu0 0.0
    %503 = vmatpush1.xpose.msra.mxu0 0.0
    %504 = vmatprep.subr.mxu0 0.0
    %505 = vmatpush1.xpose.msra.mxu0 0.0
    %506 = vmatprep.subr.mxu0 0.0
    %507 = vmatpush1.xpose.msra.mxu0 0.0
    %508 = vmatprep.subr.mxu0 0.0
    %509 = vmatpush1.xpose.msra.mxu0 0.0
    %510 = vmatprep.subr.mxu0 0.0
    %511 = vmatpush1.xpose.msra.mxu0 0.0
    %512 = vmatprep.subr.mxu0 0.0
    %513 = vmatpush1.xpose.msra.mxu0 0.0
    %514 = vmatprep.subr.mxu0 0.0
    %515 = vmatpush1.xpose.msra.mxu0 0.0
    %516 = vmatprep.subr.mxu0 0.0
    %517 = vmatpush1.xpose.msra.mxu0 0.0
    %518 = vmatprep.subr.mxu0 0.0
    %519 = vmatpush1.xpose.msra.mxu0 0.0
    %520 = vmatprep.subr.mxu0 0.0
    %521 = vmatpush1.xpose.msra.mxu0 0.0
    %522 = vmatprep.subr.mxu0 0.0
    %523 = vmatpush1.xpose.msra.mxu0 0.0
    %524 = vmatprep.mubr.f32.mxu0 0.0
    %525 = vmatmul.mubr.f32.gmra.mrb[0].mxu0 %v396
    %v526 = vpop.f32.mrb[0].mxu0
    %v527 = vadd.f32 %v82, %v526
    %v528 = vpop.f32.mrb[0].mxu0
    %529 = vmatprep.mubr.f32.mxu0 0.0
    %530 = vmatmul.mubr.f32.gmra.mrb[0].mxu0 %v398
    %v531 = vpop.f32.mrb[0].mxu0
    %v532 = vadd.f32 %v83, %v531
    %v533 = vpop.f32.mrb[0].mxu0
    %534 = vmatprep.mubr.f32.mxu0 0.0
    %535 = vmatmul.mubr.f32.gmra.mrb[0].mxu0 %v400
    %v536 = vpop.f32.mrb[0].mxu0
    %v537 = vadd.f32 %v84, %v536
    %v538 = vpop.f32.mrb[0].mxu0
    %539 = vmatprep.mubr.f32.mxu0 0.0
    %540 = vmatmul.mubr.f32.gmra.mrb[0].mxu0 %v402
    %v541 = vpop.f32.mrb[0].mxu0
    %v542 = vadd.f32 %v85, %v541
    %v543 = vpop.f32.mrb[0].mxu0
    %544 = vmatprep.mubr.f32.mxu0 0.0
    %545 = vmatmul.mubr.f32.gmra.mrb[0].mxu0 %v404
    %v546 = vpop.f32.mrb[0].mxu0
    %v547 = vadd.f32 %v86, %v546
    %v548 = vpop.f32.mrb[0].mxu0
    %549 = vmatprep.mubr.f32.mxu0 0.0
    %550 = vmatmul.mubr.f32.gmra.mrb[0].mxu0 %v406
    %v551 = vpop.f32.mrb[0].mxu0
    %v552 = vadd.f32 %v87, %v551
    %v553 = vpop.f32.mrb[0].mxu0
    %554 = vmatprep.mubr.f32.mxu0 0.0
    %555 = vmatmul.mubr.f32.gmra.mrb[0].mxu0 %v408
    %v556 = vpop.f32.mrb[0].mxu0
    %v557 = vadd.f32 %v88, %v556
    %v558 = vpop.f32.mrb[0].mxu0
    %559 = vmatprep.mubr.f32.mxu0 0.0
    %560 = vmatmul.mubr.f32.gmra.mrb[0].mxu0 %v410
    %v561 = vpop.f32.mrb[0].mxu0
    %v562 = vadd.f32 %v89, %v561
    %v563 = vpop.f32.mrb[0].mxu0
    %564 = vmatprep.mubr.f32.mxu0 0.0
    %565 = vmatmul.mubr.f32.gmra.mrb[0].mxu0 %v412
    %v566 = vpop.f32.mrb[0].mxu0
    %v567 = vadd.f32 %v90, %v566
    %v568 = vpop.f32.mrb[0].mxu0
    %569 = vmatprep.mubr.f32.mxu0 0.0
    %570 = vmatmul.mubr.f32.gmra.mrb[0].mxu0 %v414
    %v571 = vpop.f32.mrb[0].mxu0
    %v572 = vadd.f32 %v91, %v571
    %v573 = vpop.f32.mrb[0].mxu0
    %574 = vmatprep.mubr.f32.mxu0 0.0
    %575 = vmatmul.mubr.f32.gmra.mrb[0].mxu0 %v416
    %v576 = vpop.f32.mrb[0].mxu0
    %v577 = vadd.f32 %v92, %v576
    %v578 = vpop.f32.mrb[0].mxu0
    %579 = vmatprep.mubr.f32.mxu0 0.0
    %580 = vmatmul.mubr.f32.gmra.mrb[0].mxu0 %v418
    %v581 = vpop.f32.mrb[0].mxu0
    %v582 = vadd.f32 %v93, %v581
    %v583 = vpop.f32.mrb[0].mxu0
    %584 = vmatprep.mubr.f32.mxu0 0.0
    %585 = vmatmul.mubr.f32.gmra.mrb[0].mxu0 %v420
    %v586 = vpop.f32.mrb[0].mxu0
    %v587 = vadd.f32 %v94, %v586
    %v588 = vpop.f32.mrb[0].mxu0
    %589 = vmatprep.mubr.f32.mxu0 0.0
    %590 = vmatmul.mubr.f32.gmra.mrb[0].mxu0 %v422
    %v591 = vpop.f32.mrb[0].mxu0
    %v592 = vadd.f32 %v95, %v591
    %v593 = vpop.f32.mrb[0].mxu0
    %594 = vmatprep.mubr.f32.mxu0 0.0
    %595 = vmatmul.mubr.f32.gmra.mrb[0].mxu0 %v424
    %v596 = vpop.f32.mrb[0].mxu0
    %v597 = vadd.f32 %v96, %v596
    %v598 = vpop.f32.mrb[0].mxu0
    %599 = vmatprep.mubr.f32.mxu0 0.0
    %600 = vmatmul.mubr.f32.gmra.mrb[0].mxu0 %v426
    %v601 = vpop.f32.mrb[0].mxu0
    %v602 = vadd.f32 %v97, %v601
    %v603 = vpop.f32.mrb[0].mxu0
    %604 = vdwg.mxu0
    %605 = vmax.xlane.f32.xlu0 %v527
    %v606 = vpop.xlane.xlu0 %605
    %607 = vmax.xlane.f32.xlu0 %v532
    %v608 = vpop.xlane.xlu0 %607
    %609 = vmax.xlane.f32.xlu0 %v537
    %v610 = vpop.xlane.xlu0 %609
    %611 = vmax.xlane.f32.xlu0 %v542
    %v612 = vpop.xlane.xlu0 %611
    %613 = vmax.xlane.f32.xlu0 %v547
    %v614 = vpop.xlane.xlu0 %613
    %615 = vmax.xlane.f32.xlu0 %v552
    %v616 = vpop.xlane.xlu0 %615
    %617 = vmax.xlane.f32.xlu0 %v557
    %v618 = vpop.xlane.xlu0 %617
    %619 = vmax.xlane.f32.xlu0 %v562
    %v620 = vpop.xlane.xlu0 %619
    %621 = vmax.xlane.f32.xlu0 %v567
    %v622 = vpop.xlane.xlu0 %621
    %623 = vmax.xlane.f32.xlu0 %v572
    %v624 = vpop.xlane.xlu0 %623
    %625 = vmax.xlane.f32.xlu0 %v577
    %v626 = vpop.xlane.xlu0 %625
    %627 = vmax.xlane.f32.xlu0 %v582
    %v628 = vpop.xlane.xlu0 %627
    %629 = vmax.xlane.f32.xlu0 %v587
    %v630 = vpop.xlane.xlu0 %629
    %631 = vmax.xlane.f32.xlu0 %v592
    %v632 = vpop.xlane.xlu0 %631
    %633 = vmax.xlane.f32.xlu0 %v597
    %v634 = vpop.xlane.xlu0 %633
    %635 = vmax.xlane.f32.xlu0 %v602
    %v636 = vpop.xlane.xlu0 %635
    %v637 = vsub.f32 %v527, %v606
    %v638 = vsub.f32 %v532, %v608
    %v639 = vsub.f32 %v537, %v610
    %v640 = vsub.f32 %v542, %v612
    %v641 = vsub.f32 %v547, %v614
    %v642 = vsub.f32 %v552, %v616
    %v643 = vsub.f32 %v557, %v618
    %v644 = vsub.f32 %v562, %v620
    %v645 = vsub.f32 %v567, %v622
    %v646 = vsub.f32 %v572, %v624
    %v647 = vsub.f32 %v577, %v626
    %v648 = vsub.f32 %v582, %v628
    %v649 = vsub.f32 %v587, %v630
    %v650 = vsub.f32 %v592, %v632
    %v651 = vsub.f32 %v597, %v634
    %v652 = vsub.f32 %v602, %v636
    %v653 = vmul.f32 %v637, 1.442695
    %v654 = vpow.pop %v653
    %v655 = vmul.f32 %v638, 1.442695
    %v656 = vpow.pop %v655
    %v657 = vmul.f32 %v639, 1.442695
    %v658 = vpow.pop %v657
    %v659 = vmul.f32 %v640, 1.442695
    %v660 = vpow.pop %v659
    %v661 = vmul.f32 %v641, 1.442695
    %v662 = vpow.pop %v661
    %v663 = vmul.f32 %v642, 1.442695
    %v664 = vpow.pop %v663
    %v665 = vmul.f32 %v643, 1.442695
    %v666 = vpow.pop %v665
    %v667 = vmul.f32 %v644, 1.442695
    %v668 = vpow.pop %v667
    %v669 = vmul.f32 %v645, 1.442695
    %v670 = vpow.pop %v669
    %v671 = vmul.f32 %v646, 1.442695
    %v672 = vpow.pop %v671
    %v673 = vmul.f32 %v647, 1.442695
    %v674 = vpow.pop %v673
    %v675 = vmul.f32 %v648, 1.442695
    %v676 = vpow.pop %v675
    %v677 = vmul.f32 %v649, 1.442695
    %v678 = vpow.pop %v677
    %v679 = vmul.f32 %v650, 1.442695
    %v680 = vpow.pop %v679
    %v681 = vmul.f32 %v651, 1.442695
    %v682 = vpow.pop %v681
    %v683 = vmul.f32 %v652, 1.442695
    %v684 = vpow.pop %v683
    %685 = vadd.xlane.f32.xlu0 %v654
    %v686 = vpop.xlane.xlu0 %685
    %687 = vadd.xlane.f32.xlu0 %v656
    %v688 = vpop.xlane.xlu0 %687
    %689 = vadd.xlane.f32.xlu0 %v658
    %v690 = vpop.xlane.xlu0 %689
    %691 = vadd.xlane.f32.xlu0 %v660
    %v692 = vpop.xlane.xlu0 %691
    %693 = vadd.xlane.f32.xlu0 %v662
    %v694 = vpop.xlane.xlu0 %693
    %695 = vadd.xlane.f32.xlu0 %v664
    %v696 = vpop.xlane.xlu0 %695
    %697 = vadd.xlane.f32.xlu0 %v666
    %v698 = vpop.xlane.xlu0 %697
    %699 = vadd.xlane.f32.xlu0 %v668
    %v700 = vpop.xlane.xlu0 %699
    %701 = vadd.xlane.f32.xlu0 %v670
    %v702 = vpop.xlane.xlu0 %701
    %703 = vadd.xlane.f32.xlu0 %v672
    %v704 = vpop.xlane.xlu0 %703
    %705 = vadd.xlane.f32.xlu0 %v674
    %v706 = vpop.xlane.xlu0 %705
    %707 = vadd.xlane.f32.xlu0 %v676
    %v708 = vpop.xlane.xlu0 %707
    %709 = vadd.xlane.f32.xlu0 %v678
    %v710 = vpop.xlane.xlu0 %709
    %711 = vadd.xlane.f32.xlu0 %v680
    %v712 = vpop.xlane.xlu0 %711
    %713 = vadd.xlane.f32.xlu0 %v682
    %v714 = vpop.xlane.xlu0 %713
    %715 = vadd.xlane.f32.xlu0 %v684
    %v716 = vpop.xlane.xlu0 %715
    %v717 = vrcp.pop %v686
    %v718 = vmul.f32 1.0, %v717
    %v719 = vrcp.pop %v688
    %v720 = vmul.f32 1.0, %v719
    %v721 = vrcp.pop %v690
    %v722 = vmul.f32 1.0, %v721
    %v723 = vrcp.pop %v692
    %v724 = vmul.f32 1.0, %v723
    %v725 = vrcp.pop %v694
    %v726 = vmul.f32 1.0, %v725
    %v727 = vrcp.pop %v696
    %v728 = vmul.f32 1.0, %v727
    %v729 = vrcp.pop %v698
    %v730 = vmul.f32 1.0, %v729
    %v731 = vrcp.pop %v700
    %v732 = vmul.f32 1.0, %v731
    %v733 = vrcp.pop %v702
    %v734 = vmul.f32 1.0, %v733
    %v735 = vrcp.pop %v704
    %v736 = vmul.f32 1.0, %v735
    %v737 = vrcp.pop %v706
    %v738 = vmul.f32 1.0, %v737
    %v739 = vrcp.pop %v708
    %v740 = vmul.f32 1.0, %v739
    %v741 = vrcp.pop %v710
    %v742 = vmul.f32 1.0, %v741
    %v743 = vrcp.pop %v712
    %v744 = vmul.f32 1.0, %v743
    %v745 = vrcp.pop %v714
    %v746 = vmul.f32 1.0, %v745
    %v747 = vrcp.pop %v716
    %v748 = vmul.f32 1.0, %v747
    %v749 = vmul.f32 %v654, %v718
    %v750 = vmul.f32 %v656, %v720
    %v751 = vmul.f32 %v658, %v722
    %v752 = vmul.f32 %v660, %v724
    %v753 = vmul.f32 %v662, %v726
    %v754 = vmul.f32 %v664, %v728
    %v755 = vmul.f32 %v666, %v730
    %v756 = vmul.f32 %v668, %v732
    %v757 = vmul.f32 %v670, %v734
    %v758 = vmul.f32 %v672, %v736
    %v759 = vmul.f32 %v674, %v738
    %v760 = vmul.f32 %v676, %v740
    %v761 = vmul.f32 %v678, %v742
    %v762 = vmul.f32 %v680, %v744
    %v763 = vmul.f32 %v682, %v746
    %v764 = vmul.f32 %v684, %v748
    %765 = vrot.lane.b32.xlu0 %v293, 64
    %v766 = vpop.permute.xlu0 %765
    %767 = vrot.lane.b32.xlu0 %v299, 64
    %v768 = vpop.permute.xlu0 %767
    %769 = vrot.lane.b32.xlu0 %v305, 64
    %v770 = vpop.permute.xlu0 %769
    %771 = vrot.lane.b32.xlu0 %v311, 64
    %v772 = vpop.permute.xlu0 %771
    %773 = vrot.lane.b32.xlu0 %v344, 64
    %v774 = vpop.permute.xlu0 %773
    %775 = vrot.lane.b32.xlu0 %v346, 64
    %v776 = vpop.permute.xlu0 %775
    %777 = vrot.lane.b32.xlu0 %v348, 64
    %v778 = vpop.permute.xlu0 %777
    %779 = vrot.lane.b32.xlu0 %v350, 64
    %v780 = vpop.permute.xlu0 %779
    %781 = vrot.lane.b32.xlu0 %v356, 64
    %v782 = vpop.permute.xlu0 %781
    %783 = vrot.lane.b32.xlu0 %v358, 64
    %v784 = vpop.permute.xlu0 %783
    %785 = vrot.lane.b32.xlu0 %v360, 64
    %v786 = vpop.permute.xlu0 %785
    %787 = vrot.lane.b32.xlu0 %v362, 64
    %v788 = vpop.permute.xlu0 %787
    %789 = vrot.lane.b32.xlu0 %v364, 64
    %v790 = vpop.permute.xlu0 %789
    %791 = vrot.lane.b32.xlu0 %v366, 64
    %v792 = vpop.permute.xlu0 %791
    %793 = vrot.lane.b32.xlu0 %v368, 64
    %v794 = vpop.permute.xlu0 %793
    %795 = vrot.lane.b32.xlu0 %v370, 64
    %v796 = vpop.permute.xlu0 %795
    %813 = vmatprep.subr.mxu0 0.0
    %814 = vmatpush1.msra.mxu0 %v766
    %815 = vmatprep.subr.mxu0 0.0
    %816 = vmatpush1.msra.mxu0 %v768
    %817 = vmatprep.subr.mxu0 0.0
    %818 = vmatpush1.msra.mxu0 %v770
    %819 = vmatprep.subr.mxu0 0.0
    %820 = vmatpush1.msra.mxu0 %v772
    %821 = vmatprep.subr.mxu0 0.0
    %822 = vmatpush1.msra.mxu0 %v774
    %823 = vmatprep.subr.mxu0 0.0
    %824 = vmatpush1.msra.mxu0 %v776
    %825 = vmatprep.subr.mxu0 0.0
    %826 = vmatpush1.msra.mxu0 %v778
    %827 = vmatprep.subr.mxu0 0.0
    %828 = vmatpush1.msra.mxu0 %v780
    %829 = vmatprep.subr.mxu0 0.0
    %830 = vmatpush1.msra.mxu0 %v782
    %831 = vmatprep.subr.mxu0 0.0
    %832 = vmatpush1.msra.mxu0 %v784
    %833 = vmatprep.subr.mxu0 0.0
    %834 = vmatpush1.msra.mxu0 %v786
    %835 = vmatprep.subr.mxu0 0.0
    %836 = vmatpush1.msra.mxu0 %v788
    %837 = vmatprep.subr.mxu0 0.0
    %838 = vmatpush1.msra.mxu0 %v790
    %839 = vmatprep.subr.mxu0 0.0
    %840 = vmatpush1.msra.mxu0 %v792
    %841 = vmatprep.subr.mxu0 0.0
    %842 = vmatpush1.msra.mxu0 %v794
    %843 = vmatprep.subr.mxu0 0.0
    %844 = vmatpush1.msra.mxu0 %v796
    %845 = vmatprep.subr.mxu0 0.0
    %846 = vmatpush1.msra.mxu0 0.0
    %847 = vmatprep.subr.mxu0 0.0
    %848 = vmatpush1.msra.mxu0 0.0
    %849 = vmatprep.subr.mxu0 0.0
    %850 = vmatpush1.msra.mxu0 0.0
    %851 = vmatprep.subr.mxu0 0.0
    %852 = vmatpush1.msra.mxu0 0.0
    %853 = vmatprep.subr.mxu0 0.0
    %854 = vmatpush1.msra.mxu0 0.0
    %855 = vmatprep.subr.mxu0 0.0
    %856 = vmatpush1.msra.mxu0 0.0
    %857 = vmatprep.subr.mxu0 0.0
    %858 = vmatpush1.msra.mxu0 0.0
    %859 = vmatprep.subr.mxu0 0.0
    %860 = vmatpush1.msra.mxu0 0.0
    %861 = vmatprep.subr.mxu0 0.0
    %862 = vmatpush1.msra.mxu0 0.0
    %863 = vmatprep.subr.mxu0 0.0
    %864 = vmatpush1.msra.mxu0 0.0
    %865 = vmatprep.subr.mxu0 0.0
    %866 = vmatpush1.msra.mxu0 0.0
    %867 = vmatprep.subr.mxu0 0.0
    %868 = vmatpush1.msra.mxu0 0.0
    %869 = vmatprep.subr.mxu0 0.0
    %870 = vmatpush1.msra.mxu0 0.0
    %871 = vmatprep.subr.mxu0 0.0
    %872 = vmatpush1.msra.mxu0 0.0
    %873 = vmatprep.subr.mxu0 0.0
    %874 = vmatpush1.msra.mxu0 0.0
    %875 = vmatprep.subr.mxu0 0.0
    %876 = vmatpush1.msra.mxu0 0.0
    %877 = vmatprep.mubr.f32.mxu0 0.0
    %878 = vmatmul.mubr.f32.gmra.mrb[0].mxu0 %v749
    %v879 = vpop.f32.mrb[0].mxu0
    %v880 = vadd.f32 0.0, %v879
    %v881 = vpop.f32.mrb[0].mxu0
    %882 = vmatprep.mubr.f32.mxu0 0.0
    %883 = vmatmul.mubr.f32.gmra.mrb[0].mxu0 %v750
    %v884 = vpop.f32.mrb[0].mxu0
    %v885 = vadd.f32 0.0, %v884
    %v886 = vpop.f32.mrb[0].mxu0
    %887 = vmatprep.mubr.f32.mxu0 0.0
    %888 = vmatmul.mubr.f32.gmra.mrb[0].mxu0 %v751
    %v889 = vpop.f32.mrb[0].mxu0
    %v890 = vadd.f32 0.0, %v889
    %v891 = vpop.f32.mrb[0].mxu0
    %892 = vmatprep.mubr.f32.mxu0 0.0
    %893 = vmatmul.mubr.f32.gmra.mrb[0].mxu0 %v752
    %v894 = vpop.f32.mrb[0].mxu0
    %v895 = vadd.f32 0.0, %v894
    %v896 = vpop.f32.mrb[0].mxu0
    %897 = vmatprep.mubr.f32.mxu0 0.0
    %898 = vmatmul.mubr.f32.gmra.mrb[0].mxu0 %v753
    %v899 = vpop.f32.mrb[0].mxu0
    %v900 = vadd.f32 0.0, %v899
    %v901 = vpop.f32.mrb[0].mxu0
    %902 = vmatprep.mubr.f32.mxu0 0.0
    %903 = vmatmul.mubr.f32.gmra.mrb[0].mxu0 %v754
    %v904 = vpop.f32.mrb[0].mxu0
    %v905 = vadd.f32 0.0, %v904
    %v906 = vpop.f32.mrb[0].mxu0
    %907 = vmatprep.mubr.f32.mxu0 0.0
    %908 = vmatmul.mubr.f32.gmra.mrb[0].mxu0 %v755
    %v909 = vpop.f32.mrb[0].mxu0
    %v910 = vadd.f32 0.0, %v909
    %v911 = vpop.f32.mrb[0].mxu0
    %912 = vmatprep.mubr.f32.mxu0 0.0
    %913 = vmatmul.mubr.f32.gmra.mrb[0].mxu0 %v756
    %v914 = vpop.f32.mrb[0].mxu0
    %v915 = vadd.f32 0.0, %v914
    %v916 = vpop.f32.mrb[0].mxu0
    %917 = vmatprep.mubr.f32.mxu0 0.0
    %918 = vmatmul.mubr.f32.gmra.mrb[0].mxu0 %v757
    %v919 = vpop.f32.mrb[0].mxu0
    %v920 = vadd.f32 0.0, %v919
    %v921 = vpop.f32.mrb[0].mxu0
    %922 = vmatprep.mubr.f32.mxu0 0.0
    %923 = vmatmul.mubr.f32.gmra.mrb[0].mxu0 %v758
    %v924 = vpop.f32.mrb[0].mxu0
    %v925 = vadd.f32 0.0, %v924
    %v926 = vpop.f32.mrb[0].mxu0
    %927 = vmatprep.mubr.f32.mxu0 0.0
    %928 = vmatmul.mubr.f32.gmra.mrb[0].mxu0 %v759
    %v929 = vpop.f32.mrb[0].mxu0
    %v930 = vadd.f32 0.0, %v929
    %v931 = vpop.f32.mrb[0].mxu0
    %932 = vmatprep.mubr.f32.mxu0 0.0
    %933 = vmatmul.mubr.f32.gmra.mrb[0].mxu0 %v760
    %v934 = vpop.f32.mrb[0].mxu0
    %v935 = vadd.f32 0.0, %v934
    %v936 = vpop.f32.mrb[0].mxu0
    %937 = vmatprep.mubr.f32.mxu0 0.0
    %938 = vmatmul.mubr.f32.gmra.mrb[0].mxu0 %v761
    %v939 = vpop.f32.mrb[0].mxu0
    %v940 = vadd.f32 0.0, %v939
    %v941 = vpop.f32.mrb[0].mxu0
    %942 = vmatprep.mubr.f32.mxu0 0.0
    %943 = vmatmul.mubr.f32.gmra.mrb[0].mxu0 %v762
    %v944 = vpop.f32.mrb[0].mxu0
    %v945 = vadd.f32 0.0, %v944
    %v946 = vpop.f32.mrb[0].mxu0
    %947 = vmatprep.mubr.f32.mxu0 0.0
    %948 = vmatmul.mubr.f32.gmra.mrb[0].mxu0 %v763
    %v949 = vpop.f32.mrb[0].mxu0
    %v950 = vadd.f32 0.0, %v949
    %v951 = vpop.f32.mrb[0].mxu0
    %952 = vmatprep.mubr.f32.mxu0 0.0
    %953 = vmatmul.mubr.f32.gmra.mrb[0].mxu0 %v764
    %v954 = vpop.f32.mrb[0].mxu0
    %v955 = vadd.f32 0.0, %v954
    %v956 = vpop.f32.mrb[0].mxu0
    %957 = vdwg.mxu0
    %v958 = vadd.f32 %v880, %v900
    %v959 = vadd.f32 %v885, %v905
    %v960 = vadd.f32 %v890, %v910
    %v961 = vadd.f32 %v895, %v915
    %v962 = vadd.f32 %v958, %v920
    %v963 = vadd.f32 %v959, %v925
    %v964 = vadd.f32 %v960, %v930
    %v965 = vadd.f32 %v961, %v935
    %v966 = vadd.f32 %v962, %v940
    %v967 = vadd.f32 %v963, %v945
    %v968 = vadd.f32 %v964, %v950
    %v969 = vadd.f32 %v965, %v955
    %v970 = vld [vmem:[%s8] sm:$0x1]
    %v972 = vlaneseq
    %v973 = vshrl.u32 %v972, 7
    %v974 = vsub.s32 0, %v973
    %v975 = vrot.slane %v970, %v974
    %v977 = vadd.f32 %v966, %v975
    %v978 = vadd.f32 %v967, %v975
    %v979 = vadd.f32 %v968, %v975
    %v980 = vadd.f32 %v969, %v975
    %v981 = vadd.f32 %v190, %v977
    %v982 = vadd.f32 %v191, %v978
    %v983 = vadd.f32 %v192, %v979
    %v984 = vadd.f32 %v193, %v980
    %v985 = vld [vmem:[%s9] sm:$0x1]
    %v986 = vld [vmem:[%s10] sm:$0x1]
    %v987 = vsel %vm120, %v981, 0.0
    %988 = vadd.xlane.f32.xlu0 %v987
    %v989 = vpop.xlane.xlu0 %988
    %v990 = vsel %vm120, %v982, 0.0
    %991 = vadd.xlane.f32.xlu0 %v990
    %v992 = vpop.xlane.xlu0 %991
    %v993 = vsel %vm120, %v983, 0.0
    %994 = vadd.xlane.f32.xlu0 %v993
    %v995 = vpop.xlane.xlu0 %994
    %v996 = vsel %vm120, %v984, 0.0
    %997 = vadd.xlane.f32.xlu0 %v996
    %v998 = vpop.xlane.xlu0 %997
    %v999 = vmul.f32 %v989, %v133
    %v1000 = vmul.f32 %v992, %v133
    %v1001 = vmul.f32 %v995, %v133
    %v1002 = vmul.f32 %v998, %v133
    %v1003 = vsub.f32 %v981, %v999
    %v1004 = vsub.f32 %v982, %v1000
    %v1005 = vsub.f32 %v983, %v1001
    %v1006 = vsub.f32 %v984, %v1002
    %v1007 = vmul.f32 %v1003, %v1003
    %v1008 = vmul.f32 %v1004, %v1004
    %v1009 = vmul.f32 %v1005, %v1005
    %v1010 = vmul.f32 %v1006, %v1006
    %v1011 = vsel %vm120, %v1007, 0.0
    %1012 = vadd.xlane.f32.xlu0 %v1011
    %v1013 = vpop.xlane.xlu0 %1012
    %v1014 = vsel %vm120, %v1008, 0.0
    %1015 = vadd.xlane.f32.xlu0 %v1014
    %v1016 = vpop.xlane.xlu0 %1015
    %v1017 = vsel %vm120, %v1009, 0.0
    %1018 = vadd.xlane.f32.xlu0 %v1017
    %v1019 = vpop.xlane.xlu0 %1018
    %v1020 = vsel %vm120, %v1010, 0.0
    %1021 = vadd.xlane.f32.xlu0 %v1020
    %v1022 = vpop.xlane.xlu0 %1021
    %v1023 = vmul.f32 %v1013, %v133
    %v1024 = vmul.f32 %v1016, %v133
    %v1025 = vmul.f32 %v1019, %v133
    %v1026 = vmul.f32 %v1022, %v133
    %v1027 = vadd.f32 %v1023, 1e-05
    %v1028 = vadd.f32 %v1024, 1e-05
    %v1029 = vadd.f32 %v1025, 1e-05
    %v1030 = vadd.f32 %v1026, 1e-05
    %v1031 = vrsqrt.pop %v1027
    %v1032 = vrsqrt.pop %v1028
    %v1033 = vrsqrt.pop %v1029
    %v1034 = vrsqrt.pop %v1030
    %v1035 = vmul.f32 %v1003, %v1031
    %v1036 = vmul.f32 %v1004, %v1032
    %v1037 = vmul.f32 %v1005, %v1033
    %v1038 = vmul.f32 %v1006, %v1034
    %v1040 = vlaneseq
    %v1041 = vshrl.u32 %v1040, 7
    %v1042 = vsub.s32 0, %v1041
    %v1043 = vrot.slane %v985, %v1042
    %v1045 = vmul.f32 %v1035, %v1043
    %v1046 = vmul.f32 %v1036, %v1043
    %v1047 = vmul.f32 %v1037, %v1043
    %v1048 = vmul.f32 %v1038, %v1043
    %v1050 = vlaneseq
    %v1051 = vshrl.u32 %v1050, 7
    %v1052 = vsub.s32 0, %v1051
    %v1053 = vrot.slane %v986, %v1052
    %v1055 = vadd.f32 %v1045, %v1053
    %v1056 = vadd.f32 %v1046, %v1053
    %v1057 = vadd.f32 %v1047, %v1053
    %v1058 = vadd.f32 %v1048, %v1053
    %v1059 = vld [vmem:[%s11] sm:$0xff]
    %v1060 = vld [vmem:[%s11 + $0x8] sm:$0xff]
    %v1061 = vld [vmem:[%s11 + $0x10] sm:$0xff]
    %v1062 = vld [vmem:[%s11 + $0x18] sm:$0xff]
    %v1063 = vld [vmem:[%s11 + $0x20] sm:$0xff]
    %v1064 = vld [vmem:[%s11 + $0x28] sm:$0xff]
    %v1065 = vld [vmem:[%s11 + $0x30] sm:$0xff]
    %v1066 = vld [vmem:[%s11 + $0x38] sm:$0xff]
    %v1067 = vld [vmem:[%s12] sm:$0x3]
    %v1069 = vlaneseq
    %v1070 = vshrl.u32 %v1069, 7
    %v1071 = vsub.s32 0, %v1070
    %v1072 = vrot.slane %v1067, %v1071
    %v1073 = vlaneseq
    %v1074 = vshrl.u32 %v1073, 7
    %v1075 = vsub.s32 1, %v1074
    %v1076 = vrot.slane %v1067, %v1075
    %v1080 = vsel %vm120, %v1055, 0
    %v1083 = vsel %vm120, %v1056, 0
    %v1086 = vsel %vm120, %v1057, 0
    %v1089 = vsel %vm120, %v1058, 0
    %1091 = vmatprep.subr.mxu0 %v1060
    %1092 = vmatpush1.msra.mxu0 %v1059
    %1093 = vmatprep.subr.mxu0 %v1062
    %1094 = vmatpush1.msra.mxu0 %v1061
    %1095 = vmatprep.subr.mxu0 %v1064
    %1096 = vmatpush1.msra.mxu0 %v1063
    %1097 = vmatprep.subr.mxu0 %v1066
    %1098 = vmatpush1.msra.mxu0 %v1065
    %1099 = vmatprep.subr.mxu0 0.0
    %1100 = vmatpush1.msra.mxu0 0.0
    %1101 = vmatprep.subr.mxu0 0.0
    %1102 = vmatpush1.msra.mxu0 0.0
    %1103 = vmatprep.subr.mxu0 0.0
    %1104 = vmatpush1.msra.mxu0 0.0
    %1105 = vmatprep.subr.mxu0 0.0
    %1106 = vmatpush1.msra.mxu0 0.0
    %1107 = vmatprep.subr.mxu0 0.0
    %1108 = vmatpush1.msra.mxu0 0.0
    %1109 = vmatprep.subr.mxu0 0.0
    %1110 = vmatpush1.msra.mxu0 0.0
    %1111 = vmatprep.subr.mxu0 0.0
    %1112 = vmatpush1.msra.mxu0 0.0
    %1113 = vmatprep.subr.mxu0 0.0
    %1114 = vmatpush1.msra.mxu0 0.0
    %1115 = vmatprep.subr.mxu0 0.0
    %1116 = vmatpush1.msra.mxu0 0.0
    %1117 = vmatprep.subr.mxu0 0.0
    %1118 = vmatpush1.msra.mxu0 0.0
    %1119 = vmatprep.subr.mxu0 0.0
    %1120 = vmatpush1.msra.mxu0 0.0
    %1121 = vmatprep.subr.mxu0 0.0
    %1122 = vmatpush1.msra.mxu0 0.0
    %1123 = vmatprep.subr.mxu0 0.0
    %1124 = vmatpush1.msra.mxu0 0.0
    %1125 = vmatprep.subr.mxu0 0.0
    %1126 = vmatpush1.msra.mxu0 0.0
    %1127 = vmatprep.subr.mxu0 0.0
    %1128 = vmatpush1.msra.mxu0 0.0
    %1129 = vmatprep.subr.mxu0 0.0
    %1130 = vmatpush1.msra.mxu0 0.0
    %1131 = vmatprep.subr.mxu0 0.0
    %1132 = vmatpush1.msra.mxu0 0.0
    %1133 = vmatprep.subr.mxu0 0.0
    %1134 = vmatpush1.msra.mxu0 0.0
    %1135 = vmatprep.subr.mxu0 0.0
    %1136 = vmatpush1.msra.mxu0 0.0
    %1137 = vmatprep.subr.mxu0 0.0
    %1138 = vmatpush1.msra.mxu0 0.0
    %1139 = vmatprep.subr.mxu0 0.0
    %1140 = vmatpush1.msra.mxu0 0.0
    %1141 = vmatprep.subr.mxu0 0.0
    %1142 = vmatpush1.msra.mxu0 0.0
    %1143 = vmatprep.subr.mxu0 0.0
    %1144 = vmatpush1.msra.mxu0 0.0
    %1145 = vmatprep.subr.mxu0 0.0
    %1146 = vmatpush1.msra.mxu0 0.0
    %1147 = vmatprep.subr.mxu0 0.0
    %1148 = vmatpush1.msra.mxu0 0.0
    %1149 = vmatprep.subr.mxu0 0.0
    %1150 = vmatpush1.msra.mxu0 0.0
    %1151 = vmatprep.subr.mxu0 0.0
    %1152 = vmatpush1.msra.mxu0 0.0
    %1153 = vmatprep.subr.mxu0 0.0
    %1154 = vmatpush1.msra.mxu0 0.0
    %1155 = vmatprep.mubr.f32.mxu0 0.0
    %1156 = vmatmul.mubr.f32.gmra.mrb[0].mxu0 %v1080
    %v1157 = vpop.f32.mrb[0].mxu0
    %v1158 = vadd.f32 %v1072, %v1157
    %v1159 = vpop.f32.mrb[0].mxu0
    %v1160 = vadd.f32 %v1076, %v1159
    %1161 = vmatprep.mubr.f32.mxu0 0.0
    %1162 = vmatmul.mubr.f32.gmra.mrb[0].mxu0 %v1083
    %v1163 = vpop.f32.mrb[0].mxu0
    %v1164 = vadd.f32 %v1072, %v1163
    %v1165 = vpop.f32.mrb[0].mxu0
    %v1166 = vadd.f32 %v1076, %v1165
    %1167 = vmatprep.mubr.f32.mxu0 0.0
    %1168 = vmatmul.mubr.f32.gmra.mrb[0].mxu0 %v1086
    %v1169 = vpop.f32.mrb[0].mxu0
    %v1170 = vadd.f32 %v1072, %v1169
    %v1171 = vpop.f32.mrb[0].mxu0
    %v1172 = vadd.f32 %v1076, %v1171
    %1173 = vmatprep.mubr.f32.mxu0 0.0
    %1174 = vmatmul.mubr.f32.gmra.mrb[0].mxu0 %v1089
    %v1175 = vpop.f32.mrb[0].mxu0
    %v1176 = vadd.f32 %v1072, %v1175
    %v1177 = vpop.f32.mrb[0].mxu0
    %v1178 = vadd.f32 %v1076, %v1177
    %1179 = vdwg.mxu0
    %1184 = vrot.lane.b32.xlu0 %v1158, 120
    %v1185 = vpop.permute.xlu0 %1184
    %1186 = vrot.lane.b32.xlu0 %v1164, 120
    %v1187 = vpop.permute.xlu0 %1186
    %1188 = vrot.lane.b32.xlu0 %v1170, 120
    %v1189 = vpop.permute.xlu0 %1188
    %1190 = vrot.lane.b32.xlu0 %v1176, 120
    %v1191 = vpop.permute.xlu0 %1190
    %1192 = vrot.lane.b32.xlu0 %v1158, 112
    %v1193 = vpop.permute.xlu0 %1192
    %1194 = vrot.lane.b32.xlu0 %v1164, 112
    %v1195 = vpop.permute.xlu0 %1194
    %1196 = vrot.lane.b32.xlu0 %v1170, 112
    %v1197 = vpop.permute.xlu0 %1196
    %1198 = vrot.lane.b32.xlu0 %v1176, 112
    %v1199 = vpop.permute.xlu0 %1198
    %1200 = vrot.lane.b32.xlu0 %v1158, 104
    %v1201 = vpop.permute.xlu0 %1200
    %1202 = vrot.lane.b32.xlu0 %v1164, 104
    %v1203 = vpop.permute.xlu0 %1202
    %1204 = vrot.lane.b32.xlu0 %v1170, 104
    %v1205 = vpop.permute.xlu0 %1204
    %1206 = vrot.lane.b32.xlu0 %v1176, 104
    %v1207 = vpop.permute.xlu0 %1206
    %1208 = vrot.lane.b32.xlu0 %v1158, 96
    %v1209 = vpop.permute.xlu0 %1208
    %1210 = vrot.lane.b32.xlu0 %v1164, 96
    %v1211 = vpop.permute.xlu0 %1210
    %1212 = vrot.lane.b32.xlu0 %v1170, 96
    %v1213 = vpop.permute.xlu0 %1212
    %1214 = vrot.lane.b32.xlu0 %v1176, 96
    %v1215 = vpop.permute.xlu0 %1214
    %1220 = vrot.lane.b32.xlu0 %v1160, 64
    %v1221 = vpop.permute.xlu0 %1220
    %1222 = vrot.lane.b32.xlu0 %v1166, 64
    %v1223 = vpop.permute.xlu0 %1222
    %1224 = vrot.lane.b32.xlu0 %v1172, 64
    %v1225 = vpop.permute.xlu0 %1224
    %1226 = vrot.lane.b32.xlu0 %v1178, 64
    %v1227 = vpop.permute.xlu0 %1226
    %1228 = vrot.lane.b32.xlu0 %v1160, 32
    %v1229 = vpop.permute.xlu0 %1228
    %1230 = vrot.lane.b32.xlu0 %v1166, 32
    %v1231 = vpop.permute.xlu0 %1230
    %1232 = vrot.lane.b32.xlu0 %v1172, 32
    %v1233 = vpop.permute.xlu0 %1232
    %1234 = vrot.lane.b32.xlu0 %v1178, 32
    %v1235 = vpop.permute.xlu0 %1234
    %1236 = vrot.lane.b32.xlu0 %v1185, 96
    %v1237 = vpop.permute.xlu0 %1236
    %1238 = vrot.lane.b32.xlu0 %v1187, 96
    %v1239 = vpop.permute.xlu0 %1238
    %1240 = vrot.lane.b32.xlu0 %v1189, 96
    %v1241 = vpop.permute.xlu0 %1240
    %1242 = vrot.lane.b32.xlu0 %v1191, 96
    %v1243 = vpop.permute.xlu0 %1242
    %1244 = vrot.lane.b32.xlu0 %v1193, 96
    %v1245 = vpop.permute.xlu0 %1244
    %1246 = vrot.lane.b32.xlu0 %v1195, 96
    %v1247 = vpop.permute.xlu0 %1246
    %1248 = vrot.lane.b32.xlu0 %v1197, 96
    %v1249 = vpop.permute.xlu0 %1248
    %1250 = vrot.lane.b32.xlu0 %v1199, 96
    %v1251 = vpop.permute.xlu0 %1250
    %1252 = vrot.lane.b32.xlu0 %v1201, 96
    %v1253 = vpop.permute.xlu0 %1252
    %1254 = vrot.lane.b32.xlu0 %v1203, 96
    %v1255 = vpop.permute.xlu0 %1254
    %1256 = vrot.lane.b32.xlu0 %v1205, 96
    %v1257 = vpop.permute.xlu0 %1256
    %1258 = vrot.lane.b32.xlu0 %v1207, 96
    %v1259 = vpop.permute.xlu0 %1258
    %v1260 = vsel %vm395, %v1158, 0
    %v1262 = vsel %vm395, %v1164, 0
    %v1264 = vsel %vm395, %v1170, 0
    %v1266 = vsel %vm395, %v1176, 0
    %v1268 = vsel %vm395, %v1185, 0
    %v1270 = vsel %vm395, %v1187, 0
    %v1272 = vsel %vm395, %v1189, 0
    %v1274 = vsel %vm395, %v1191, 0
    %v1276 = vsel %vm395, %v1193, 0
    %v1278 = vsel %vm395, %v1195, 0
    %v1280 = vsel %vm395, %v1197, 0
    %v1282 = vsel %vm395, %v1199, 0
    %v1284 = vsel %vm395, %v1201, 0
    %v1286 = vsel %vm395, %v1203, 0
    %v1288 = vsel %vm395, %v1205, 0
    %v1290 = vsel %vm395, %v1207, 0
    %v1292 = vsel %vm395, %v1209, 0
    %v1294 = vsel %vm395, %v1211, 0
    %v1296 = vsel %vm395, %v1213, 0
    %v1298 = vsel %vm395, %v1215, 0
    %v1300 = vsel %vm395, %v1237, 0
    %v1302 = vsel %vm395, %v1239, 0
    %v1304 = vsel %vm395, %v1241, 0
    %v1306 = vsel %vm395, %v1243, 0
    %v1308 = vsel %vm395, %v1245, 0
    %v1310 = vsel %vm395, %v1247, 0
    %v1312 = vsel %vm395, %v1249, 0
    %v1314 = vsel %vm395, %v1251, 0
    %v1316 = vsel %vm395, %v1253, 0
    %v1318 = vsel %vm395, %v1255, 0
    %v1320 = vsel %vm395, %v1257, 0
    %v1322 = vsel %vm395, %v1259, 0
    %1324 = vmatprep.subr.mxu0 0.0
    %1325 = vmatpush1.xpose.msra.mxu0 %v1292
    %1326 = vmatprep.subr.mxu0 0.0
    %1327 = vmatpush1.xpose.msra.mxu0 %v1294
    %1328 = vmatprep.subr.mxu0 0.0
    %1329 = vmatpush1.xpose.msra.mxu0 %v1296
    %1330 = vmatprep.subr.mxu0 0.0
    %1331 = vmatpush1.xpose.msra.mxu0 %v1298
    %1332 = vmatprep.subr.mxu0 0.0
    %1333 = vmatpush1.xpose.msra.mxu0 %v1300
    %1334 = vmatprep.subr.mxu0 0.0
    %1335 = vmatpush1.xpose.msra.mxu0 %v1302
    %1336 = vmatprep.subr.mxu0 0.0
    %1337 = vmatpush1.xpose.msra.mxu0 %v1304
    %1338 = vmatprep.subr.mxu0 0.0
    %1339 = vmatpush1.xpose.msra.mxu0 %v1306
    %1340 = vmatprep.subr.mxu0 0.0
    %1341 = vmatpush1.xpose.msra.mxu0 %v1308
    %1342 = vmatprep.subr.mxu0 0.0
    %1343 = vmatpush1.xpose.msra.mxu0 %v1310
    %1344 = vmatprep.subr.mxu0 0.0
    %1345 = vmatpush1.xpose.msra.mxu0 %v1312
    %1346 = vmatprep.subr.mxu0 0.0
    %1347 = vmatpush1.xpose.msra.mxu0 %v1314
    %1348 = vmatprep.subr.mxu0 0.0
    %1349 = vmatpush1.xpose.msra.mxu0 %v1316
    %1350 = vmatprep.subr.mxu0 0.0
    %1351 = vmatpush1.xpose.msra.mxu0 %v1318
    %1352 = vmatprep.subr.mxu0 0.0
    %1353 = vmatpush1.xpose.msra.mxu0 %v1320
    %1354 = vmatprep.subr.mxu0 0.0
    %1355 = vmatpush1.xpose.msra.mxu0 %v1322
    %1356 = vmatprep.subr.mxu0 0.0
    %1357 = vmatpush1.xpose.msra.mxu0 0.0
    %1358 = vmatprep.subr.mxu0 0.0
    %1359 = vmatpush1.xpose.msra.mxu0 0.0
    %1360 = vmatprep.subr.mxu0 0.0
    %1361 = vmatpush1.xpose.msra.mxu0 0.0
    %1362 = vmatprep.subr.mxu0 0.0
    %1363 = vmatpush1.xpose.msra.mxu0 0.0
    %1364 = vmatprep.subr.mxu0 0.0
    %1365 = vmatpush1.xpose.msra.mxu0 0.0
    %1366 = vmatprep.subr.mxu0 0.0
    %1367 = vmatpush1.xpose.msra.mxu0 0.0
    %1368 = vmatprep.subr.mxu0 0.0
    %1369 = vmatpush1.xpose.msra.mxu0 0.0
    %1370 = vmatprep.subr.mxu0 0.0
    %1371 = vmatpush1.xpose.msra.mxu0 0.0
    %1372 = vmatprep.subr.mxu0 0.0
    %1373 = vmatpush1.xpose.msra.mxu0 0.0
    %1374 = vmatprep.subr.mxu0 0.0
    %1375 = vmatpush1.xpose.msra.mxu0 0.0
    %1376 = vmatprep.subr.mxu0 0.0
    %1377 = vmatpush1.xpose.msra.mxu0 0.0
    %1378 = vmatprep.subr.mxu0 0.0
    %1379 = vmatpush1.xpose.msra.mxu0 0.0
    %1380 = vmatprep.subr.mxu0 0.0
    %1381 = vmatpush1.xpose.msra.mxu0 0.0
    %1382 = vmatprep.subr.mxu0 0.0
    %1383 = vmatpush1.xpose.msra.mxu0 0.0
    %1384 = vmatprep.subr.mxu0 0.0
    %1385 = vmatpush1.xpose.msra.mxu0 0.0
    %1386 = vmatprep.subr.mxu0 0.0
    %1387 = vmatpush1.xpose.msra.mxu0 0.0
    %1388 = vmatprep.mubr.f32.mxu0 0.0
    %1389 = vmatmul.mubr.f32.gmra.mrb[0].mxu0 %v1260
    %v1390 = vpop.f32.mrb[0].mxu0
    %v1391 = vadd.f32 %v98, %v1390
    %v1392 = vpop.f32.mrb[0].mxu0
    %1393 = vmatprep.mubr.f32.mxu0 0.0
    %1394 = vmatmul.mubr.f32.gmra.mrb[0].mxu0 %v1262
    %v1395 = vpop.f32.mrb[0].mxu0
    %v1396 = vadd.f32 %v99, %v1395
    %v1397 = vpop.f32.mrb[0].mxu0
    %1398 = vmatprep.mubr.f32.mxu0 0.0
    %1399 = vmatmul.mubr.f32.gmra.mrb[0].mxu0 %v1264
    %v1400 = vpop.f32.mrb[0].mxu0
    %v1401 = vadd.f32 %v100, %v1400
    %v1402 = vpop.f32.mrb[0].mxu0
    %1403 = vmatprep.mubr.f32.mxu0 0.0
    %1404 = vmatmul.mubr.f32.gmra.mrb[0].mxu0 %v1266
    %v1405 = vpop.f32.mrb[0].mxu0
    %v1406 = vadd.f32 %v101, %v1405
    %v1407 = vpop.f32.mrb[0].mxu0
    %1408 = vmatprep.mubr.f32.mxu0 0.0
    %1409 = vmatmul.mubr.f32.gmra.mrb[0].mxu0 %v1268
    %v1410 = vpop.f32.mrb[0].mxu0
    %v1411 = vadd.f32 %v102, %v1410
    %v1412 = vpop.f32.mrb[0].mxu0
    %1413 = vmatprep.mubr.f32.mxu0 0.0
    %1414 = vmatmul.mubr.f32.gmra.mrb[0].mxu0 %v1270
    %v1415 = vpop.f32.mrb[0].mxu0
    %v1416 = vadd.f32 %v103, %v1415
    %v1417 = vpop.f32.mrb[0].mxu0
    %1418 = vmatprep.mubr.f32.mxu0 0.0
    %1419 = vmatmul.mubr.f32.gmra.mrb[0].mxu0 %v1272
    %v1420 = vpop.f32.mrb[0].mxu0
    %v1421 = vadd.f32 %v104, %v1420
    %v1422 = vpop.f32.mrb[0].mxu0
    %1423 = vmatprep.mubr.f32.mxu0 0.0
    %1424 = vmatmul.mubr.f32.gmra.mrb[0].mxu0 %v1274
    %v1425 = vpop.f32.mrb[0].mxu0
    %v1426 = vadd.f32 %v105, %v1425
    %v1427 = vpop.f32.mrb[0].mxu0
    %1428 = vmatprep.mubr.f32.mxu0 0.0
    %1429 = vmatmul.mubr.f32.gmra.mrb[0].mxu0 %v1276
    %v1430 = vpop.f32.mrb[0].mxu0
    %v1431 = vadd.f32 %v106, %v1430
    %v1432 = vpop.f32.mrb[0].mxu0
    %1433 = vmatprep.mubr.f32.mxu0 0.0
    %1434 = vmatmul.mubr.f32.gmra.mrb[0].mxu0 %v1278
    %v1435 = vpop.f32.mrb[0].mxu0
    %v1436 = vadd.f32 %v107, %v1435
    %v1437 = vpop.f32.mrb[0].mxu0
    %1438 = vmatprep.mubr.f32.mxu0 0.0
    %1439 = vmatmul.mubr.f32.gmra.mrb[0].mxu0 %v1280
    %v1440 = vpop.f32.mrb[0].mxu0
    %v1441 = vadd.f32 %v108, %v1440
    %v1442 = vpop.f32.mrb[0].mxu0
    %1443 = vmatprep.mubr.f32.mxu0 0.0
    %1444 = vmatmul.mubr.f32.gmra.mrb[0].mxu0 %v1282
    %v1445 = vpop.f32.mrb[0].mxu0
    %v1446 = vadd.f32 %v109, %v1445
    %v1447 = vpop.f32.mrb[0].mxu0
    %1448 = vmatprep.mubr.f32.mxu0 0.0
    %1449 = vmatmul.mubr.f32.gmra.mrb[0].mxu0 %v1284
    %v1450 = vpop.f32.mrb[0].mxu0
    %v1451 = vadd.f32 %v110, %v1450
    %v1452 = vpop.f32.mrb[0].mxu0
    %1453 = vmatprep.mubr.f32.mxu0 0.0
    %1454 = vmatmul.mubr.f32.gmra.mrb[0].mxu0 %v1286
    %v1455 = vpop.f32.mrb[0].mxu0
    %v1456 = vadd.f32 %v111, %v1455
    %v1457 = vpop.f32.mrb[0].mxu0
    %1458 = vmatprep.mubr.f32.mxu0 0.0
    %1459 = vmatmul.mubr.f32.gmra.mrb[0].mxu0 %v1288
    %v1460 = vpop.f32.mrb[0].mxu0
    %v1461 = vadd.f32 %v112, %v1460
    %v1462 = vpop.f32.mrb[0].mxu0
    %1463 = vmatprep.mubr.f32.mxu0 0.0
    %1464 = vmatmul.mubr.f32.gmra.mrb[0].mxu0 %v1290
    %v1465 = vpop.f32.mrb[0].mxu0
    %v1466 = vadd.f32 %v113, %v1465
    %v1467 = vpop.f32.mrb[0].mxu0
    %1468 = vdwg.mxu0
    %1469 = vmax.xlane.f32.xlu0 %v1391
    %v1470 = vpop.xlane.xlu0 %1469
    %1471 = vmax.xlane.f32.xlu0 %v1396
    %v1472 = vpop.xlane.xlu0 %1471
    %1473 = vmax.xlane.f32.xlu0 %v1401
    %v1474 = vpop.xlane.xlu0 %1473
    %1475 = vmax.xlane.f32.xlu0 %v1406
    %v1476 = vpop.xlane.xlu0 %1475
    %1477 = vmax.xlane.f32.xlu0 %v1411
    %v1478 = vpop.xlane.xlu0 %1477
    %1479 = vmax.xlane.f32.xlu0 %v1416
    %v1480 = vpop.xlane.xlu0 %1479
    %1481 = vmax.xlane.f32.xlu0 %v1421
    %v1482 = vpop.xlane.xlu0 %1481
    %1483 = vmax.xlane.f32.xlu0 %v1426
    %v1484 = vpop.xlane.xlu0 %1483
    %1485 = vmax.xlane.f32.xlu0 %v1431
    %v1486 = vpop.xlane.xlu0 %1485
    %1487 = vmax.xlane.f32.xlu0 %v1436
    %v1488 = vpop.xlane.xlu0 %1487
    %1489 = vmax.xlane.f32.xlu0 %v1441
    %v1490 = vpop.xlane.xlu0 %1489
    %1491 = vmax.xlane.f32.xlu0 %v1446
    %v1492 = vpop.xlane.xlu0 %1491
    %1493 = vmax.xlane.f32.xlu0 %v1451
    %v1494 = vpop.xlane.xlu0 %1493
    %1495 = vmax.xlane.f32.xlu0 %v1456
    %v1496 = vpop.xlane.xlu0 %1495
    %1497 = vmax.xlane.f32.xlu0 %v1461
    %v1498 = vpop.xlane.xlu0 %1497
    %1499 = vmax.xlane.f32.xlu0 %v1466
    %v1500 = vpop.xlane.xlu0 %1499
    %v1501 = vsub.f32 %v1391, %v1470
    %v1502 = vsub.f32 %v1396, %v1472
    %v1503 = vsub.f32 %v1401, %v1474
    %v1504 = vsub.f32 %v1406, %v1476
    %v1505 = vsub.f32 %v1411, %v1478
    %v1506 = vsub.f32 %v1416, %v1480
    %v1507 = vsub.f32 %v1421, %v1482
    %v1508 = vsub.f32 %v1426, %v1484
    %v1509 = vsub.f32 %v1431, %v1486
    %v1510 = vsub.f32 %v1436, %v1488
    %v1511 = vsub.f32 %v1441, %v1490
    %v1512 = vsub.f32 %v1446, %v1492
    %v1513 = vsub.f32 %v1451, %v1494
    %v1514 = vsub.f32 %v1456, %v1496
    %v1515 = vsub.f32 %v1461, %v1498
    %v1516 = vsub.f32 %v1466, %v1500
    %v1517 = vmul.f32 %v1501, 1.442695
    %v1518 = vpow.pop %v1517
    %v1519 = vmul.f32 %v1502, 1.442695
    %v1520 = vpow.pop %v1519
    %v1521 = vmul.f32 %v1503, 1.442695
    %v1522 = vpow.pop %v1521
    %v1523 = vmul.f32 %v1504, 1.442695
    %v1524 = vpow.pop %v1523
    %v1525 = vmul.f32 %v1505, 1.442695
    %v1526 = vpow.pop %v1525
    %v1527 = vmul.f32 %v1506, 1.442695
    %v1528 = vpow.pop %v1527
    %v1529 = vmul.f32 %v1507, 1.442695
    %v1530 = vpow.pop %v1529
    %v1531 = vmul.f32 %v1508, 1.442695
    %v1532 = vpow.pop %v1531
    %v1533 = vmul.f32 %v1509, 1.442695
    %v1534 = vpow.pop %v1533
    %v1535 = vmul.f32 %v1510, 1.442695
    %v1536 = vpow.pop %v1535
    %v1537 = vmul.f32 %v1511, 1.442695
    %v1538 = vpow.pop %v1537
    %v1539 = vmul.f32 %v1512, 1.442695
    %v1540 = vpow.pop %v1539
    %v1541 = vmul.f32 %v1513, 1.442695
    %v1542 = vpow.pop %v1541
    %v1543 = vmul.f32 %v1514, 1.442695
    %v1544 = vpow.pop %v1543
    %v1545 = vmul.f32 %v1515, 1.442695
    %v1546 = vpow.pop %v1545
    %v1547 = vmul.f32 %v1516, 1.442695
    %v1548 = vpow.pop %v1547
    %1549 = vadd.xlane.f32.xlu0 %v1518
    %v1550 = vpop.xlane.xlu0 %1549
    %1551 = vadd.xlane.f32.xlu0 %v1520
    %v1552 = vpop.xlane.xlu0 %1551
    %1553 = vadd.xlane.f32.xlu0 %v1522
    %v1554 = vpop.xlane.xlu0 %1553
    %1555 = vadd.xlane.f32.xlu0 %v1524
    %v1556 = vpop.xlane.xlu0 %1555
    %1557 = vadd.xlane.f32.xlu0 %v1526
    %v1558 = vpop.xlane.xlu0 %1557
    %1559 = vadd.xlane.f32.xlu0 %v1528
    %v1560 = vpop.xlane.xlu0 %1559
    %1561 = vadd.xlane.f32.xlu0 %v1530
    %v1562 = vpop.xlane.xlu0 %1561
    %1563 = vadd.xlane.f32.xlu0 %v1532
    %v1564 = vpop.xlane.xlu0 %1563
    %1565 = vadd.xlane.f32.xlu0 %v1534
    %v1566 = vpop.xlane.xlu0 %1565
    %1567 = vadd.xlane.f32.xlu0 %v1536
    %v1568 = vpop.xlane.xlu0 %1567
    %1569 = vadd.xlane.f32.xlu0 %v1538
    %v1570 = vpop.xlane.xlu0 %1569
    %1571 = vadd.xlane.f32.xlu0 %v1540
    %v1572 = vpop.xlane.xlu0 %1571
    %1573 = vadd.xlane.f32.xlu0 %v1542
    %v1574 = vpop.xlane.xlu0 %1573
    %1575 = vadd.xlane.f32.xlu0 %v1544
    %v1576 = vpop.xlane.xlu0 %1575
    %1577 = vadd.xlane.f32.xlu0 %v1546
    %v1578 = vpop.xlane.xlu0 %1577
    %1579 = vadd.xlane.f32.xlu0 %v1548
    %v1580 = vpop.xlane.xlu0 %1579
    %v1581 = vrcp.pop %v1550
    %v1582 = vmul.f32 1.0, %v1581
    %v1583 = vrcp.pop %v1552
    %v1584 = vmul.f32 1.0, %v1583
    %v1585 = vrcp.pop %v1554
    %v1586 = vmul.f32 1.0, %v1585
    %v1587 = vrcp.pop %v1556
    %v1588 = vmul.f32 1.0, %v1587
    %v1589 = vrcp.pop %v1558
    %v1590 = vmul.f32 1.0, %v1589
    %v1591 = vrcp.pop %v1560
    %v1592 = vmul.f32 1.0, %v1591
    %v1593 = vrcp.pop %v1562
    %v1594 = vmul.f32 1.0, %v1593
    %v1595 = vrcp.pop %v1564
    %v1596 = vmul.f32 1.0, %v1595
    %v1597 = vrcp.pop %v1566
    %v1598 = vmul.f32 1.0, %v1597
    %v1599 = vrcp.pop %v1568
    %v1600 = vmul.f32 1.0, %v1599
    %v1601 = vrcp.pop %v1570
    %v1602 = vmul.f32 1.0, %v1601
    %v1603 = vrcp.pop %v1572
    %v1604 = vmul.f32 1.0, %v1603
    %v1605 = vrcp.pop %v1574
    %v1606 = vmul.f32 1.0, %v1605
    %v1607 = vrcp.pop %v1576
    %v1608 = vmul.f32 1.0, %v1607
    %v1609 = vrcp.pop %v1578
    %v1610 = vmul.f32 1.0, %v1609
    %v1611 = vrcp.pop %v1580
    %v1612 = vmul.f32 1.0, %v1611
    %v1613 = vmul.f32 %v1518, %v1582
    %v1614 = vmul.f32 %v1520, %v1584
    %v1615 = vmul.f32 %v1522, %v1586
    %v1616 = vmul.f32 %v1524, %v1588
    %v1617 = vmul.f32 %v1526, %v1590
    %v1618 = vmul.f32 %v1528, %v1592
    %v1619 = vmul.f32 %v1530, %v1594
    %v1620 = vmul.f32 %v1532, %v1596
    %v1621 = vmul.f32 %v1534, %v1598
    %v1622 = vmul.f32 %v1536, %v1600
    %v1623 = vmul.f32 %v1538, %v1602
    %v1624 = vmul.f32 %v1540, %v1604
    %v1625 = vmul.f32 %v1542, %v1606
    %v1626 = vmul.f32 %v1544, %v1608
    %v1627 = vmul.f32 %v1546, %v1610
    %v1628 = vmul.f32 %v1548, %v1612
    %1629 = vrot.lane.b32.xlu0 %v1158, 64
    %v1630 = vpop.permute.xlu0 %1629
    %1631 = vrot.lane.b32.xlu0 %v1164, 64
    %v1632 = vpop.permute.xlu0 %1631
    %1633 = vrot.lane.b32.xlu0 %v1170, 64
    %v1634 = vpop.permute.xlu0 %1633
    %1635 = vrot.lane.b32.xlu0 %v1176, 64
    %v1636 = vpop.permute.xlu0 %1635
    %1637 = vrot.lane.b32.xlu0 %v1209, 64
    %v1638 = vpop.permute.xlu0 %1637
    %1639 = vrot.lane.b32.xlu0 %v1211, 64
    %v1640 = vpop.permute.xlu0 %1639
    %1641 = vrot.lane.b32.xlu0 %v1213, 64
    %v1642 = vpop.permute.xlu0 %1641
    %1643 = vrot.lane.b32.xlu0 %v1215, 64
    %v1644 = vpop.permute.xlu0 %1643
    %1645 = vrot.lane.b32.xlu0 %v1221, 64
    %v1646 = vpop.permute.xlu0 %1645
    %1647 = vrot.lane.b32.xlu0 %v1223, 64
    %v1648 = vpop.permute.xlu0 %1647
    %1649 = vrot.lane.b32.xlu0 %v1225, 64
    %v1650 = vpop.permute.xlu0 %1649
    %1651 = vrot.lane.b32.xlu0 %v1227, 64
    %v1652 = vpop.permute.xlu0 %1651
    %1653 = vrot.lane.b32.xlu0 %v1229, 64
    %v1654 = vpop.permute.xlu0 %1653
    %1655 = vrot.lane.b32.xlu0 %v1231, 64
    %v1656 = vpop.permute.xlu0 %1655
    %1657 = vrot.lane.b32.xlu0 %v1233, 64
    %v1658 = vpop.permute.xlu0 %1657
    %1659 = vrot.lane.b32.xlu0 %v1235, 64
    %v1660 = vpop.permute.xlu0 %1659
    %1677 = vmatprep.subr.mxu0 0.0
    %1678 = vmatpush1.msra.mxu0 %v1630
    %1679 = vmatprep.subr.mxu0 0.0
    %1680 = vmatpush1.msra.mxu0 %v1632
    %1681 = vmatprep.subr.mxu0 0.0
    %1682 = vmatpush1.msra.mxu0 %v1634
    %1683 = vmatprep.subr.mxu0 0.0
    %1684 = vmatpush1.msra.mxu0 %v1636
    %1685 = vmatprep.subr.mxu0 0.0
    %1686 = vmatpush1.msra.mxu0 %v1638
    %1687 = vmatprep.subr.mxu0 0.0
    %1688 = vmatpush1.msra.mxu0 %v1640
    %1689 = vmatprep.subr.mxu0 0.0
    %1690 = vmatpush1.msra.mxu0 %v1642
    %1691 = vmatprep.subr.mxu0 0.0
    %1692 = vmatpush1.msra.mxu0 %v1644
    %1693 = vmatprep.subr.mxu0 0.0
    %1694 = vmatpush1.msra.mxu0 %v1646
    %1695 = vmatprep.subr.mxu0 0.0
    %1696 = vmatpush1.msra.mxu0 %v1648
    %1697 = vmatprep.subr.mxu0 0.0
    %1698 = vmatpush1.msra.mxu0 %v1650
    %1699 = vmatprep.subr.mxu0 0.0
    %1700 = vmatpush1.msra.mxu0 %v1652
    %1701 = vmatprep.subr.mxu0 0.0
    %1702 = vmatpush1.msra.mxu0 %v1654
    %1703 = vmatprep.subr.mxu0 0.0
    %1704 = vmatpush1.msra.mxu0 %v1656
    %1705 = vmatprep.subr.mxu0 0.0
    %1706 = vmatpush1.msra.mxu0 %v1658
    %1707 = vmatprep.subr.mxu0 0.0
    %1708 = vmatpush1.msra.mxu0 %v1660
    %1709 = vmatprep.subr.mxu0 0.0
    %1710 = vmatpush1.msra.mxu0 0.0
    %1711 = vmatprep.subr.mxu0 0.0
    %1712 = vmatpush1.msra.mxu0 0.0
    %1713 = vmatprep.subr.mxu0 0.0
    %1714 = vmatpush1.msra.mxu0 0.0
    %1715 = vmatprep.subr.mxu0 0.0
    %1716 = vmatpush1.msra.mxu0 0.0
    %1717 = vmatprep.subr.mxu0 0.0
    %1718 = vmatpush1.msra.mxu0 0.0
    %1719 = vmatprep.subr.mxu0 0.0
    %1720 = vmatpush1.msra.mxu0 0.0
    %1721 = vmatprep.subr.mxu0 0.0
    %1722 = vmatpush1.msra.mxu0 0.0
    %1723 = vmatprep.subr.mxu0 0.0
    %1724 = vmatpush1.msra.mxu0 0.0
    %1725 = vmatprep.subr.mxu0 0.0
    %1726 = vmatpush1.msra.mxu0 0.0
    %1727 = vmatprep.subr.mxu0 0.0
    %1728 = vmatpush1.msra.mxu0 0.0
    %1729 = vmatprep.subr.mxu0 0.0
    %1730 = vmatpush1.msra.mxu0 0.0
    %1731 = vmatprep.subr.mxu0 0.0
    %1732 = vmatpush1.msra.mxu0 0.0
    %1733 = vmatprep.subr.mxu0 0.0
    %1734 = vmatpush1.msra.mxu0 0.0
    %1735 = vmatprep.subr.mxu0 0.0
    %1736 = vmatpush1.msra.mxu0 0.0
    %1737 = vmatprep.subr.mxu0 0.0
    %1738 = vmatpush1.msra.mxu0 0.0
    %1739 = vmatprep.subr.mxu0 0.0
    %1740 = vmatpush1.msra.mxu0 0.0
    %1741 = vmatprep.mubr.f32.mxu0 0.0
    %1742 = vmatmul.mubr.f32.gmra.mrb[0].mxu0 %v1613
    %v1743 = vpop.f32.mrb[0].mxu0
    %v1744 = vadd.f32 0.0, %v1743
    %v1745 = vpop.f32.mrb[0].mxu0
    %1746 = vmatprep.mubr.f32.mxu0 0.0
    %1747 = vmatmul.mubr.f32.gmra.mrb[0].mxu0 %v1614
    %v1748 = vpop.f32.mrb[0].mxu0
    %v1749 = vadd.f32 0.0, %v1748
    %v1750 = vpop.f32.mrb[0].mxu0
    %1751 = vmatprep.mubr.f32.mxu0 0.0
    %1752 = vmatmul.mubr.f32.gmra.mrb[0].mxu0 %v1615
    %v1753 = vpop.f32.mrb[0].mxu0
    %v1754 = vadd.f32 0.0, %v1753
    %v1755 = vpop.f32.mrb[0].mxu0
    %1756 = vmatprep.mubr.f32.mxu0 0.0
    %1757 = vmatmul.mubr.f32.gmra.mrb[0].mxu0 %v1616
    %v1758 = vpop.f32.mrb[0].mxu0
    %v1759 = vadd.f32 0.0, %v1758
    %v1760 = vpop.f32.mrb[0].mxu0
    %1761 = vmatprep.mubr.f32.mxu0 0.0
    %1762 = vmatmul.mubr.f32.gmra.mrb[0].mxu0 %v1617
    %v1763 = vpop.f32.mrb[0].mxu0
    %v1764 = vadd.f32 0.0, %v1763
    %v1765 = vpop.f32.mrb[0].mxu0
    %1766 = vmatprep.mubr.f32.mxu0 0.0
    %1767 = vmatmul.mubr.f32.gmra.mrb[0].mxu0 %v1618
    %v1768 = vpop.f32.mrb[0].mxu0
    %v1769 = vadd.f32 0.0, %v1768
    %v1770 = vpop.f32.mrb[0].mxu0
    %1771 = vmatprep.mubr.f32.mxu0 0.0
    %1772 = vmatmul.mubr.f32.gmra.mrb[0].mxu0 %v1619
    %v1773 = vpop.f32.mrb[0].mxu0
    %v1774 = vadd.f32 0.0, %v1773
    %v1775 = vpop.f32.mrb[0].mxu0
    %1776 = vmatprep.mubr.f32.mxu0 0.0
    %1777 = vmatmul.mubr.f32.gmra.mrb[0].mxu0 %v1620
    %v1778 = vpop.f32.mrb[0].mxu0
    %v1779 = vadd.f32 0.0, %v1778
    %v1780 = vpop.f32.mrb[0].mxu0
    %1781 = vmatprep.mubr.f32.mxu0 0.0
    %1782 = vmatmul.mubr.f32.gmra.mrb[0].mxu0 %v1621
    %v1783 = vpop.f32.mrb[0].mxu0
    %v1784 = vadd.f32 0.0, %v1783
    %v1785 = vpop.f32.mrb[0].mxu0
    %1786 = vmatprep.mubr.f32.mxu0 0.0
    %1787 = vmatmul.mubr.f32.gmra.mrb[0].mxu0 %v1622
    %v1788 = vpop.f32.mrb[0].mxu0
    %v1789 = vadd.f32 0.0, %v1788
    %v1790 = vpop.f32.mrb[0].mxu0
    %1791 = vmatprep.mubr.f32.mxu0 0.0
    %1792 = vmatmul.mubr.f32.gmra.mrb[0].mxu0 %v1623
    %v1793 = vpop.f32.mrb[0].mxu0
    %v1794 = vadd.f32 0.0, %v1793
    %v1795 = vpop.f32.mrb[0].mxu0
    %1796 = vmatprep.mubr.f32.mxu0 0.0
    %1797 = vmatmul.mubr.f32.gmra.mrb[0].mxu0 %v1624
    %v1798 = vpop.f32.mrb[0].mxu0
    %v1799 = vadd.f32 0.0, %v1798
    %v1800 = vpop.f32.mrb[0].mxu0
    %1801 = vmatprep.mubr.f32.mxu0 0.0
    %1802 = vmatmul.mubr.f32.gmra.mrb[0].mxu0 %v1625
    %v1803 = vpop.f32.mrb[0].mxu0
    %v1804 = vadd.f32 0.0, %v1803
    %v1805 = vpop.f32.mrb[0].mxu0
    %1806 = vmatprep.mubr.f32.mxu0 0.0
    %1807 = vmatmul.mubr.f32.gmra.mrb[0].mxu0 %v1626
    %v1808 = vpop.f32.mrb[0].mxu0
    %v1809 = vadd.f32 0.0, %v1808
    %v1810 = vpop.f32.mrb[0].mxu0
    %1811 = vmatprep.mubr.f32.mxu0 0.0
    %1812 = vmatmul.mubr.f32.gmra.mrb[0].mxu0 %v1627
    %v1813 = vpop.f32.mrb[0].mxu0
    %v1814 = vadd.f32 0.0, %v1813
    %v1815 = vpop.f32.mrb[0].mxu0
    %1816 = vmatprep.mubr.f32.mxu0 0.0
    %1817 = vmatmul.mubr.f32.gmra.mrb[0].mxu0 %v1628
    %v1818 = vpop.f32.mrb[0].mxu0
    %v1819 = vadd.f32 0.0, %v1818
    %v1820 = vpop.f32.mrb[0].mxu0
    %1821 = vdwg.mxu0
    %v1822 = vadd.f32 %v1744, %v1764
    %v1823 = vadd.f32 %v1749, %v1769
    %v1824 = vadd.f32 %v1754, %v1774
    %v1825 = vadd.f32 %v1759, %v1779
    %v1826 = vadd.f32 %v1822, %v1784
    %v1827 = vadd.f32 %v1823, %v1789
    %v1828 = vadd.f32 %v1824, %v1794
    %v1829 = vadd.f32 %v1825, %v1799
    %v1830 = vadd.f32 %v1826, %v1804
    %v1831 = vadd.f32 %v1827, %v1809
    %v1832 = vadd.f32 %v1828, %v1814
    %v1833 = vadd.f32 %v1829, %v1819
    %v1834 = vld [vmem:[%s13] sm:$0x1]
    %v1836 = vlaneseq
    %v1837 = vshrl.u32 %v1836, 7
    %v1838 = vsub.s32 0, %v1837
    %v1839 = vrot.slane %v1834, %v1838
    %v1841 = vadd.f32 %v1830, %v1839
    %v1842 = vadd.f32 %v1831, %v1839
    %v1843 = vadd.f32 %v1832, %v1839
    %v1844 = vadd.f32 %v1833, %v1839
    %v1845 = vadd.f32 %v1055, %v1841
    %v1846 = vadd.f32 %v1056, %v1842
    %v1847 = vadd.f32 %v1057, %v1843
    %v1848 = vadd.f32 %v1058, %v1844
    %v1849 = vadd.f32 %v1845, %v78
    %v1850 = vadd.f32 %v1846, %v79
    %v1851 = vadd.f32 %v1847, %v80
    %v1852 = vadd.f32 %v1848, %v81
    %v1853 = vld [vmem:[%s14] sm:$0x1]
    %v1854 = vld [vmem:[%s15] sm:$0x1]
    %v1855 = vsel %vm120, %v1849, 0.0
    %1856 = vadd.xlane.f32.xlu0 %v1855
    %v1857 = vpop.xlane.xlu0 %1856
    %v1858 = vsel %vm120, %v1850, 0.0
    %1859 = vadd.xlane.f32.xlu0 %v1858
    %v1860 = vpop.xlane.xlu0 %1859
    %v1861 = vsel %vm120, %v1851, 0.0
    %1862 = vadd.xlane.f32.xlu0 %v1861
    %v1863 = vpop.xlane.xlu0 %1862
    %v1864 = vsel %vm120, %v1852, 0.0
    %1865 = vadd.xlane.f32.xlu0 %v1864
    %v1866 = vpop.xlane.xlu0 %1865
    %v1867 = vmul.f32 %v1857, %v133
    %v1868 = vmul.f32 %v1860, %v133
    %v1869 = vmul.f32 %v1863, %v133
    %v1870 = vmul.f32 %v1866, %v133
    %v1871 = vsub.f32 %v1849, %v1867
    %v1872 = vsub.f32 %v1850, %v1868
    %v1873 = vsub.f32 %v1851, %v1869
    %v1874 = vsub.f32 %v1852, %v1870
    %v1875 = vmul.f32 %v1871, %v1871
    %v1876 = vmul.f32 %v1872, %v1872
    %v1877 = vmul.f32 %v1873, %v1873
    %v1878 = vmul.f32 %v1874, %v1874
    %v1879 = vsel %vm120, %v1875, 0.0
    %1880 = vadd.xlane.f32.xlu0 %v1879
    %v1881 = vpop.xlane.xlu0 %1880
    %v1882 = vsel %vm120, %v1876, 0.0
    %1883 = vadd.xlane.f32.xlu0 %v1882
    %v1884 = vpop.xlane.xlu0 %1883
    %v1885 = vsel %vm120, %v1877, 0.0
    %1886 = vadd.xlane.f32.xlu0 %v1885
    %v1887 = vpop.xlane.xlu0 %1886
    %v1888 = vsel %vm120, %v1878, 0.0
    %1889 = vadd.xlane.f32.xlu0 %v1888
    %v1890 = vpop.xlane.xlu0 %1889
    %v1891 = vmul.f32 %v1881, %v133
    %v1892 = vmul.f32 %v1884, %v133
    %v1893 = vmul.f32 %v1887, %v133
    %v1894 = vmul.f32 %v1890, %v133
    %v1895 = vadd.f32 %v1891, 1e-05
    %v1896 = vadd.f32 %v1892, 1e-05
    %v1897 = vadd.f32 %v1893, 1e-05
    %v1898 = vadd.f32 %v1894, 1e-05
    %v1899 = vrsqrt.pop %v1895
    %v1900 = vrsqrt.pop %v1896
    %v1901 = vrsqrt.pop %v1897
    %v1902 = vrsqrt.pop %v1898
    %v1903 = vmul.f32 %v1871, %v1899
    %v1904 = vmul.f32 %v1872, %v1900
    %v1905 = vmul.f32 %v1873, %v1901
    %v1906 = vmul.f32 %v1874, %v1902
    %v1908 = vlaneseq
    %v1909 = vshrl.u32 %v1908, 7
    %v1910 = vsub.s32 0, %v1909
    %v1911 = vrot.slane %v1853, %v1910
    %v1913 = vmul.f32 %v1903, %v1911
    %v1914 = vmul.f32 %v1904, %v1911
    %v1915 = vmul.f32 %v1905, %v1911
    %v1916 = vmul.f32 %v1906, %v1911
    %v1918 = vlaneseq
    %v1919 = vshrl.u32 %v1918, 7
    %v1920 = vsub.s32 0, %v1919
    %v1921 = vrot.slane %v1854, %v1920
    %v1923 = vadd.f32 %v1913, %v1921
    %v1924 = vadd.f32 %v1914, %v1921
    %v1925 = vadd.f32 %v1915, %v1921
    %v1926 = vadd.f32 %v1916, %v1921
    %v1927 = vld [vmem:[%s16] sm:$0xf]
    %v1928 = vld [vmem:[%s17] sm:$0xff]
    %v1929 = vld [vmem:[%s17 + $0x8] sm:$0xff]
    %v1930 = vld [vmem:[%s17 + $0x10] sm:$0xff]
    %v1931 = vld [vmem:[%s17 + $0x18] sm:$0xff]
    %v1932 = vld [vmem:[%s18] sm:$0x1]
    %v1934 = vlaneseq
    %v1935 = vshrl.u32 %v1934, 7
    %v1936 = vsub.s32 0, %v1935
    %v1937 = vrot.slane %v1932, %v1936
    %v1940 = vsel %vm120, %v1927, 0
    %1942 = vmatprep.subr.mxu0 0.0
    %1943 = vmatpush1.msra.mxu0 %v1928
    %1944 = vmatprep.subr.mxu0 0.0
    %1945 = vmatpush1.msra.mxu0 %v1929
    %1946 = vmatprep.subr.mxu0 0.0
    %1947 = vmatpush1.msra.mxu0 %v1930
    %1948 = vmatprep.subr.mxu0 0.0
    %1949 = vmatpush1.msra.mxu0 %v1931
    %1950 = vmatprep.subr.mxu0 0.0
    %1951 = vmatpush1.msra.mxu0 0.0
    %1952 = vmatprep.subr.mxu0 0.0
    %1953 = vmatpush1.msra.mxu0 0.0
    %1954 = vmatprep.subr.mxu0 0.0
    %1955 = vmatpush1.msra.mxu0 0.0
    %1956 = vmatprep.subr.mxu0 0.0
    %1957 = vmatpush1.msra.mxu0 0.0
    %1958 = vmatprep.subr.mxu0 0.0
    %1959 = vmatpush1.msra.mxu0 0.0
    %1960 = vmatprep.subr.mxu0 0.0
    %1961 = vmatpush1.msra.mxu0 0.0
    %1962 = vmatprep.subr.mxu0 0.0
    %1963 = vmatpush1.msra.mxu0 0.0
    %1964 = vmatprep.subr.mxu0 0.0
    %1965 = vmatpush1.msra.mxu0 0.0
    %1966 = vmatprep.subr.mxu0 0.0
    %1967 = vmatpush1.msra.mxu0 0.0
    %1968 = vmatprep.subr.mxu0 0.0
    %1969 = vmatpush1.msra.mxu0 0.0
    %1970 = vmatprep.subr.mxu0 0.0
    %1971 = vmatpush1.msra.mxu0 0.0
    %1972 = vmatprep.subr.mxu0 0.0
    %1973 = vmatpush1.msra.mxu0 0.0
    %1974 = vmatprep.subr.mxu0 0.0
    %1975 = vmatpush1.msra.mxu0 0.0
    %1976 = vmatprep.subr.mxu0 0.0
    %1977 = vmatpush1.msra.mxu0 0.0
    %1978 = vmatprep.subr.mxu0 0.0
    %1979 = vmatpush1.msra.mxu0 0.0
    %1980 = vmatprep.subr.mxu0 0.0
    %1981 = vmatpush1.msra.mxu0 0.0
    %1982 = vmatprep.subr.mxu0 0.0
    %1983 = vmatpush1.msra.mxu0 0.0
    %1984 = vmatprep.subr.mxu0 0.0
    %1985 = vmatpush1.msra.mxu0 0.0
    %1986 = vmatprep.subr.mxu0 0.0
    %1987 = vmatpush1.msra.mxu0 0.0
    %1988 = vmatprep.subr.mxu0 0.0
    %1989 = vmatpush1.msra.mxu0 0.0
    %1990 = vmatprep.subr.mxu0 0.0
    %1991 = vmatpush1.msra.mxu0 0.0
    %1992 = vmatprep.subr.mxu0 0.0
    %1993 = vmatpush1.msra.mxu0 0.0
    %1994 = vmatprep.subr.mxu0 0.0
    %1995 = vmatpush1.msra.mxu0 0.0
    %1996 = vmatprep.subr.mxu0 0.0
    %1997 = vmatpush1.msra.mxu0 0.0
    %1998 = vmatprep.subr.mxu0 0.0
    %1999 = vmatpush1.msra.mxu0 0.0
    %2000 = vmatprep.subr.mxu0 0.0
    %2001 = vmatpush1.msra.mxu0 0.0
    %2002 = vmatprep.subr.mxu0 0.0
    %2003 = vmatpush1.msra.mxu0 0.0
    %2004 = vmatprep.subr.mxu0 0.0
    %2005 = vmatpush1.msra.mxu0 0.0
    %2006 = vmatprep.mubr.f32.mxu0 0.0
    %2007 = vmatmul.mubr.f32.gmra.mrb[0].mxu0 %v1940
    %v2008 = vpop.f32.mrb[0].mxu0
    %v2009 = vadd.f32 %v1937, %v2008
    %v2010 = vpop.f32.mrb[0].mxu0
    %2011 = vdwg.mxu0
    %v2013 = vrot.slane %v2009, 4
    %vm2015 = vcmask 1043456
    %v2016 = vsel %vm2015, %v2009, %v2013
    %v2017 = vld [vmem:[%s19] sm:$0xff]
    %v2018 = vld [vmem:[%s19 + $0x8] sm:$0xff]
    %v2019 = vld [vmem:[%s19 + $0x10] sm:$0xff]
    %v2020 = vld [vmem:[%s19 + $0x18] sm:$0xff]
    %v2021 = vld [vmem:[%s19 + $0x20] sm:$0xff]
    %v2022 = vld [vmem:[%s19 + $0x28] sm:$0xff]
    %v2023 = vld [vmem:[%s19 + $0x30] sm:$0xff]
    %v2024 = vld [vmem:[%s19 + $0x38] sm:$0xff]
    %v2025 = vld [vmem:[%s20] sm:$0x3]
    %v2027 = vlaneseq
    %v2028 = vshrl.u32 %v2027, 7
    %v2029 = vsub.s32 0, %v2028
    %v2030 = vrot.slane %v2025, %v2029
    %v2031 = vlaneseq
    %v2032 = vshrl.u32 %v2031, 7
    %v2033 = vsub.s32 1, %v2032
    %v2034 = vrot.slane %v2025, %v2033
    %v2038 = vsel %vm120, %v1923, 0
    %v2041 = vsel %vm120, %v1924, 0
    %v2044 = vsel %vm120, %v1925, 0
    %v2047 = vsel %vm120, %v1926, 0
    %2049 = vmatprep.subr.mxu0 %v2018
    %2050 = vmatpush1.msra.mxu0 %v2017
    %2051 = vmatprep.subr.mxu0 %v2020
    %2052 = vmatpush1.msra.mxu0 %v2019
    %2053 = vmatprep.subr.mxu0 %v2022
    %2054 = vmatpush1.msra.mxu0 %v2021
    %2055 = vmatprep.subr.mxu0 %v2024
    %2056 = vmatpush1.msra.mxu0 %v2023
    %2057 = vmatprep.subr.mxu0 0.0
    %2058 = vmatpush1.msra.mxu0 0.0
    %2059 = vmatprep.subr.mxu0 0.0
    %2060 = vmatpush1.msra.mxu0 0.0
    %2061 = vmatprep.subr.mxu0 0.0
    %2062 = vmatpush1.msra.mxu0 0.0
    %2063 = vmatprep.subr.mxu0 0.0
    %2064 = vmatpush1.msra.mxu0 0.0
    %2065 = vmatprep.subr.mxu0 0.0
    %2066 = vmatpush1.msra.mxu0 0.0
    %2067 = vmatprep.subr.mxu0 0.0
    %2068 = vmatpush1.msra.mxu0 0.0
    %2069 = vmatprep.subr.mxu0 0.0
    %2070 = vmatpush1.msra.mxu0 0.0
    %2071 = vmatprep.subr.mxu0 0.0
    %2072 = vmatpush1.msra.mxu0 0.0
    %2073 = vmatprep.subr.mxu0 0.0
    %2074 = vmatpush1.msra.mxu0 0.0
    %2075 = vmatprep.subr.mxu0 0.0
    %2076 = vmatpush1.msra.mxu0 0.0
    %2077 = vmatprep.subr.mxu0 0.0
    %2078 = vmatpush1.msra.mxu0 0.0
    %2079 = vmatprep.subr.mxu0 0.0
    %2080 = vmatpush1.msra.mxu0 0.0
    %2081 = vmatprep.subr.mxu0 0.0
    %2082 = vmatpush1.msra.mxu0 0.0
    %2083 = vmatprep.subr.mxu0 0.0
    %2084 = vmatpush1.msra.mxu0 0.0
    %2085 = vmatprep.subr.mxu0 0.0
    %2086 = vmatpush1.msra.mxu0 0.0
    %2087 = vmatprep.subr.mxu0 0.0
    %2088 = vmatpush1.msra.mxu0 0.0
    %2089 = vmatprep.subr.mxu0 0.0
    %2090 = vmatpush1.msra.mxu0 0.0
    %2091 = vmatprep.subr.mxu0 0.0
    %2092 = vmatpush1.msra.mxu0 0.0
    %2093 = vmatprep.subr.mxu0 0.0
    %2094 = vmatpush1.msra.mxu0 0.0
    %2095 = vmatprep.subr.mxu0 0.0
    %2096 = vmatpush1.msra.mxu0 0.0
    %2097 = vmatprep.subr.mxu0 0.0
    %2098 = vmatpush1.msra.mxu0 0.0
    %2099 = vmatprep.subr.mxu0 0.0
    %2100 = vmatpush1.msra.mxu0 0.0
    %2101 = vmatprep.subr.mxu0 0.0
    %2102 = vmatpush1.msra.mxu0 0.0
    %2103 = vmatprep.subr.mxu0 0.0
    %2104 = vmatpush1.msra.mxu0 0.0
    %2105 = vmatprep.subr.mxu0 0.0
    %2106 = vmatpush1.msra.mxu0 0.0
    %2107 = vmatprep.subr.mxu0 0.0
    %2108 = vmatpush1.msra.mxu0 0.0
    %2109 = vmatprep.subr.mxu0 0.0
    %2110 = vmatpush1.msra.mxu0 0.0
    %2111 = vmatprep.subr.mxu0 0.0
    %2112 = vmatpush1.msra.mxu0 0.0
    %2113 = vmatprep.mubr.f32.mxu0 0.0
    %2114 = vmatmul.mubr.f32.gmra.mrb[0].mxu0 %v2038
    %v2115 = vpop.f32.mrb[0].mxu0
    %v2116 = vadd.f32 %v2030, %v2115
    %v2117 = vpop.f32.mrb[0].mxu0
    %v2118 = vadd.f32 %v2034, %v2117
    %2119 = vmatprep.mubr.f32.mxu0 0.0
    %2120 = vmatmul.mubr.f32.gmra.mrb[0].mxu0 %v2041
    %v2121 = vpop.f32.mrb[0].mxu0
    %v2122 = vadd.f32 %v2030, %v2121
    %v2123 = vpop.f32.mrb[0].mxu0
    %v2124 = vadd.f32 %v2034, %v2123
    %2125 = vmatprep.mubr.f32.mxu0 0.0
    %2126 = vmatmul.mubr.f32.gmra.mrb[0].mxu0 %v2044
    %v2127 = vpop.f32.mrb[0].mxu0
    %v2128 = vadd.f32 %v2030, %v2127
    %v2129 = vpop.f32.mrb[0].mxu0
    %v2130 = vadd.f32 %v2034, %v2129
    %2131 = vmatprep.mubr.f32.mxu0 0.0
    %2132 = vmatmul.mubr.f32.gmra.mrb[0].mxu0 %v2047
    %v2133 = vpop.f32.mrb[0].mxu0
    %v2134 = vadd.f32 %v2030, %v2133
    %v2135 = vpop.f32.mrb[0].mxu0
    %v2136 = vadd.f32 %v2034, %v2135
    %2137 = vdwg.mxu0
    %2139 = vrot.lane.b32.xlu0 %v2016, 120
    %v2140 = vpop.permute.xlu0 %2139
    %2141 = vrot.lane.b32.xlu0 %v2016, 112
    %v2142 = vpop.permute.xlu0 %2141
    %2143 = vrot.lane.b32.xlu0 %v2016, 104
    %v2144 = vpop.permute.xlu0 %2143
    %2149 = vrot.lane.b32.xlu0 %v2116, 120
    %v2150 = vpop.permute.xlu0 %2149
    %2151 = vrot.lane.b32.xlu0 %v2122, 120
    %v2152 = vpop.permute.xlu0 %2151
    %2153 = vrot.lane.b32.xlu0 %v2128, 120
    %v2154 = vpop.permute.xlu0 %2153
    %2155 = vrot.lane.b32.xlu0 %v2134, 120
    %v2156 = vpop.permute.xlu0 %2155
    %2157 = vrot.lane.b32.xlu0 %v2116, 112
    %v2158 = vpop.permute.xlu0 %2157
    %2159 = vrot.lane.b32.xlu0 %v2122, 112
    %v2160 = vpop.permute.xlu0 %2159
    %2161 = vrot.lane.b32.xlu0 %v2128, 112
    %v2162 = vpop.permute.xlu0 %2161
    %2163 = vrot.lane.b32.xlu0 %v2134, 112
    %v2164 = vpop.permute.xlu0 %2163
    %2165 = vrot.lane.b32.xlu0 %v2116, 104
    %v2166 = vpop.permute.xlu0 %2165
    %2167 = vrot.lane.b32.xlu0 %v2122, 104
    %v2168 = vpop.permute.xlu0 %2167
    %2169 = vrot.lane.b32.xlu0 %v2128, 104
    %v2170 = vpop.permute.xlu0 %2169
    %2171 = vrot.lane.b32.xlu0 %v2134, 104
    %v2172 = vpop.permute.xlu0 %2171
    %2173 = vrot.lane.b32.xlu0 %v2116, 96
    %v2174 = vpop.permute.xlu0 %2173
    %2175 = vrot.lane.b32.xlu0 %v2122, 96
    %v2176 = vpop.permute.xlu0 %2175
    %2177 = vrot.lane.b32.xlu0 %v2128, 96
    %v2178 = vpop.permute.xlu0 %2177
    %2179 = vrot.lane.b32.xlu0 %v2134, 96
    %v2180 = vpop.permute.xlu0 %2179
    %2181 = vrot.lane.b32.xlu0 %v2116, 64
    %v2182 = vpop.permute.xlu0 %2181
    %2183 = vrot.lane.b32.xlu0 %v2122, 64
    %v2184 = vpop.permute.xlu0 %2183
    %2185 = vrot.lane.b32.xlu0 %v2128, 64
    %v2186 = vpop.permute.xlu0 %2185
    %2187 = vrot.lane.b32.xlu0 %v2134, 64
    %v2188 = vpop.permute.xlu0 %2187
    %2193 = vrot.lane.b32.xlu0 %v2118, 32
    %v2194 = vpop.permute.xlu0 %2193
    %2195 = vrot.lane.b32.xlu0 %v2124, 32
    %v2196 = vpop.permute.xlu0 %2195
    %2197 = vrot.lane.b32.xlu0 %v2130, 32
    %v2198 = vpop.permute.xlu0 %2197
    %2199 = vrot.lane.b32.xlu0 %v2136, 32
    %v2200 = vpop.permute.xlu0 %2199
    %v2201 = vsel %vm395, %v2016, 0
    %v2203 = vsel %vm395, %v2140, 0
    %v2205 = vsel %vm395, %v2142, 0
    %v2207 = vsel %vm395, %v2144, 0
    %v2209 = vsel %vm395, %v2116, 0
    %v2211 = vsel %vm395, %v2122, 0
    %v2213 = vsel %vm395, %v2128, 0
    %v2215 = vsel %vm395, %v2134, 0
    %v2217 = vsel %vm395, %v2150, 0
    %v2219 = vsel %vm395, %v2152, 0
    %v2221 = vsel %vm395, %v2154, 0
    %v2223 = vsel %vm395, %v2156, 0
    %v2225 = vsel %vm395, %v2158, 0
    %v2227 = vsel %vm395, %v2160, 0
    %v2229 = vsel %vm395, %v2162, 0
    %v2231 = vsel %vm395, %v2164, 0
    %v2233 = vsel %vm395, %v2166, 0
    %v2235 = vsel %vm395, %v2168, 0
    %v2237 = vsel %vm395, %v2170, 0
    %v2239 = vsel %vm395, %v2172, 0
    %2241 = vmatprep.subr.mxu0 0.0
    %2242 = vmatpush1.xpose.msra.mxu0 %v2209
    %2243 = vmatprep.subr.mxu0 0.0
    %2244 = vmatpush1.xpose.msra.mxu0 %v2211
    %2245 = vmatprep.subr.mxu0 0.0
    %2246 = vmatpush1.xpose.msra.mxu0 %v2213
    %2247 = vmatprep.subr.mxu0 0.0
    %2248 = vmatpush1.xpose.msra.mxu0 %v2215
    %2249 = vmatprep.subr.mxu0 0.0
    %2250 = vmatpush1.xpose.msra.mxu0 %v2217
    %2251 = vmatprep.subr.mxu0 0.0
    %2252 = vmatpush1.xpose.msra.mxu0 %v2219
    %2253 = vmatprep.subr.mxu0 0.0
    %2254 = vmatpush1.xpose.msra.mxu0 %v2221
    %2255 = vmatprep.subr.mxu0 0.0
    %2256 = vmatpush1.xpose.msra.mxu0 %v2223
    %2257 = vmatprep.subr.mxu0 0.0
    %2258 = vmatpush1.xpose.msra.mxu0 %v2225
    %2259 = vmatprep.subr.mxu0 0.0
    %2260 = vmatpush1.xpose.msra.mxu0 %v2227
    %2261 = vmatprep.subr.mxu0 0.0
    %2262 = vmatpush1.xpose.msra.mxu0 %v2229
    %2263 = vmatprep.subr.mxu0 0.0
    %2264 = vmatpush1.xpose.msra.mxu0 %v2231
    %2265 = vmatprep.subr.mxu0 0.0
    %2266 = vmatpush1.xpose.msra.mxu0 %v2233
    %2267 = vmatprep.subr.mxu0 0.0
    %2268 = vmatpush1.xpose.msra.mxu0 %v2235
    %2269 = vmatprep.subr.mxu0 0.0
    %2270 = vmatpush1.xpose.msra.mxu0 %v2237
    %2271 = vmatprep.subr.mxu0 0.0
    %2272 = vmatpush1.xpose.msra.mxu0 %v2239
    %2273 = vmatprep.subr.mxu0 0.0
    %2274 = vmatpush1.xpose.msra.mxu0 0.0
    %2275 = vmatprep.subr.mxu0 0.0
    %2276 = vmatpush1.xpose.msra.mxu0 0.0
    %2277 = vmatprep.subr.mxu0 0.0
    %2278 = vmatpush1.xpose.msra.mxu0 0.0
    %2279 = vmatprep.subr.mxu0 0.0
    %2280 = vmatpush1.xpose.msra.mxu0 0.0
    %2281 = vmatprep.subr.mxu0 0.0
    %2282 = vmatpush1.xpose.msra.mxu0 0.0
    %2283 = vmatprep.subr.mxu0 0.0
    %2284 = vmatpush1.xpose.msra.mxu0 0.0
    %2285 = vmatprep.subr.mxu0 0.0
    %2286 = vmatpush1.xpose.msra.mxu0 0.0
    %2287 = vmatprep.subr.mxu0 0.0
    %2288 = vmatpush1.xpose.msra.mxu0 0.0
    %2289 = vmatprep.subr.mxu0 0.0
    %2290 = vmatpush1.xpose.msra.mxu0 0.0
    %2291 = vmatprep.subr.mxu0 0.0
    %2292 = vmatpush1.xpose.msra.mxu0 0.0
    %2293 = vmatprep.subr.mxu0 0.0
    %2294 = vmatpush1.xpose.msra.mxu0 0.0
    %2295 = vmatprep.subr.mxu0 0.0
    %2296 = vmatpush1.xpose.msra.mxu0 0.0
    %2297 = vmatprep.subr.mxu0 0.0
    %2298 = vmatpush1.xpose.msra.mxu0 0.0
    %2299 = vmatprep.subr.mxu0 0.0
    %2300 = vmatpush1.xpose.msra.mxu0 0.0
    %2301 = vmatprep.subr.mxu0 0.0
    %2302 = vmatpush1.xpose.msra.mxu0 0.0
    %2303 = vmatprep.subr.mxu0 0.0
    %2304 = vmatpush1.xpose.msra.mxu0 0.0
    %2305 = vmatprep.mubr.f32.mxu0 0.0
    %2306 = vmatmul.mubr.f32.gmra.mrb[0].mxu0 %v2201
    %v2307 = vpop.f32.mrb[0].mxu0
    %v2308 = vadd.f32 %v114, %v2307
    %v2309 = vpop.f32.mrb[0].mxu0
    %2310 = vmatprep.mubr.f32.mxu0 0.0
    %2311 = vmatmul.mubr.f32.gmra.mrb[0].mxu0 %v2203
    %v2312 = vpop.f32.mrb[0].mxu0
    %v2313 = vadd.f32 %v115, %v2312
    %v2314 = vpop.f32.mrb[0].mxu0
    %2315 = vmatprep.mubr.f32.mxu0 0.0
    %2316 = vmatmul.mubr.f32.gmra.mrb[0].mxu0 %v2205
    %v2317 = vpop.f32.mrb[0].mxu0
    %v2318 = vadd.f32 %v116, %v2317
    %v2319 = vpop.f32.mrb[0].mxu0
    %2320 = vmatprep.mubr.f32.mxu0 0.0
    %2321 = vmatmul.mubr.f32.gmra.mrb[0].mxu0 %v2207
    %v2322 = vpop.f32.mrb[0].mxu0
    %v2323 = vadd.f32 %v117, %v2322
    %v2324 = vpop.f32.mrb[0].mxu0
    %2325 = vdwg.mxu0
    %2326 = vmax.xlane.f32.xlu0 %v2308
    %v2327 = vpop.xlane.xlu0 %2326
    %2328 = vmax.xlane.f32.xlu0 %v2313
    %v2329 = vpop.xlane.xlu0 %2328
    %2330 = vmax.xlane.f32.xlu0 %v2318
    %v2331 = vpop.xlane.xlu0 %2330
    %2332 = vmax.xlane.f32.xlu0 %v2323
    %v2333 = vpop.xlane.xlu0 %2332
    %v2334 = vsub.f32 %v2308, %v2327
    %v2335 = vsub.f32 %v2313, %v2329
    %v2336 = vsub.f32 %v2318, %v2331
    %v2337 = vsub.f32 %v2323, %v2333
    %v2338 = vmul.f32 %v2334, 1.442695
    %v2339 = vpow.pop %v2338
    %v2340 = vmul.f32 %v2335, 1.442695
    %v2341 = vpow.pop %v2340
    %v2342 = vmul.f32 %v2336, 1.442695
    %v2343 = vpow.pop %v2342
    %v2344 = vmul.f32 %v2337, 1.442695
    %v2345 = vpow.pop %v2344
    %2346 = vadd.xlane.f32.xlu0 %v2339
    %v2347 = vpop.xlane.xlu0 %2346
    %2348 = vadd.xlane.f32.xlu0 %v2341
    %v2349 = vpop.xlane.xlu0 %2348
    %2350 = vadd.xlane.f32.xlu0 %v2343
    %v2351 = vpop.xlane.xlu0 %2350
    %2352 = vadd.xlane.f32.xlu0 %v2345
    %v2353 = vpop.xlane.xlu0 %2352
    %v2354 = vrcp.pop %v2347
    %v2355 = vmul.f32 1.0, %v2354
    %v2356 = vrcp.pop %v2349
    %v2357 = vmul.f32 1.0, %v2356
    %v2358 = vrcp.pop %v2351
    %v2359 = vmul.f32 1.0, %v2358
    %v2360 = vrcp.pop %v2353
    %v2361 = vmul.f32 1.0, %v2360
    %v2362 = vmul.f32 %v2339, %v2355
    %v2363 = vmul.f32 %v2341, %v2357
    %v2364 = vmul.f32 %v2343, %v2359
    %v2365 = vmul.f32 %v2345, %v2361
    %2366 = vrot.lane.b32.xlu0 %v2174, 96
    %v2367 = vpop.permute.xlu0 %2366
    %2368 = vrot.lane.b32.xlu0 %v2176, 96
    %v2369 = vpop.permute.xlu0 %2368
    %2370 = vrot.lane.b32.xlu0 %v2178, 96
    %v2371 = vpop.permute.xlu0 %2370
    %2372 = vrot.lane.b32.xlu0 %v2180, 96
    %v2373 = vpop.permute.xlu0 %2372
    %2374 = vrot.lane.b32.xlu0 %v2182, 96
    %v2375 = vpop.permute.xlu0 %2374
    %2376 = vrot.lane.b32.xlu0 %v2184, 96
    %v2377 = vpop.permute.xlu0 %2376
    %2378 = vrot.lane.b32.xlu0 %v2186, 96
    %v2379 = vpop.permute.xlu0 %2378
    %2380 = vrot.lane.b32.xlu0 %v2188, 96
    %v2381 = vpop.permute.xlu0 %2380
    %2382 = vrot.lane.b32.xlu0 %v2194, 96
    %v2383 = vpop.permute.xlu0 %2382
    %2384 = vrot.lane.b32.xlu0 %v2196, 96
    %v2385 = vpop.permute.xlu0 %2384
    %2386 = vrot.lane.b32.xlu0 %v2198, 96
    %v2387 = vpop.permute.xlu0 %2386
    %2388 = vrot.lane.b32.xlu0 %v2200, 96
    %v2389 = vpop.permute.xlu0 %2388
    %2406 = vmatprep.subr.mxu0 0.0
    %2407 = vmatpush1.msra.mxu0 %v2174
    %2408 = vmatprep.subr.mxu0 0.0
    %2409 = vmatpush1.msra.mxu0 %v2176
    %2410 = vmatprep.subr.mxu0 0.0
    %2411 = vmatpush1.msra.mxu0 %v2178
    %2412 = vmatprep.subr.mxu0 0.0
    %2413 = vmatpush1.msra.mxu0 %v2180
    %2414 = vmatprep.subr.mxu0 0.0
    %2415 = vmatpush1.msra.mxu0 %v2367
    %2416 = vmatprep.subr.mxu0 0.0
    %2417 = vmatpush1.msra.mxu0 %v2369
    %2418 = vmatprep.subr.mxu0 0.0
    %2419 = vmatpush1.msra.mxu0 %v2371
    %2420 = vmatprep.subr.mxu0 0.0
    %2421 = vmatpush1.msra.mxu0 %v2373
    %2422 = vmatprep.subr.mxu0 0.0
    %2423 = vmatpush1.msra.mxu0 %v2375
    %2424 = vmatprep.subr.mxu0 0.0
    %2425 = vmatpush1.msra.mxu0 %v2377
    %2426 = vmatprep.subr.mxu0 0.0
    %2427 = vmatpush1.msra.mxu0 %v2379
    %2428 = vmatprep.subr.mxu0 0.0
    %2429 = vmatpush1.msra.mxu0 %v2381
    %2430 = vmatprep.subr.mxu0 0.0
    %2431 = vmatpush1.msra.mxu0 %v2383
    %2432 = vmatprep.subr.mxu0 0.0
    %2433 = vmatpush1.msra.mxu0 %v2385
    %2434 = vmatprep.subr.mxu0 0.0
    %2435 = vmatpush1.msra.mxu0 %v2387
    %2436 = vmatprep.subr.mxu0 0.0
    %2437 = vmatpush1.msra.mxu0 %v2389
    %2438 = vmatprep.subr.mxu0 0.0
    %2439 = vmatpush1.msra.mxu0 0.0
    %2440 = vmatprep.subr.mxu0 0.0
    %2441 = vmatpush1.msra.mxu0 0.0
    %2442 = vmatprep.subr.mxu0 0.0
    %2443 = vmatpush1.msra.mxu0 0.0
    %2444 = vmatprep.subr.mxu0 0.0
    %2445 = vmatpush1.msra.mxu0 0.0
    %2446 = vmatprep.subr.mxu0 0.0
    %2447 = vmatpush1.msra.mxu0 0.0
    %2448 = vmatprep.subr.mxu0 0.0
    %2449 = vmatpush1.msra.mxu0 0.0
    %2450 = vmatprep.subr.mxu0 0.0
    %2451 = vmatpush1.msra.mxu0 0.0
    %2452 = vmatprep.subr.mxu0 0.0
    %2453 = vmatpush1.msra.mxu0 0.0
    %2454 = vmatprep.subr.mxu0 0.0
    %2455 = vmatpush1.msra.mxu0 0.0
    %2456 = vmatprep.subr.mxu0 0.0
    %2457 = vmatpush1.msra.mxu0 0.0
    %2458 = vmatprep.subr.mxu0 0.0
    %2459 = vmatpush1.msra.mxu0 0.0
    %2460 = vmatprep.subr.mxu0 0.0
    %2461 = vmatpush1.msra.mxu0 0.0
    %2462 = vmatprep.subr.mxu0 0.0
    %2463 = vmatpush1.msra.mxu0 0.0
    %2464 = vmatprep.subr.mxu0 0.0
    %2465 = vmatpush1.msra.mxu0 0.0
    %2466 = vmatprep.subr.mxu0 0.0
    %2467 = vmatpush1.msra.mxu0 0.0
    %2468 = vmatprep.subr.mxu0 0.0
    %2469 = vmatpush1.msra.mxu0 0.0
    %2470 = vmatprep.mubr.f32.mxu0 0.0
    %2471 = vmatmul.mubr.f32.gmra.mrb[0].mxu0 %v2362
    %v2472 = vpop.f32.mrb[0].mxu0
    %v2473 = vadd.f32 0.0, %v2472
    %v2474 = vpop.f32.mrb[0].mxu0
    %2475 = vmatprep.mubr.f32.mxu0 0.0
    %2476 = vmatmul.mubr.f32.gmra.mrb[0].mxu0 %v2363
    %v2477 = vpop.f32.mrb[0].mxu0
    %v2478 = vadd.f32 0.0, %v2477
    %v2479 = vpop.f32.mrb[0].mxu0
    %2480 = vmatprep.mubr.f32.mxu0 0.0
    %2481 = vmatmul.mubr.f32.gmra.mrb[0].mxu0 %v2364
    %v2482 = vpop.f32.mrb[0].mxu0
    %v2483 = vadd.f32 0.0, %v2482
    %v2484 = vpop.f32.mrb[0].mxu0
    %2485 = vmatprep.mubr.f32.mxu0 0.0
    %2486 = vmatmul.mubr.f32.gmra.mrb[0].mxu0 %v2365
    %v2487 = vpop.f32.mrb[0].mxu0
    %v2488 = vadd.f32 0.0, %v2487
    %v2489 = vpop.f32.mrb[0].mxu0
    %2490 = vdwg.mxu0
    %v2491 = vadd.f32 %v2473, %v2478
    %v2492 = vadd.f32 %v2491, %v2483
    %v2493 = vadd.f32 %v2492, %v2488
    %v2494 = vld [vmem:[%s21] sm:$0x1]
    %v2496 = vlaneseq
    %v2497 = vshrl.u32 %v2496, 7
    %v2498 = vsub.s32 0, %v2497
    %v2499 = vrot.slane %v2494, %v2498
    %v2501 = vadd.f32 %v2493, %v2499
    %vm2502 = vcmask 257024
    %v2503 = vsel %vm2502, %v2501, 0.0
    %v2504 = vrot.slane %v2503, 4
    %v2505 = vadd.f32 %v2503, %v2504
    %v2506 = vrot.slane %v2505, 2
    %v2507 = vadd.f32 %v2505, %v2506
    %v2508 = vrot.slane %v2507, 1
    %v2509 = vadd.f32 %v2507, %v2508
    %v2510 = vrcp.pop 4.0
    %v2511 = vmul.f32 %v2509, %v2510
    %v2513 = vrot.slane %v2501, 4
    %v2515 = vsel %vm2502, %v2513, 0.0
    %v2516 = vrot.slane %v2515, 4
    %v2517 = vadd.f32 %v2515, %v2516
    %v2518 = vrot.slane %v2517, 2
    %v2519 = vadd.f32 %v2517, %v2518
    %v2520 = vrot.slane %v2519, 1
    %v2521 = vadd.f32 %v2519, %v2520
    %v2522 = vmul.f32 %v2521, %v2510
    %vm2523 = vcmask 1040384
    %v2524 = vsel %vm2523, %v2511, %v2522
    %v2525 = vld [vmem:[%s22] sm:$0xff]
    %v2526 = vld [vmem:[%s22 + $0x8] sm:$0xff]
    %v2527 = vld [vmem:[%s22 + $0x10] sm:$0xff]
    %v2528 = vld [vmem:[%s22 + $0x18] sm:$0xff]
    %v2529 = vld [vmem:[%s23] sm:$0x1]
    %v2531 = vlaneseq
    %v2532 = vshrl.u32 %v2531, 7
    %v2533 = vsub.s32 0, %v2532
    %v2534 = vrot.slane %v2529, %v2533
    %v2537 = vsel %vm120, %v2524, 0
    %2539 = vmatprep.subr.mxu0 0.0
    %2540 = vmatpush1.msra.mxu0 %v2525
    %2541 = vmatprep.subr.mxu0 0.0
    %2542 = vmatpush1.msra.mxu0 %v2526
    %2543 = vmatprep.subr.mxu0 0.0
    %2544 = vmatpush1.msra.mxu0 %v2527
    %2545 = vmatprep.subr.mxu0 0.0
    %2546 = vmatpush1.msra.mxu0 %v2528
    %2547 = vmatprep.subr.mxu0 0.0
    %2548 = vmatpush1.msra.mxu0 0.0
    %2549 = vmatprep.subr.mxu0 0.0
    %2550 = vmatpush1.msra.mxu0 0.0
    %2551 = vmatprep.subr.mxu0 0.0
    %2552 = vmatpush1.msra.mxu0 0.0
    %2553 = vmatprep.subr.mxu0 0.0
    %2554 = vmatpush1.msra.mxu0 0.0
    %2555 = vmatprep.subr.mxu0 0.0
    %2556 = vmatpush1.msra.mxu0 0.0
    %2557 = vmatprep.subr.mxu0 0.0
    %2558 = vmatpush1.msra.mxu0 0.0
    %2559 = vmatprep.subr.mxu0 0.0
    %2560 = vmatpush1.msra.mxu0 0.0
    %2561 = vmatprep.subr.mxu0 0.0
    %2562 = vmatpush1.msra.mxu0 0.0
    %2563 = vmatprep.subr.mxu0 0.0
    %2564 = vmatpush1.msra.mxu0 0.0
    %2565 = vmatprep.subr.mxu0 0.0
    %2566 = vmatpush1.msra.mxu0 0.0
    %2567 = vmatprep.subr.mxu0 0.0
    %2568 = vmatpush1.msra.mxu0 0.0
    %2569 = vmatprep.subr.mxu0 0.0
    %2570 = vmatpush1.msra.mxu0 0.0
    %2571 = vmatprep.subr.mxu0 0.0
    %2572 = vmatpush1.msra.mxu0 0.0
    %2573 = vmatprep.subr.mxu0 0.0
    %2574 = vmatpush1.msra.mxu0 0.0
    %2575 = vmatprep.subr.mxu0 0.0
    %2576 = vmatpush1.msra.mxu0 0.0
    %2577 = vmatprep.subr.mxu0 0.0
    %2578 = vmatpush1.msra.mxu0 0.0
    %2579 = vmatprep.subr.mxu0 0.0
    %2580 = vmatpush1.msra.mxu0 0.0
    %2581 = vmatprep.subr.mxu0 0.0
    %2582 = vmatpush1.msra.mxu0 0.0
    %2583 = vmatprep.subr.mxu0 0.0
    %2584 = vmatpush1.msra.mxu0 0.0
    %2585 = vmatprep.subr.mxu0 0.0
    %2586 = vmatpush1.msra.mxu0 0.0
    %2587 = vmatprep.subr.mxu0 0.0
    %2588 = vmatpush1.msra.mxu0 0.0
    %2589 = vmatprep.subr.mxu0 0.0
    %2590 = vmatpush1.msra.mxu0 0.0
    %2591 = vmatprep.subr.mxu0 0.0
    %2592 = vmatpush1.msra.mxu0 0.0
    %2593 = vmatprep.subr.mxu0 0.0
    %2594 = vmatpush1.msra.mxu0 0.0
    %2595 = vmatprep.subr.mxu0 0.0
    %2596 = vmatpush1.msra.mxu0 0.0
    %2597 = vmatprep.subr.mxu0 0.0
    %2598 = vmatpush1.msra.mxu0 0.0
    %2599 = vmatprep.subr.mxu0 0.0
    %2600 = vmatpush1.msra.mxu0 0.0
    %2601 = vmatprep.subr.mxu0 0.0
    %2602 = vmatpush1.msra.mxu0 0.0
    %2603 = vmatprep.mubr.f32.mxu0 0.0
    %2604 = vmatmul.mubr.f32.gmra.mrb[0].mxu0 %v2537
    %v2605 = vpop.f32.mrb[0].mxu0
    %v2606 = vadd.f32 %v2534, %v2605
    %v2607 = vpop.f32.mrb[0].mxu0
    %2608 = vdwg.mxu0
    %v2609 = vmax.f32 %v2606, 0.0
    %v2610 = vand.u32 2147483647, %v2606
    %v2611 = vsub.f32 0.0, %v2610
    %v2612 = vmul.f32 %v2611, 1.442695
    %v2613 = vpow.pop %v2612
    %v2614 = vadd.f32 %v2613, 1.0
    %v2615 = vlog2.pop %v2614
    %v2616 = vmul.f32 %v2615, 0.6931472
    %v2617 = vadd.f32 %v2609, %v2616
    %v2618 = vtanh.pop %v2617
    %v2619 = vmul.f32 %v2606, %v2618
    %vm2620 = vcmask 58368
    %2621 = vst.msk [vmem:[#allocation2] sm:$0x3] %vm2620, %v2619
    // Predicated region
    $region98: #{esa_forward.1} parent=1 // pred_check
      _
    $region99: #{esa_forward.1} parent=1 // pred_check_branch
      %2623 = sbr.rel (0) target = $region101
    $region100: #{esa_forward.1} parent=1 // pred_region
      %s2625 = ssub.s32 32, 32
      %2626 = vsyncadd [#allocation3], %s2625
      %s2628 = sshll.u32 [#allocation2], 4
      %s2629 = int_to_ptr.vmem [resolvable:$true] %s2628
      %2631 = dma.vmem_to_hbm [thread:$0]  %s2629, 32, %s24, [#allocation3]
    $region101: #{esa_forward.1} parent=1 // pred_fallthru
      _
    // Predicated region
    $region102: #{esa_forward.1} parent=1 // pred_check
      _
    $region103: #{esa_forward.1} parent=1 // pred_check_branch
      %2633 = sbr.rel (0) target = $region105
    $region104: #{esa_forward.1} parent=1 // pred_region
      %2634 = dma.done [#allocation3], 32
    $region105: #{esa_forward.1} parent=1 // pred_fallthru
      _
    %2635 = vsyncpa [#allocation3], 1

</llo_original>
